<compile_context>
chip_gen: v6e
topology: v6e:2x2x1
jax: 0.10.0
libtpu: 0.0.40
codegen_flags: <defaults>
</compile_context>

<pallas_src>
import functools

import jax
import jax.numpy as jnp
from jax.experimental import pallas as pl
from jax.experimental.pallas import tpu as pltpu


_NEG_SLOPE = 0.2
_BLOCK_SPECS = [(16, False), (32, True), (64, True), (128, True)]   # (cout, bn)

_COMPILER_PARAMS = pltpu.CompilerParams(
    dimension_semantics=("parallel",),          # megacore sharding over images
    vmem_limit_bytes=32 * 1024 * 1024,          # safe on v5e/v6e/v7x
)


# ----------------------------- Pallas kernels ------------------------------

def _conv_block_kernel(x_ref, w_ref, pc_ref, o_ref, *, wq, rows):
    """Fused Conv2d(3x3, s=2, p=1) + bias + LeakyReLU(0.2) + BN affine.

    The conv is expressed as a 2x2/stride-1 conv over the space-to-depth(2)
    input; the four taps are unit-stride VMEM slices (in-VMEM im2col, no HBM
    patch matrix), each feeding one MXU matmul accumulated in f32.

    x_ref : (1, Hq*Wq + 1, 4*Cin)  flattened, zero-padded, s2d'd input image
    w_ref : (4, 4*Cin, Cout)       per-tap weights (tap = 2*dr + dc), resident
    pc_ref: (3, Cout)              packed [conv bias, BN scale, BN shift]
    o_ref : (1, OH*Wq, Cout)       GEMM rows (last column of each row is junk
                                   and is sliced off by the consumer)
    """
    cout = o_ref.shape[-1]
    acc = jnp.zeros((rows, cout), jnp.float32)
    for tap, (dr, dc) in enumerate(((0, 0), (0, 1), (1, 0), (1, 1))):
        start = dr * wq + dc                        # static Python int
        lhs = x_ref[0, start:start + rows, :]       # (rows, 4*Cin), unit stride
        acc = acc + jnp.dot(lhs, w_ref[tap], preferred_element_type=jnp.float32)
    pc = pc_ref[...]
    z = acc + pc[0:1, :]                            # conv bias
    z = jnp.where(z >= 0.0, z, _NEG_SLOPE * z)      # LeakyReLU(0.2)
    o_ref[0, :, :] = (z * pc[1:2, :] + pc[2:3, :]).astype(o_ref.dtype)  # BN


def _head_kernel(x_ref, w_ref, b_ref, o_ref):
    """Fused classifier head: Linear + exact Sigmoid."""
    acc = jnp.dot(x_ref[...], w_ref[...], preferred_element_type=jnp.float32)
    acc = acc + b_ref[...]
    o_ref[...] = 1.0 / (1.0 + jnp.exp(-acc))


# ------------------------------- glue (JAX) --------------------------------

def _conv_block(x_nhwc, blk):
    """One discriminator block on an NHWC bf16 activation.  Returns NHWC bf16."""
    n, h, w, cin = x_nhwc.shape
    w_taps, pc = blk["w_taps"], blk["pc"]
    c4 = 4 * cin
    cout = w_taps.shape[-1]
    oh, ow = (h + 1) // 2, (w + 1) // 2
    hq, wq = oh + 1, ow + 1

    # Zero-pad + space-to-depth(2), flattened per image: ONE fused XLA copy
    # (~1x activation bytes) replacing the 2.25x-8x im2col patch matrix.  The
    # extra trailing zero row keeps the (dr=1, dc=1) tap's contiguous slice in
    # bounds inside the kernel.
    xp = jnp.pad(x_nhwc,
                 ((0, 0), (1, 2 * hq - h - 1), (1, 2 * wq - w - 1), (0, 0)))
    x_s2d = xp.reshape(n, hq, 2, wq, 2, cin).transpose(0, 1, 3, 2, 4, 5)
    x_s2d = x_s2d.reshape(n, hq * wq, c4)
    x_s2d = jnp.pad(x_s2d, ((0, 0), (0, 1), (0, 0)))
    l_in = hq * wq + 1
    rows = oh * wq            # per-image GEMM rows (one junk column per row)

    kernel = functools.partial(_conv_block_kernel, wq=wq, rows=rows)
    out = pl.pallas_call(
        kernel,
        out_shape=jax.ShapeDtypeStruct((n, rows, cout), jnp.bfloat16),
        grid=(n,),
        in_specs=[
            pl.BlockSpec((1, l_in, c4), lambda i: (i, 0, 0)),
            pl.BlockSpec((4, c4, cout), lambda i: (0, 0, 0)),   # resident
            pl.BlockSpec((3, cout), lambda i: (0, 0)),          # resident
        ],
        out_specs=pl.BlockSpec((1, rows, cout), lambda i: (i, 0, 0)),
        compiler_params=_COMPILER_PARAMS,
    )(x_s2d, w_taps, pc)
    # Drop the junk column; this slice fuses into the next layer's
    # pad + space-to-depth copy (no extra HBM round trip).
    return out.reshape(n, oh, wq, cout)[:, :, :ow, :]


def _head(x_flat, fc_w_t, fc_b):
    n, fc_in = x_flat.shape
    channels = fc_w_t.shape[-1]
    return pl.pallas_call(
        _head_kernel,
        out_shape=jax.ShapeDtypeStruct((n, channels), jnp.float32),
        grid=(1,),
        in_specs=[
            pl.BlockSpec((n, fc_in), lambda i: (0, 0)),
            pl.BlockSpec((fc_in, channels), lambda i: (0, 0)),
            pl.BlockSpec((1, channels), lambda i: (0, 0)),
        ],
        out_specs=pl.BlockSpec((n, channels), lambda i: (0, 0)),
        compiler_params=pltpu.CompilerParams(
            dimension_semantics=("arbitrary",)),
    )(x_flat, fc_w_t, fc_b)


def discriminator_forward(img, params):
    """img: NCHW float32.  Returns (N, channels) sigmoid outputs (float32)."""
    # One-time NCHW -> NHWC; activations stay NHWC bf16 between layers.
    x = img.transpose(0, 2, 3, 1).astype(jnp.bfloat16)
    for blk in params["blocks"]:
        x = _conv_block(x, blk)
    n = x.shape[0]
    flat = x.reshape(n, -1)       # NHWC flatten; fc columns pre-permuted at init
    return _head(flat, params["fc_w_t"], params["fc_b"])


# --------------------------- deterministic params --------------------------

def init_params(key, channels, img_size):
    """Returns (kernel-format params, raw params for the f32 reference)."""
    blocks, raw_blocks = [], []
    cin = channels
    for cout, bn in _BLOCK_SPECS:
        key, k1, k2, k3, k4 = jax.random.split(key, 5)
        w = 0.1 * jax.random.normal(k1, (cout, cin, 3, 3), jnp.float32)
        b = 0.1 * jax.random.normal(k2, (cout,), jnp.float32)
        if bn:
            gamma = 1.0 + 0.1 * jax.random.normal(k3, (cout,), jnp.float32)
            beta = 0.1 * jax.random.normal(k4, (cout,), jnp.float32)
            running_mean = jnp.zeros((cout,), jnp.float32)   # PyTorch init
            running_var = jnp.ones((cout,), jnp.float32)     # PyTorch init
            eps = 0.8                                        # nn.BatchNorm2d(C, 0.8)
            scale = gamma / jnp.sqrt(running_var + eps)
            shift = beta - running_mean * scale
        else:
            scale = jnp.ones((cout,), jnp.float32)
            shift = jnp.zeros((cout,), jnp.float32)

        # Re-express the 3x3/s2 kernel as four 2x2/s1 taps over the
        # space-to-depth(2) input.  Within a tap (dr, dc) the 4*cin channels
        # are ordered (row parity, col parity, cin); the original kernel
        # positions are kh = 2*dr + pr, kw = 2*dc + pc, and the (pr, pc)
        # combinations that would need kh/kw == 3 get zero weights.
        wp = jnp.pad(w, ((0, 0), (0, 0), (0, 1), (0, 1)))     # (cout, cin, 4, 4)
        wp = wp.reshape(cout, cin, 2, 2, 2, 2)                # kh->(dr,pr), kw->(dc,pc)
        wp = wp.transpose(2, 4, 3, 5, 1, 0)                   # (dr, dc, pr, pc, cin, cout)
        w_taps = wp.reshape(4, 4 * cin, cout).astype(jnp.bfloat16)

        pc = jnp.stack([b, scale, shift]).astype(jnp.float32)  # packed (3, cout)
        blocks.append(dict(w_taps=w_taps, pc=pc))
        raw_blocks.append(dict(w=w, b=b, scale=scale, shift=shift))
        cin = cout

    ds = img_size // 2 ** 4
    fc_in = 128 * ds * ds
    key, k1, k2 = jax.random.split(key, 3)
    fc_w = 0.05 * jax.random.normal(k1, (channels, fc_in), jnp.float32)  # (out, in)
    fc_b = 0.05 * jax.random.normal(k2, (channels,), jnp.float32)
    # Permute columns (c, h, w) -> (h, w, c) so the NHWC flatten reproduces
    # PyTorch's NCHW .view(N, -1).
    fc_w_t = fc_w.reshape(channels, 128, ds, ds).transpose(2, 3, 1, 0)
    fc_w_t = fc_w_t.reshape(fc_in, channels).astype(jnp.bfloat16)

    params = dict(blocks=blocks, fc_w_t=fc_w_t, fc_b=fc_b[None, :])
    raw = dict(blocks=raw_blocks, fc_w=fc_w, fc_b=fc_b)
    return params, raw


# ------------------------ pure-JAX f32 reference ----------------------------

def _reference_forward(img, raw):
    """Eval-mode PyTorch-equivalent forward in f32 (for validation)."""
    x = img
    for blk in raw["blocks"]:
        x = jax.lax.conv_general_dilated(
            x, blk["w"], window_strides=(2, 2), padding=((1, 1), (1, 1)),
            dimension_numbers=("NCHW", "OIHW", "NCHW"))
        x = x + blk["b"][None, :, None, None]
        x = jnp.where(x >= 0.0, x, _NEG_SLOPE * x)       # LeakyReLU(0.2)
        # Dropout2d(0.25) == identity (eval); BatchNorm with running stats.
        x = x * blk["scale"][None, :, None, None] + blk["shift"][None, :, None, None]
    n = x.shape[0]
    logits = x.reshape(n, -1) @ raw["fc_w"].T + raw["fc_b"]
    return jax.nn.sigmoid(logits)


# ---------------------------------- main ------------------------------------

if __name__ == "__main__":
    batch, channels, img_size = 2, 4, 16
    key = jax.random.PRNGKey(0)
    key, k_img, k_par = jax.random.split(key, 3)

    img = jax.random.normal(k_img, (batch, channels, img_size, img_size),
                            jnp.float32)
    params, raw = init_params(k_par, channels, img_size)

    fwd = jax.jit(discriminator_forward)
    validity = jax.block_until_ready(fwd(img, params))

    assert validity.shape == (batch, channels)
    assert bool(jnp.all(jnp.isfinite(validity)))
    assert bool(jnp.all((validity >= 0.0) & (validity <= 1.0)))

    # Validate against the f32 reference (bf16 weights/activations tolerance).
    ref = jax.block_until_ready(jax.jit(_reference_forward)(img, raw))
    err = float(jnp.max(jnp.abs(validity - ref)))
    assert err < 3e-2, f"mismatch vs f32 reference: {err}"

    print("KERNEL_OK")
</pallas_src>

<mosaic_0001>
module attributes {stable_mosaic.version = 11 : i64} {
  func.func @_conv_block_kernel(%arg0: i32, %arg1: memref<1x82x16xbf16, #tpu.memory_space<vmem>>, %arg2: memref<4x16x16xbf16, #tpu.memory_space<vmem>>, %arg3: memref<3x16xf32, #tpu.memory_space<vmem>>, %arg4: memref<1x72x16xbf16, #tpu.memory_space<vmem>>) attributes {dimension_semantics = [#tpu.dimension_semantics<parallel>], iteration_bounds = array<i64: 2>, scalar_prefetch = 0 : i64, scratch_operands = 0 : i64, tpu.core_type = #tpu.core_type<tc>, window_params = [{transform_indices = @transform_0, window_bounds = array<i64: 1, 82, 16>}, {pipeline_mode = #tpu.pipeline_mode<synchronous>, transform_indices = @transform_1, window_bounds = array<i64: 4, 16, 16>}, {pipeline_mode = #tpu.pipeline_mode<synchronous>, transform_indices = @transform_2, window_bounds = array<i64: 3, 16>}, {transform_indices = @transform_3, window_bounds = array<i64: 1, 72, 16>}]} {
    %cst = arith.constant 0.000000e+00 : f32
    %0 = vector.broadcast %cst : f32 to vector<72x16xf32>
    %c0 = arith.constant 0 : index
    %c0_0 = arith.constant 0 : index
    %c0_1 = arith.constant 0 : index
    %1 = vector.load %arg1[%c0, %c0_0, %c0_1] : memref<1x82x16xbf16, #tpu.memory_space<vmem>>, vector<1x72x16xbf16>
    %2 = vector.shape_cast %1 : vector<1x72x16xbf16> to vector<72x16xbf16>
    %c0_2 = arith.constant 0 : index
    %c0_3 = arith.constant 0 : index
    %c0_4 = arith.constant 0 : index
    %3 = vector.load %arg2[%c0_2, %c0_3, %c0_4] : memref<4x16x16xbf16, #tpu.memory_space<vmem>>, vector<1x16x16xbf16>
    %4 = vector.shape_cast %3 : vector<1x16x16xbf16> to vector<16x16xbf16>
    %cst_5 = arith.constant dense<0.000000e+00> : vector<72x16xf32>
    %5 = tpu.matmul %2, %4, %cst_5 {dimension_numbers = #tpu.dot_dimension_numbers<[1], [0], [0], [1], [0, 0, 1, 1], [], []>} : vector<72x16xbf16>, vector<16x16xbf16>, vector<72x16xf32> -> vector<72x16xf32>
    %6 = arith.addf %0, %5 : vector<72x16xf32>
    %c0_6 = arith.constant 0 : index
    %c1 = arith.constant 1 : index
    %c0_7 = arith.constant 0 : index
    %7 = vector.load %arg1[%c0_6, %c1, %c0_7] : memref<1x82x16xbf16, #tpu.memory_space<vmem>>, vector<1x72x16xbf16>
    %8 = vector.shape_cast %7 : vector<1x72x16xbf16> to vector<72x16xbf16>
    %c1_8 = arith.constant 1 : index
    %c0_9 = arith.constant 0 : index
    %c0_10 = arith.constant 0 : index
    %9 = vector.load %arg2[%c1_8, %c0_9, %c0_10] : memref<4x16x16xbf16, #tpu.memory_space<vmem>>, vector<1x16x16xbf16>
    %10 = vector.shape_cast %9 : vector<1x16x16xbf16> to vector<16x16xbf16>
    %cst_11 = arith.constant dense<0.000000e+00> : vector<72x16xf32>
    %11 = tpu.matmul %8, %10, %cst_11 {dimension_numbers = #tpu.dot_dimension_numbers<[1], [0], [0], [1], [0, 0, 1, 1], [], []>} : vector<72x16xbf16>, vector<16x16xbf16>, vector<72x16xf32> -> vector<72x16xf32>
    %12 = arith.addf %6, %11 : vector<72x16xf32>
    %c0_12 = arith.constant 0 : index
    %c9 = arith.constant 9 : index
    %c0_13 = arith.constant 0 : index
    %13 = vector.load %arg1[%c0_12, %c9, %c0_13] : memref<1x82x16xbf16, #tpu.memory_space<vmem>>, vector<1x72x16xbf16>
    %14 = vector.shape_cast %13 : vector<1x72x16xbf16> to vector<72x16xbf16>
    %c2 = arith.constant 2 : index
    %c0_14 = arith.constant 0 : index
    %c0_15 = arith.constant 0 : index
    %15 = vector.load %arg2[%c2, %c0_14, %c0_15] : memref<4x16x16xbf16, #tpu.memory_space<vmem>>, vector<1x16x16xbf16>
    %16 = vector.shape_cast %15 : vector<1x16x16xbf16> to vector<16x16xbf16>
    %cst_16 = arith.constant dense<0.000000e+00> : vector<72x16xf32>
    %17 = tpu.matmul %14, %16, %cst_16 {dimension_numbers = #tpu.dot_dimension_numbers<[1], [0], [0], [1], [0, 0, 1, 1], [], []>} : vector<72x16xbf16>, vector<16x16xbf16>, vector<72x16xf32> -> vector<72x16xf32>
    %18 = arith.addf %12, %17 : vector<72x16xf32>
    %c0_17 = arith.constant 0 : index
    %c10 = arith.constant 10 : index
    %c0_18 = arith.constant 0 : index
    %19 = vector.load %arg1[%c0_17, %c10, %c0_18] : memref<1x82x16xbf16, #tpu.memory_space<vmem>>, vector<1x72x16xbf16>
    %20 = vector.shape_cast %19 : vector<1x72x16xbf16> to vector<72x16xbf16>
    %c3 = arith.constant 3 : index
    %c0_19 = arith.constant 0 : index
    %c0_20 = arith.constant 0 : index
    %21 = vector.load %arg2[%c3, %c0_19, %c0_20] : memref<4x16x16xbf16, #tpu.memory_space<vmem>>, vector<1x16x16xbf16>
    %22 = vector.shape_cast %21 : vector<1x16x16xbf16> to vector<16x16xbf16>
    %cst_21 = arith.constant dense<0.000000e+00> : vector<72x16xf32>
    %23 = tpu.matmul %20, %22, %cst_21 {dimension_numbers = #tpu.dot_dimension_numbers<[1], [0], [0], [1], [0, 0, 1, 1], [], []>} : vector<72x16xbf16>, vector<16x16xbf16>, vector<72x16xf32> -> vector<72x16xf32>
    %24 = arith.addf %18, %23 : vector<72x16xf32>
    %c0_22 = arith.constant 0 : index
    %c0_23 = arith.constant 0 : index
    %25 = vector.load %arg3[%c0_22, %c0_23] : memref<3x16xf32, #tpu.memory_space<vmem>>, vector<3x16xf32>
    %26 = vector.extract_strided_slice %25 {offsets = [0, 0], sizes = [1, 16], strides = [1, 1]} : vector<3x16xf32> to vector<1x16xf32>
    %27 = vector.broadcast %26 : vector<1x16xf32> to vector<72x16xf32>
    %28 = arith.addf %24, %27 : vector<72x16xf32>
    %cst_24 = arith.constant 0.000000e+00 : f32
    %29 = vector.broadcast %cst_24 : f32 to vector<72x16xf32>
    %30 = arith.cmpf oge, %28, %29 : vector<72x16xf32>
    %cst_25 = arith.constant 2.000000e-01 : f32
    %31 = vector.broadcast %cst_25 : f32 to vector<72x16xf32>
    %32 = arith.mulf %31, %28 : vector<72x16xf32>
    %33 = arith.select %30, %28, %32 : vector<72x16xi1>, vector<72x16xf32>
    %34 = vector.extract_strided_slice %25 {offsets = [1, 0], sizes = [1, 16], strides = [1, 1]} : vector<3x16xf32> to vector<1x16xf32>
    %35 = vector.broadcast %34 : vector<1x16xf32> to vector<72x16xf32>
    %36 = arith.mulf %33, %35 : vector<72x16xf32>
    %37 = vector.extract_strided_slice %25 {offsets = [2, 0], sizes = [1, 16], strides = [1, 1]} : vector<3x16xf32> to vector<1x16xf32>
    %38 = vector.broadcast %37 : vector<1x16xf32> to vector<72x16xf32>
    %39 = arith.addf %36, %38 : vector<72x16xf32>
    %40 = arith.truncf %39 : vector<72x16xf32> to vector<72x16xbf16>
    %c0_26 = arith.constant 0 : index
    %c0_27 = arith.constant 0 : index
    %c0_28 = arith.constant 0 : index
    %41 = vector.load %arg4[%c0_26, %c0_27, %c0_28] : memref<1x72x16xbf16, #tpu.memory_space<vmem>>, vector<1x72x16xbf16>
    %42 = vector.shape_cast %41 : vector<1x72x16xbf16> to vector<72x16xbf16>
    %43 = vector.shape_cast %40 : vector<72x16xbf16> to vector<1x72x16xbf16>
    tpu.vector_store %arg4[%c0_26, %c0_27, %c0_28], %43 {strides = array<i32>} : memref<1x72x16xbf16, #tpu.memory_space<vmem>>, vector<1x72x16xbf16>,
    return
  }
  func.func @transform_0(%arg0: i32) -> (i32, i32, i32) {
    %c0_i32 = arith.constant 0 : i32
    %c0_i32_0 = arith.constant 0 : i32
    %c0_i32_1 = arith.constant 0 : i32
    return %arg0, %c0_i32, %c0_i32_0 : i32, i32, i32
  }
  func.func @transform_1(%arg0: i32) -> (i32, i32, i32) {
    %c0_i32 = arith.constant 0 : i32
    %c0_i32_0 = arith.constant 0 : i32
    %c0_i32_1 = arith.constant 0 : i32
    %c0_i32_2 = arith.constant 0 : i32
    return %c0_i32, %c0_i32_0, %c0_i32_1 : i32, i32, i32
  }
  func.func @transform_2(%arg0: i32) -> (i32, i32) {
    %c0_i32 = arith.constant 0 : i32
    %c0_i32_0 = arith.constant 0 : i32
    %c0_i32_1 = arith.constant 0 : i32
    return %c0_i32, %c0_i32_0 : i32, i32
  }
  func.func @transform_3(%arg0: i32) -> (i32, i32, i32) {
    %c0_i32 = arith.constant 0 : i32
    %c0_i32_0 = arith.constant 0 : i32
    %c0_i32_1 = arith.constant 0 : i32
    return %arg0, %c0_i32, %c0_i32_0 : i32, i32, i32
  }
}

module attributes {stable_mosaic.version = 11 : i64} {
  func.func @_conv_block_kernel(%arg0: i32, %arg1: memref<1x26x64xbf16, #tpu.memory_space<vmem>>, %arg2: memref<4x64x32xbf16, #tpu.memory_space<vmem>>, %arg3: memref<3x32xf32, #tpu.memory_space<vmem>>, %arg4: memref<1x20x32xbf16, #tpu.memory_space<vmem>>) attributes {dimension_semantics = [#tpu.dimension_semantics<parallel>], iteration_bounds = array<i64: 2>, scalar_prefetch = 0 : i64, scratch_operands = 0 : i64, tpu.core_type = #tpu.core_type<tc>, window_params = [{transform_indices = @transform_0, window_bounds = array<i64: 1, 26, 64>}, {pipeline_mode = #tpu.pipeline_mode<synchronous>, transform_indices = @transform_1, window_bounds = array<i64: 4, 64, 32>}, {pipeline_mode = #tpu.pipeline_mode<synchronous>, transform_indices = @transform_2, window_bounds = array<i64: 3, 32>}, {transform_indices = @transform_3, window_bounds = array<i64: 1, 20, 32>}]} {
    %cst = arith.constant 0.000000e+00 : f32
    %0 = vector.broadcast %cst : f32 to vector<20x32xf32>
    %c0 = arith.constant 0 : index
    %c0_0 = arith.constant 0 : index
    %c0_1 = arith.constant 0 : index
    %1 = vector.load %arg1[%c0, %c0_0, %c0_1] : memref<1x26x64xbf16, #tpu.memory_space<vmem>>, vector<1x20x64xbf16>
    %2 = vector.shape_cast %1 : vector<1x20x64xbf16> to vector<20x64xbf16>
    %c0_2 = arith.constant 0 : index
    %c0_3 = arith.constant 0 : index
    %c0_4 = arith.constant 0 : index
    %3 = vector.load %arg2[%c0_2, %c0_3, %c0_4] : memref<4x64x32xbf16, #tpu.memory_space<vmem>>, vector<1x64x32xbf16>
    %4 = vector.shape_cast %3 : vector<1x64x32xbf16> to vector<64x32xbf16>
    %cst_5 = arith.constant dense<0.000000e+00> : vector<20x32xf32>
    %5 = tpu.matmul %2, %4, %cst_5 {dimension_numbers = #tpu.dot_dimension_numbers<[1], [0], [0], [1], [0, 0, 1, 1], [], []>} : vector<20x64xbf16>, vector<64x32xbf16>, vector<20x32xf32> -> vector<20x32xf32>
    %6 = arith.addf %0, %5 : vector<20x32xf32>
    %c0_6 = arith.constant 0 : index
    %c1 = arith.constant 1 : index
    %c0_7 = arith.constant 0 : index
    %7 = vector.load %arg1[%c0_6, %c1, %c0_7] : memref<1x26x64xbf16, #tpu.memory_space<vmem>>, vector<1x20x64xbf16>
    %8 = vector.shape_cast %7 : vector<1x20x64xbf16> to vector<20x64xbf16>
    %c1_8 = arith.constant 1 : index
    %c0_9 = arith.constant 0 : index
    %c0_10 = arith.constant 0 : index
    %9 = vector.load %arg2[%c1_8, %c0_9, %c0_10] : memref<4x64x32xbf16, #tpu.memory_space<vmem>>, vector<1x64x32xbf16>
    %10 = vector.shape_cast %9 : vector<1x64x32xbf16> to vector<64x32xbf16>
    %cst_11 = arith.constant dense<0.000000e+00> : vector<20x32xf32>
    %11 = tpu.matmul %8, %10, %cst_11 {dimension_numbers = #tpu.dot_dimension_numbers<[1], [0], [0], [1], [0, 0, 1, 1], [], []>} : vector<20x64xbf16>, vector<64x32xbf16>, vector<20x32xf32> -> vector<20x32xf32>
    %12 = arith.addf %6, %11 : vector<20x32xf32>
    %c0_12 = arith.constant 0 : index
    %c5 = arith.constant 5 : index
    %c0_13 = arith.constant 0 : index
    %13 = vector.load %arg1[%c0_12, %c5, %c0_13] : memref<1x26x64xbf16, #tpu.memory_space<vmem>>, vector<1x20x64xbf16>
    %14 = vector.shape_cast %13 : vector<1x20x64xbf16> to vector<20x64xbf16>
    %c2 = arith.constant 2 : index
    %c0_14 = arith.constant 0 : index
    %c0_15 = arith.constant 0 : index
    %15 = vector.load %arg2[%c2, %c0_14, %c0_15] : memref<4x64x32xbf16, #tpu.memory_space<vmem>>, vector<1x64x32xbf16>
    %16 = vector.shape_cast %15 : vector<1x64x32xbf16> to vector<64x32xbf16>
    %cst_16 = arith.constant dense<0.000000e+00> : vector<20x32xf32>
    %17 = tpu.matmul %14, %16, %cst_16 {dimension_numbers = #tpu.dot_dimension_numbers<[1], [0], [0], [1], [0, 0, 1, 1], [], []>} : vector<20x64xbf16>, vector<64x32xbf16>, vector<20x32xf32> -> vector<20x32xf32>
    %18 = arith.addf %12, %17 : vector<20x32xf32>
    %c0_17 = arith.constant 0 : index
    %c6 = arith.constant 6 : index
    %c0_18 = arith.constant 0 : index
    %19 = vector.load %arg1[%c0_17, %c6, %c0_18] : memref<1x26x64xbf16, #tpu.memory_space<vmem>>, vector<1x20x64xbf16>
    %20 = vector.shape_cast %19 : vector<1x20x64xbf16> to vector<20x64xbf16>
    %c3 = arith.constant 3 : index
    %c0_19 = arith.constant 0 : index
    %c0_20 = arith.constant 0 : index
    %21 = vector.load %arg2[%c3, %c0_19, %c0_20] : memref<4x64x32xbf16, #tpu.memory_space<vmem>>, vector<1x64x32xbf16>
    %22 = vector.shape_cast %21 : vector<1x64x32xbf16> to vector<64x32xbf16>
    %cst_21 = arith.constant dense<0.000000e+00> : vector<20x32xf32>
    %23 = tpu.matmul %20, %22, %cst_21 {dimension_numbers = #tpu.dot_dimension_numbers<[1], [0], [0], [1], [0, 0, 1, 1], [], []>} : vector<20x64xbf16>, vector<64x32xbf16>, vector<20x32xf32> -> vector<20x32xf32>
    %24 = arith.addf %18, %23 : vector<20x32xf32>
    %c0_22 = arith.constant 0 : index
    %c0_23 = arith.constant 0 : index
    %25 = vector.load %arg3[%c0_22, %c0_23] : memref<3x32xf32, #tpu.memory_space<vmem>>, vector<3x32xf32>
    %26 = vector.extract_strided_slice %25 {offsets = [0, 0], sizes = [1, 32], strides = [1, 1]} : vector<3x32xf32> to vector<1x32xf32>
    %27 = vector.broadcast %26 : vector<1x32xf32> to vector<20x32xf32>
    %28 = arith.addf %24, %27 : vector<20x32xf32>
    %cst_24 = arith.constant 0.000000e+00 : f32
    %29 = vector.broadcast %cst_24 : f32 to vector<20x32xf32>
    %30 = arith.cmpf oge, %28, %29 : vector<20x32xf32>
    %cst_25 = arith.constant 2.000000e-01 : f32
    %31 = vector.broadcast %cst_25 : f32 to vector<20x32xf32>
    %32 = arith.mulf %31, %28 : vector<20x32xf32>
    %33 = arith.select %30, %28, %32 : vector<20x32xi1>, vector<20x32xf32>
    %34 = vector.extract_strided_slice %25 {offsets = [1, 0], sizes = [1, 32], strides = [1, 1]} : vector<3x32xf32> to vector<1x32xf32>
    %35 = vector.broadcast %34 : vector<1x32xf32> to vector<20x32xf32>
    %36 = arith.mulf %33, %35 : vector<20x32xf32>
    %37 = vector.extract_strided_slice %25 {offsets = [2, 0], sizes = [1, 32], strides = [1, 1]} : vector<3x32xf32> to vector<1x32xf32>
    %38 = vector.broadcast %37 : vector<1x32xf32> to vector<20x32xf32>
    %39 = arith.addf %36, %38 : vector<20x32xf32>
    %40 = arith.truncf %39 : vector<20x32xf32> to vector<20x32xbf16>
    %c0_26 = arith.constant 0 : index
    %c0_27 = arith.constant 0 : index
    %c0_28 = arith.constant 0 : index
    %41 = vector.load %arg4[%c0_26, %c0_27, %c0_28] : memref<1x20x32xbf16, #tpu.memory_space<vmem>>, vector<1x20x32xbf16>
    %42 = vector.shape_cast %41 : vector<1x20x32xbf16> to vector<20x32xbf16>
    %43 = vector.shape_cast %40 : vector<20x32xbf16> to vector<1x20x32xbf16>
    tpu.vector_store %arg4[%c0_26, %c0_27, %c0_28], %43 {strides = array<i32>} : memref<1x20x32xbf16, #tpu.memory_space<vmem>>, vector<1x20x32xbf16>,
    return
  }
  func.func @transform_0(%arg0: i32) -> (i32, i32, i32) {
    %c0_i32 = arith.constant 0 : i32
    %c0_i32_0 = arith.constant 0 : i32
    %c0_i32_1 = arith.constant 0 : i32
    return %arg0, %c0_i32, %c0_i32_0 : i32, i32, i32
  }
  func.func @transform_1(%arg0: i32) -> (i32, i32, i32) {
    %c0_i32 = arith.constant 0 : i32
    %c0_i32_0 = arith.constant 0 : i32
    %c0_i32_1 = arith.constant 0 : i32
    %c0_i32_2 = arith.constant 0 : i32
    return %c0_i32, %c0_i32_0, %c0_i32_1 : i32, i32, i32
  }
  func.func @transform_2(%arg0: i32) -> (i32, i32) {
    %c0_i32 = arith.constant 0 : i32
    %c0_i32_0 = arith.constant 0 : i32
    %c0_i32_1 = arith.constant 0 : i32
    return %c0_i32, %c0_i32_0 : i32, i32
  }
  func.func @transform_3(%arg0: i32) -> (i32, i32, i32) {
    %c0_i32 = arith.constant 0 : i32
    %c0_i32_0 = arith.constant 0 : i32
    %c0_i32_1 = arith.constant 0 : i32
    return %arg0, %c0_i32, %c0_i32_0 : i32, i32, i32
  }
}

module attributes {stable_mosaic.version = 11 : i64} {
  func.func @_conv_block_kernel(%arg0: i32, %arg1: memref<1x10x128xbf16, #tpu.memory_space<vmem>>, %arg2: memref<4x128x64xbf16, #tpu.memory_space<vmem>>, %arg3: memref<3x64xf32, #tpu.memory_space<vmem>>, %arg4: memref<1x6x64xbf16, #tpu.memory_space<vmem>>) attributes {dimension_semantics = [#tpu.dimension_semantics<parallel>], iteration_bounds = array<i64: 2>, scalar_prefetch = 0 : i64, scratch_operands = 0 : i64, tpu.core_type = #tpu.core_type<tc>, window_params = [{transform_indices = @transform_0, window_bounds = array<i64: 1, 10, 128>}, {pipeline_mode = #tpu.pipeline_mode<synchronous>, transform_indices = @transform_1, window_bounds = array<i64: 4, 128, 64>}, {pipeline_mode = #tpu.pipeline_mode<synchronous>, transform_indices = @transform_2, window_bounds = array<i64: 3, 64>}, {transform_indices = @transform_3, window_bounds = array<i64: 1, 6, 64>}]} {
    %cst = arith.constant 0.000000e+00 : f32
    %0 = vector.broadcast %cst : f32 to vector<6x64xf32>
    %c0 = arith.constant 0 : index
    %c0_0 = arith.constant 0 : index
    %c0_1 = arith.constant 0 : index
    %1 = vector.load %arg1[%c0, %c0_0, %c0_1] : memref<1x10x128xbf16, #tpu.memory_space<vmem>>, vector<1x6x128xbf16>
    %2 = vector.shape_cast %1 : vector<1x6x128xbf16> to vector<6x128xbf16>
    %c0_2 = arith.constant 0 : index
    %c0_3 = arith.constant 0 : index
    %c0_4 = arith.constant 0 : index
    %3 = vector.load %arg2[%c0_2, %c0_3, %c0_4] : memref<4x128x64xbf16, #tpu.memory_space<vmem>>, vector<1x128x64xbf16>
    %4 = vector.shape_cast %3 : vector<1x128x64xbf16> to vector<128x64xbf16>
    %cst_5 = arith.constant dense<0.000000e+00> : vector<6x64xf32>
    %5 = tpu.matmul %2, %4, %cst_5 {dimension_numbers = #tpu.dot_dimension_numbers<[1], [0], [0], [1], [0, 0, 1, 1], [], []>} : vector<6x128xbf16>, vector<128x64xbf16>, vector<6x64xf32> -> vector<6x64xf32>
    %6 = arith.addf %0, %5 : vector<6x64xf32>
    %c0_6 = arith.constant 0 : index
    %c1 = arith.constant 1 : index
    %c0_7 = arith.constant 0 : index
    %7 = vector.load %arg1[%c0_6, %c1, %c0_7] : memref<1x10x128xbf16, #tpu.memory_space<vmem>>, vector<1x6x128xbf16>
    %8 = vector.shape_cast %7 : vector<1x6x128xbf16> to vector<6x128xbf16>
    %c1_8 = arith.constant 1 : index
    %c0_9 = arith.constant 0 : index
    %c0_10 = arith.constant 0 : index
    %9 = vector.load %arg2[%c1_8, %c0_9, %c0_10] : memref<4x128x64xbf16, #tpu.memory_space<vmem>>, vector<1x128x64xbf16>
    %10 = vector.shape_cast %9 : vector<1x128x64xbf16> to vector<128x64xbf16>
    %cst_11 = arith.constant dense<0.000000e+00> : vector<6x64xf32>
    %11 = tpu.matmul %8, %10, %cst_11 {dimension_numbers = #tpu.dot_dimension_numbers<[1], [0], [0], [1], [0, 0, 1, 1], [], []>} : vector<6x128xbf16>, vector<128x64xbf16>, vector<6x64xf32> -> vector<6x64xf32>
    %12 = arith.addf %6, %11 : vector<6x64xf32>
    %c0_12 = arith.constant 0 : index
    %c3 = arith.constant 3 : index
    %c0_13 = arith.constant 0 : index
    %13 = vector.load %arg1[%c0_12, %c3, %c0_13] : memref<1x10x128xbf16, #tpu.memory_space<vmem>>, vector<1x6x128xbf16>
    %14 = vector.shape_cast %13 : vector<1x6x128xbf16> to vector<6x128xbf16>
    %c2 = arith.constant 2 : index
    %c0_14 = arith.constant 0 : index
    %c0_15 = arith.constant 0 : index
    %15 = vector.load %arg2[%c2, %c0_14, %c0_15] : memref<4x128x64xbf16, #tpu.memory_space<vmem>>, vector<1x128x64xbf16>
    %16 = vector.shape_cast %15 : vector<1x128x64xbf16> to vector<128x64xbf16>
    %cst_16 = arith.constant dense<0.000000e+00> : vector<6x64xf32>
    %17 = tpu.matmul %14, %16, %cst_16 {dimension_numbers = #tpu.dot_dimension_numbers<[1], [0], [0], [1], [0, 0, 1, 1], [], []>} : vector<6x128xbf16>, vector<128x64xbf16>, vector<6x64xf32> -> vector<6x64xf32>
    %18 = arith.addf %12, %17 : vector<6x64xf32>
    %c0_17 = arith.constant 0 : index
    %c4 = arith.constant 4 : index
    %c0_18 = arith.constant 0 : index
    %19 = vector.load %arg1[%c0_17, %c4, %c0_18] : memref<1x10x128xbf16, #tpu.memory_space<vmem>>, vector<1x6x128xbf16>
    %20 = vector.shape_cast %19 : vector<1x6x128xbf16> to vector<6x128xbf16>
    %c3_19 = arith.constant 3 : index
    %c0_20 = arith.constant 0 : index
    %c0_21 = arith.constant 0 : index
    %21 = vector.load %arg2[%c3_19, %c0_20, %c0_21] : memref<4x128x64xbf16, #tpu.memory_space<vmem>>, vector<1x128x64xbf16>
    %22 = vector.shape_cast %21 : vector<1x128x64xbf16> to vector<128x64xbf16>
    %cst_22 = arith.constant dense<0.000000e+00> : vector<6x64xf32>
    %23 = tpu.matmul %20, %22, %cst_22 {dimension_numbers = #tpu.dot_dimension_numbers<[1], [0], [0], [1], [0, 0, 1, 1], [], []>} : vector<6x128xbf16>, vector<128x64xbf16>, vector<6x64xf32> -> vector<6x64xf32>
    %24 = arith.addf %18, %23 : vector<6x64xf32>
    %c0_23 = arith.constant 0 : index
    %c0_24 = arith.constant 0 : index
    %25 = vector.load %arg3[%c0_23, %c0_24] : memref<3x64xf32, #tpu.memory_space<vmem>>, vector<3x64xf32>
    %26 = vector.extract_strided_slice %25 {offsets = [0, 0], sizes = [1, 64], strides = [1, 1]} : vector<3x64xf32> to vector<1x64xf32>
    %27 = vector.broadcast %26 : vector<1x64xf32> to vector<6x64xf32>
    %28 = arith.addf %24, %27 : vector<6x64xf32>
    %cst_25 = arith.constant 0.000000e+00 : f32
    %29 = vector.broadcast %cst_25 : f32 to vector<6x64xf32>
    %30 = arith.cmpf oge, %28, %29 : vector<6x64xf32>
    %cst_26 = arith.constant 2.000000e-01 : f32
    %31 = vector.broadcast %cst_26 : f32 to vector<6x64xf32>
    %32 = arith.mulf %31, %28 : vector<6x64xf32>
    %33 = arith.select %30, %28, %32 : vector<6x64xi1>, vector<6x64xf32>
    %34 = vector.extract_strided_slice %25 {offsets = [1, 0], sizes = [1, 64], strides = [1, 1]} : vector<3x64xf32> to vector<1x64xf32>
    %35 = vector.broadcast %34 : vector<1x64xf32> to vector<6x64xf32>
    %36 = arith.mulf %33, %35 : vector<6x64xf32>
    %37 = vector.extract_strided_slice %25 {offsets = [2, 0], sizes = [1, 64], strides = [1, 1]} : vector<3x64xf32> to vector<1x64xf32>
    %38 = vector.broadcast %37 : vector<1x64xf32> to vector<6x64xf32>
    %39 = arith.addf %36, %38 : vector<6x64xf32>
    %40 = arith.truncf %39 : vector<6x64xf32> to vector<6x64xbf16>
    %c0_27 = arith.constant 0 : index
    %c0_28 = arith.constant 0 : index
    %c0_29 = arith.constant 0 : index
    %41 = vector.load %arg4[%c0_27, %c0_28, %c0_29] : memref<1x6x64xbf16, #tpu.memory_space<vmem>>, vector<1x6x64xbf16>
    %42 = vector.shape_cast %41 : vector<1x6x64xbf16> to vector<6x64xbf16>
    %43 = vector.shape_cast %40 : vector<6x64xbf16> to vector<1x6x64xbf16>
    tpu.vector_store %arg4[%c0_27, %c0_28, %c0_29], %43 {strides = array<i32>} : memref<1x6x64xbf16, #tpu.memory_space<vmem>>, vector<1x6x64xbf16>,
    return
  }
  func.func @transform_0(%arg0: i32) -> (i32, i32, i32) {
    %c0_i32 = arith.constant 0 : i32
    %c0_i32_0 = arith.constant 0 : i32
    %c0_i32_1 = arith.constant 0 : i32
    return %arg0, %c0_i32, %c0_i32_0 : i32, i32, i32
  }
  func.func @transform_1(%arg0: i32) -> (i32, i32, i32) {
    %c0_i32 = arith.constant 0 : i32
    %c0_i32_0 = arith.constant 0 : i32
    %c0_i32_1 = arith.constant 0 : i32
    %c0_i32_2 = arith.constant 0 : i32
    return %c0_i32, %c0_i32_0, %c0_i32_1 : i32, i32, i32
  }
  func.func @transform_2(%arg0: i32) -> (i32, i32) {
    %c0_i32 = arith.constant 0 : i32
    %c0_i32_0 = arith.constant 0 : i32
    %c0_i32_1 = arith.constant 0 : i32
    return %c0_i32, %c0_i32_0 : i32, i32
  }
  func.func @transform_3(%arg0: i32) -> (i32, i32, i32) {
    %c0_i32 = arith.constant 0 : i32
    %c0_i32_0 = arith.constant 0 : i32
    %c0_i32_1 = arith.constant 0 : i32
    return %arg0, %c0_i32, %c0_i32_0 : i32, i32, i32
  }
}

module attributes {stable_mosaic.version = 11 : i64} {
  func.func @_conv_block_kernel(%arg0: i32, %arg1: memref<1x5x256xbf16, #tpu.memory_space<vmem>>, %arg2: memref<4x256x128xbf16, #tpu.memory_space<vmem>>, %arg3: memref<3x128xf32, #tpu.memory_space<vmem>>, %arg4: memref<1x2x128xbf16, #tpu.memory_space<vmem>>) attributes {dimension_semantics = [#tpu.dimension_semantics<parallel>], iteration_bounds = array<i64: 2>, scalar_prefetch = 0 : i64, scratch_operands = 0 : i64, tpu.core_type = #tpu.core_type<tc>, window_params = [{transform_indices = @transform_0, window_bounds = array<i64: 1, 5, 256>}, {pipeline_mode = #tpu.pipeline_mode<synchronous>, transform_indices = @transform_1, window_bounds = array<i64: 4, 256, 128>}, {pipeline_mode = #tpu.pipeline_mode<synchronous>, transform_indices = @transform_2, window_bounds = array<i64: 3, 128>}, {transform_indices = @transform_3, window_bounds = array<i64: 1, 2, 128>}]} {
    %cst = arith.constant 0.000000e+00 : f32
    %0 = vector.broadcast %cst : f32 to vector<2x128xf32>
    %c0 = arith.constant 0 : index
    %c0_0 = arith.constant 0 : index
    %c0_1 = arith.constant 0 : index
    %1 = vector.load %arg1[%c0, %c0_0, %c0_1] : memref<1x5x256xbf16, #tpu.memory_space<vmem>>, vector<1x2x256xbf16>
    %2 = vector.shape_cast %1 : vector<1x2x256xbf16> to vector<2x256xbf16>
    %c0_2 = arith.constant 0 : index
    %c0_3 = arith.constant 0 : index
    %c0_4 = arith.constant 0 : index
    %3 = vector.load %arg2[%c0_2, %c0_3, %c0_4] : memref<4x256x128xbf16, #tpu.memory_space<vmem>>, vector<1x256x128xbf16>
    %4 = vector.shape_cast %3 : vector<1x256x128xbf16> to vector<256x128xbf16>
    %cst_5 = arith.constant dense<0.000000e+00> : vector<2x128xf32>
    %5 = tpu.matmul %2, %4, %cst_5 {dimension_numbers = #tpu.dot_dimension_numbers<[1], [0], [0], [1], [0, 0, 1, 1], [], []>} : vector<2x256xbf16>, vector<256x128xbf16>, vector<2x128xf32> -> vector<2x128xf32>
    %6 = arith.addf %0, %5 : vector<2x128xf32>
    %c0_6 = arith.constant 0 : index
    %c1 = arith.constant 1 : index
    %c0_7 = arith.constant 0 : index
    %7 = vector.load %arg1[%c0_6, %c1, %c0_7] : memref<1x5x256xbf16, #tpu.memory_space<vmem>>, vector<1x2x256xbf16>
    %8 = vector.shape_cast %7 : vector<1x2x256xbf16> to vector<2x256xbf16>
    %c1_8 = arith.constant 1 : index
    %c0_9 = arith.constant 0 : index
    %c0_10 = arith.constant 0 : index
    %9 = vector.load %arg2[%c1_8, %c0_9, %c0_10] : memref<4x256x128xbf16, #tpu.memory_space<vmem>>, vector<1x256x128xbf16>
    %10 = vector.shape_cast %9 : vector<1x256x128xbf16> to vector<256x128xbf16>
    %cst_11 = arith.constant dense<0.000000e+00> : vector<2x128xf32>
    %11 = tpu.matmul %8, %10, %cst_11 {dimension_numbers = #tpu.dot_dimension_numbers<[1], [0], [0], [1], [0, 0, 1, 1], [], []>} : vector<2x256xbf16>, vector<256x128xbf16>, vector<2x128xf32> -> vector<2x128xf32>
    %12 = arith.addf %6, %11 : vector<2x128xf32>
    %c0_12 = arith.constant 0 : index
    %c2 = arith.constant 2 : index
    %c0_13 = arith.constant 0 : index
    %13 = vector.load %arg1[%c0_12, %c2, %c0_13] : memref<1x5x256xbf16, #tpu.memory_space<vmem>>, vector<1x2x256xbf16>
    %14 = vector.shape_cast %13 : vector<1x2x256xbf16> to vector<2x256xbf16>
    %c2_14 = arith.constant 2 : index
    %c0_15 = arith.constant 0 : index
    %c0_16 = arith.constant 0 : index
    %15 = vector.load %arg2[%c2_14, %c0_15, %c0_16] : memref<4x256x128xbf16, #tpu.memory_space<vmem>>, vector<1x256x128xbf16>
    %16 = vector.shape_cast %15 : vector<1x256x128xbf16> to vector<256x128xbf16>
    %cst_17 = arith.constant dense<0.000000e+00> : vector<2x128xf32>
    %17 = tpu.matmul %14, %16, %cst_17 {dimension_numbers = #tpu.dot_dimension_numbers<[1], [0], [0], [1], [0, 0, 1, 1], [], []>} : vector<2x256xbf16>, vector<256x128xbf16>, vector<2x128xf32> -> vector<2x128xf32>
    %18 = arith.addf %12, %17 : vector<2x128xf32>
    %c0_18 = arith.constant 0 : index
    %c3 = arith.constant 3 : index
    %c0_19 = arith.constant 0 : index
    %19 = vector.load %arg1[%c0_18, %c3, %c0_19] : memref<1x5x256xbf16, #tpu.memory_space<vmem>>, vector<1x2x256xbf16>
    %20 = vector.shape_cast %19 : vector<1x2x256xbf16> to vector<2x256xbf16>
    %c3_20 = arith.constant 3 : index
    %c0_21 = arith.constant 0 : index
    %c0_22 = arith.constant 0 : index
    %21 = vector.load %arg2[%c3_20, %c0_21, %c0_22] : memref<4x256x128xbf16, #tpu.memory_space<vmem>>, vector<1x256x128xbf16>
    %22 = vector.shape_cast %21 : vector<1x256x128xbf16> to vector<256x128xbf16>
    %cst_23 = arith.constant dense<0.000000e+00> : vector<2x128xf32>
    %23 = tpu.matmul %20, %22, %cst_23 {dimension_numbers = #tpu.dot_dimension_numbers<[1], [0], [0], [1], [0, 0, 1, 1], [], []>} : vector<2x256xbf16>, vector<256x128xbf16>, vector<2x128xf32> -> vector<2x128xf32>
    %24 = arith.addf %18, %23 : vector<2x128xf32>
    %c0_24 = arith.constant 0 : index
    %c0_25 = arith.constant 0 : index
    %25 = vector.load %arg3[%c0_24, %c0_25] : memref<3x128xf32, #tpu.memory_space<vmem>>, vector<3x128xf32>
    %26 = vector.extract_strided_slice %25 {offsets = [0, 0], sizes = [1, 128], strides = [1, 1]} : vector<3x128xf32> to vector<1x128xf32>
    %27 = vector.broadcast %26 : vector<1x128xf32> to vector<2x128xf32>
    %28 = arith.addf %24, %27 : vector<2x128xf32>
    %cst_26 = arith.constant 0.000000e+00 : f32
    %29 = vector.broadcast %cst_26 : f32 to vector<2x128xf32>
    %30 = arith.cmpf oge, %28, %29 : vector<2x128xf32>
    %cst_27 = arith.constant 2.000000e-01 : f32
    %31 = vector.broadcast %cst_27 : f32 to vector<2x128xf32>
    %32 = arith.mulf %31, %28 : vector<2x128xf32>
    %33 = arith.select %30, %28, %32 : vector<2x128xi1>, vector<2x128xf32>
    %34 = vector.extract_strided_slice %25 {offsets = [1, 0], sizes = [1, 128], strides = [1, 1]} : vector<3x128xf32> to vector<1x128xf32>
    %35 = vector.broadcast %34 : vector<1x128xf32> to vector<2x128xf32>
    %36 = arith.mulf %33, %35 : vector<2x128xf32>
    %37 = vector.extract_strided_slice %25 {offsets = [2, 0], sizes = [1, 128], strides = [1, 1]} : vector<3x128xf32> to vector<1x128xf32>
    %38 = vector.broadcast %37 : vector<1x128xf32> to vector<2x128xf32>
    %39 = arith.addf %36, %38 : vector<2x128xf32>
    %40 = arith.truncf %39 : vector<2x128xf32> to vector<2x128xbf16>
    %c0_28 = arith.constant 0 : index
    %c0_29 = arith.constant 0 : index
    %c0_30 = arith.constant 0 : index
    %41 = vector.load %arg4[%c0_28, %c0_29, %c0_30] : memref<1x2x128xbf16, #tpu.memory_space<vmem>>, vector<1x2x128xbf16>
    %42 = vector.shape_cast %41 : vector<1x2x128xbf16> to vector<2x128xbf16>
    %43 = vector.shape_cast %40 : vector<2x128xbf16> to vector<1x2x128xbf16>
    tpu.vector_store %arg4[%c0_28, %c0_29, %c0_30], %43 {strides = array<i32>} : memref<1x2x128xbf16, #tpu.memory_space<vmem>>, vector<1x2x128xbf16>,
    return
  }
  func.func @transform_0(%arg0: i32) -> (i32, i32, i32) {
    %c0_i32 = arith.constant 0 : i32
    %c0_i32_0 = arith.constant 0 : i32
    %c0_i32_1 = arith.constant 0 : i32
    return %arg0, %c0_i32, %c0_i32_0 : i32, i32, i32
  }
  func.func @transform_1(%arg0: i32) -> (i32, i32, i32) {
    %c0_i32 = arith.constant 0 : i32
    %c0_i32_0 = arith.constant 0 : i32
    %c0_i32_1 = arith.constant 0 : i32
    %c0_i32_2 = arith.constant 0 : i32
    return %c0_i32, %c0_i32_0, %c0_i32_1 : i32, i32, i32
  }
  func.func @transform_2(%arg0: i32) -> (i32, i32) {
    %c0_i32 = arith.constant 0 : i32
    %c0_i32_0 = arith.constant 0 : i32
    %c0_i32_1 = arith.constant 0 : i32
    return %c0_i32, %c0_i32_0 : i32, i32
  }
  func.func @transform_3(%arg0: i32) -> (i32, i32, i32) {
    %c0_i32 = arith.constant 0 : i32
    %c0_i32_0 = arith.constant 0 : i32
    %c0_i32_1 = arith.constant 0 : i32
    return %arg0, %c0_i32, %c0_i32_0 : i32, i32, i32
  }
}

module attributes {stable_mosaic.version = 11 : i64} {
  func.func @_head_kernel(%arg0: i32, %arg1: memref<2x128xbf16, #tpu.memory_space<vmem>>, %arg2: memref<128x4xbf16, #tpu.memory_space<vmem>>, %arg3: memref<1x4xf32, #tpu.memory_space<vmem>>, %arg4: memref<2x4xf32, #tpu.memory_space<vmem>>) attributes {dimension_semantics = [#tpu.dimension_semantics<arbitrary>], iteration_bounds = array<i64: 1>, scalar_prefetch = 0 : i64, scratch_operands = 0 : i64, tpu.core_type = #tpu.core_type<tc>, window_params = [{pipeline_mode = #tpu.pipeline_mode<synchronous>, transform_indices = @transform_0, window_bounds = array<i64: 2, 128>}, {pipeline_mode = #tpu.pipeline_mode<synchronous>, transform_indices = @transform_1, window_bounds = array<i64: 128, 4>}, {pipeline_mode = #tpu.pipeline_mode<synchronous>, transform_indices = @transform_2, window_bounds = array<i64: 1, 4>}, {pipeline_mode = #tpu.pipeline_mode<synchronous>, transform_indices = @transform_3, window_bounds = array<i64: 2, 4>}]} {
    %c0 = arith.constant 0 : index
    %c0_0 = arith.constant 0 : index
    %0 = vector.load %arg1[%c0, %c0_0] : memref<2x128xbf16, #tpu.memory_space<vmem>>, vector<2x128xbf16>
    %c0_1 = arith.constant 0 : index
    %c0_2 = arith.constant 0 : index
    %1 = vector.load %arg2[%c0_1, %c0_2] : memref<128x4xbf16, #tpu.memory_space<vmem>>, vector<128x4xbf16>
    %cst = arith.constant dense<0.000000e+00> : vector<2x4xf32>
    %2 = tpu.matmul %0, %1, %cst {dimension_numbers = #tpu.dot_dimension_numbers<[1], [0], [0], [1], [0, 0, 1, 1], [], []>} : vector<2x128xbf16>, vector<128x4xbf16>, vector<2x4xf32> -> vector<2x4xf32>
    %c0_3 = arith.constant 0 : index
    %c0_4 = arith.constant 0 : index
    %3 = vector.load %arg3[%c0_3, %c0_4] : memref<1x4xf32, #tpu.memory_space<vmem>>, vector<1x4xf32>
    %4 = vector.broadcast %3 : vector<1x4xf32> to vector<2x4xf32>
    %5 = arith.addf %2, %4 : vector<2x4xf32>
    %cst_5 = arith.constant 0.000000e+00 : f32
    %6 = vector.broadcast %cst_5 : f32 to vector<2x4xf32>
    %7 = arith.subf %6, %5 : vector<2x4xf32>
    %8 = math.exp %7 : vector<2x4xf32>
    %cst_6 = arith.constant 1.000000e+00 : f32
    %9 = vector.broadcast %cst_6 : f32 to vector<2x4xf32>
    %10 = arith.addf %9, %8 : vector<2x4xf32>
    %cst_7 = arith.constant 1.000000e+00 : f32
    %11 = vector.broadcast %cst_7 : f32 to vector<2x4xf32>
    %12 = arith.divf %11, %10 : vector<2x4xf32>
    %c0_8 = arith.constant 0 : index
    %c0_9 = arith.constant 0 : index
    %13 = vector.load %arg4[%c0_8, %c0_9] : memref<2x4xf32, #tpu.memory_space<vmem>>, vector<2x4xf32>
    tpu.vector_store %arg4[%c0_8, %c0_9], %12 {strides = array<i32>} : memref<2x4xf32, #tpu.memory_space<vmem>>, vector<2x4xf32>,
    return
  }
  func.func @transform_0(%arg0: i32) -> (i32, i32) {
    %c0_i32 = arith.constant 0 : i32
    %c0_i32_0 = arith.constant 0 : i32
    %c0_i32_1 = arith.constant 0 : i32
    return %c0_i32, %c0_i32_0 : i32, i32
  }
  func.func @transform_1(%arg0: i32) -> (i32, i32) {
    %c0_i32 = arith.constant 0 : i32
    %c0_i32_0 = arith.constant 0 : i32
    %c0_i32_1 = arith.constant 0 : i32
    return %c0_i32, %c0_i32_0 : i32, i32
  }
  func.func @transform_2(%arg0: i32) -> (i32, i32) {
    %c0_i32 = arith.constant 0 : i32
    %c0_i32_0 = arith.constant 0 : i32
    %c0_i32_1 = arith.constant 0 : i32
    return %c0_i32, %c0_i32_0 : i32, i32
  }
  func.func @transform_3(%arg0: i32) -> (i32, i32) {
    %c0_i32 = arith.constant 0 : i32
    %c0_i32_0 = arith.constant 0 : i32
    %c0_i32_1 = arith.constant 0 : i32
    return %c0_i32, %c0_i32_0 : i32, i32
  }
}

</mosaic_0001>

<llo_original>
// kernel: discriminator_forward.5
$region0: #{discriminator_forward.5}
  #allocation0 [shape = 'u32[]', space=smem, size = 0x4, offset = 0x4, fixed_abs, tag = 'smem constant byte address 0x4 - core index']
  #allocation1 [shape = 'u32[144,128]{1,0:T(1,128)}', space=vmem, size = 0x12000, scoped, tag = 'internal scratch']
  %s0 = inlined_call_operand.vmem [shape: bf16[2,82,16], index: 0, kind: input, shape index: {}]
  %s1 = inlined_call_operand.vmem [shape: bf16[4,16,16], index: 1, kind: input, shape index: {}]
  %s2 = inlined_call_operand.vmem [shape: f32[3,16], index: 2, kind: input, shape index: {}]
  %s3 = inlined_call_operand.vmem [shape: bf16[2,72,16], index: 3, kind: output, shape index: {}]
  %s4 = sld [smem:[#allocation0]]
  $region45: #{discriminator_forward.5} parent=0
    _
  %s6 = ssub.s32 1, %s4
  %s7 = scalar_select 0, %s6, %s4
  loop: start=0, step=1, limit=4
  $region2: #{discriminator_forward.5} parent=0 // loop_pre_header
    _
  $region3: #{discriminator_forward.5} parent=0 // loop_header
    %s9 = sphi 0, %s13
    %p10 = scmp.ge.s32.totalorder %s9, 4
    %s19 = sphi 0, %s21
    %s22 = sphi 0, %s19
    %s23 = sphi 0, %s22
    %s39 = sphi 0, %s23
    %s43 = sphi 0, %s43
    %s45 = sphi 0, %s43
    %s46 = sphi 0, %s45
    %s60 = sphi 0, %s46
    %s64 = sphi 0, %s64
    %s66 = sphi 0, %s64
    %s67 = sphi 0, %s66
    %s81 = sphi 0, %s67
    %s87 = sphi 0, %s89
    %s90 = sphi 0, %s87
    %s91 = sphi 0, %s90
    %s107 = sphi 0, %s91
  $region4: #{discriminator_forward.5} parent=0 // loop_header_branch
    %12 = sbr.rel (%p10) target = $region8
  $region5: #{discriminator_forward.5} parent=0 // loop_body
    %s14 = ssub.s32 %s9, 1
    %s15 = ssub.s32 %s9, 2
    %s16 = sadd.s32 %s9, 1
    %s17 = ssub.s32 %s9, %s16
    %p18 = scmp.eq.s32.totalorder %s17, 0
    %s20 = sadd.s32 %s19, 1
    %s21 = scalar_select %p18, %s19, %s20
    %p24 = pneg %p18
    %p25 = scmp.eq.s32.totalorder %s9, 1
    %p26 = por %p24, %p25
    %p27 = scmp.ne.s32.totalorder %s19, %s22
    %p28 = scmp.eq.s32.totalorder %s9, 0
    %p29 = por %p27, %p28
    %p30 = scmp.ne.s32.totalorder %s19, %s22
    %p31 = scmp.eq.s32.totalorder %s14, 1
    %p32 = por %p30, %p31
    %p33 = scmp.ne.s32.totalorder %s22, %s23
    %p34 = scmp.eq.s32.totalorder %s14, 0
    %p35 = por %p33, %p34
    %p36 = scmp.ne.s32.totalorder %s22, %s23
    %p37 = scmp.eq.s32.totalorder %s15, 1
    %p38 = por %p36, %p37
    %p40 = scmp.ne.s32.totalorder %s23, %s39
    %p41 = scmp.eq.s32.totalorder %s15, 0
    %p42 = por %p40, %p41
    %s44 = sadd.s32 %s43, 1
    %p47 = scmp.eq.s32.totalorder %s9, 1
    %p48 = scmp.ne.s32.totalorder %s43, %s45
    %p49 = scmp.eq.s32.totalorder %s9, 0
    %p50 = por %p48, %p49
    %p51 = scmp.ne.s32.totalorder %s43, %s45
    %p52 = scmp.eq.s32.totalorder %s14, 1
    %p53 = por %p51, %p52
    %p54 = scmp.ne.s32.totalorder %s45, %s46
    %p55 = scmp.eq.s32.totalorder %s14, 0
    %p56 = por %p54, %p55
    %p57 = scmp.ne.s32.totalorder %s45, %s46
    %p58 = scmp.eq.s32.totalorder %s15, 1
    %p59 = por %p57, %p58
    %p61 = scmp.ne.s32.totalorder %s46, %s60
    %p62 = scmp.eq.s32.totalorder %s15, 0
    %p63 = por %p61, %p62
    %s65 = sadd.s32 %s64, 1
    %p68 = scmp.eq.s32.totalorder %s9, 1
    %p69 = scmp.ne.s32.totalorder %s64, %s66
    %p70 = scmp.eq.s32.totalorder %s9, 0
    %p71 = por %p69, %p70
    %p72 = scmp.ne.s32.totalorder %s64, %s66
    %p73 = scmp.eq.s32.totalorder %s14, 1
    %p74 = por %p72, %p73
    %p75 = scmp.ne.s32.totalorder %s66, %s67
    %p76 = scmp.eq.s32.totalorder %s14, 0
    %p77 = por %p75, %p76
    %p78 = scmp.ne.s32.totalorder %s66, %s67
    %p79 = scmp.eq.s32.totalorder %s15, 1
    %p80 = por %p78, %p79
    %p82 = scmp.ne.s32.totalorder %s67, %s81
    %p83 = scmp.eq.s32.totalorder %s15, 0
    %p84 = por %p82, %p83
    %s85 = ssub.s32 %s9, %s16
    %p86 = scmp.eq.s32.totalorder %s85, 0
    %s88 = sadd.s32 %s87, 1
    %s89 = scalar_select %p86, %s87, %s88
    %p92 = pneg %p86
    %p93 = scmp.eq.s32.totalorder %s9, 1
    %p94 = por %p92, %p93
    %p95 = scmp.ne.s32.totalorder %s87, %s90
    %p96 = scmp.eq.s32.totalorder %s9, 0
    %p97 = por %p95, %p96
    %p98 = scmp.ne.s32.totalorder %s87, %s90
    %p99 = scmp.eq.s32.totalorder %s14, 1
    %p100 = por %p98, %p99
    %p101 = scmp.ne.s32.totalorder %s90, %s91
    %p102 = scmp.eq.s32.totalorder %s14, 0
    %p103 = por %p101, %p102
    %p104 = scmp.ne.s32.totalorder %s90, %s91
    %p105 = scmp.eq.s32.totalorder %s15, 1
    %p106 = por %p104, %p105
    %p108 = scmp.ne.s32.totalorder %s91, %s107
    %p109 = scmp.eq.s32.totalorder %s15, 0
    %p110 = por %p108, %p109
    %p111 = scmp.le.s32.totalorder 1, %s9
    %p112 = scmp.lt.s32.totalorder %s9, 3
    %p113 = pnand %p111, %p112
    %p114 = pneg %p113
    // Predicated region
    $region9: #{discriminator_forward.5} parent=5 // pred_check
      _
    $region10: #{discriminator_forward.5} parent=5 // pred_check_branch
      %116 = sbr.rel (%p113) target = $region12
    $region11: #{discriminator_forward.5} parent=5 // pred_region
      %s117 = ssub.s32 %s9, 1
      // Predicated region
      $region13: #{discriminator_forward.5} parent=11 // pred_check
        %p118 = pneg %p56
      $region14: #{discriminator_forward.5} parent=11 // pred_check_branch
        %120 = sbr.rel (%p118) target = $region16
      $region15: #{discriminator_forward.5} parent=11 // pred_region
        _
      $region16: #{discriminator_forward.5} parent=11 // pred_fallthru
        _
      // Predicated region
      $region17: #{discriminator_forward.5} parent=11 // pred_check
        %p121 = pneg %p77
      $region18: #{discriminator_forward.5} parent=11 // pred_check_branch
        %123 = sbr.rel (%p121) target = $region20
      $region19: #{discriminator_forward.5} parent=11 // pred_region
        _
      $region20: #{discriminator_forward.5} parent=11 // pred_fallthru
        _
    $region12: #{discriminator_forward.5} parent=5 // pred_fallthru
      _
    %p124 = scmp.lt.s32.totalorder %s9, 2
    // Predicated region
    $region21: #{discriminator_forward.5} parent=5 // pred_check
      %p125 = pneg %p124
    $region22: #{discriminator_forward.5} parent=5 // pred_check_branch
      %127 = sbr.rel (%p125) target = $region24
    $region23: #{discriminator_forward.5} parent=5 // pred_region
      // Predicated region
      $region25: #{discriminator_forward.5} parent=23 // pred_check
        %p128 = pneg %p29
      $region26: #{discriminator_forward.5} parent=23 // pred_check_branch
        %130 = sbr.rel (%p128) target = $region28
      $region27: #{discriminator_forward.5} parent=23 // pred_region
        %p131 = scmp.lt.s32.totalorder %s9, 1
        %s132 = scalar_select %p131, %s9, 1
        %s133 = smul.addr %s132, 11
        %s134 = smul.addr %s133, 4
        %s135 = scalar_lea.vmem %s0, %s134
      $region28: #{discriminator_forward.5} parent=23 // pred_fallthru
        _
    $region24: #{discriminator_forward.5} parent=5 // pred_fallthru
      _
    %p136 = scmp.le.s32.totalorder 1, %s9
    %p137 = scmp.lt.s32.totalorder %s9, 3
    %p138 = pnand %p136, %p137
    %p139 = pneg %p138
    // Predicated region
    $region29: #{discriminator_forward.5} parent=5 // pred_check
      _
    $region30: #{discriminator_forward.5} parent=5 // pred_check_branch
      %141 = sbr.rel (%p138) target = $region32
    $region31: #{discriminator_forward.5} parent=5 // pred_region
      %s142 = ssub.s32 %s9, 1
      %p143 = scmp.lt.s32.totalorder %s14, 1
      %s144 = scalar_select %p143, %s14, 1
      %s145 = smul.addr %s144, 11
      %s146 = smul.addr %s145, 4
      %s147 = scalar_lea.vmem %s0, %s146
      %p148 = pneg %p35
      %p149 = pneg %p32
      %p150 = pneg %p56
      %p151 = pneg %p53
      %p152 = pneg %p77
      %p153 = pneg %p74
      %p154 = pneg %p103
      %p155 = pneg %p100
      %p156 = scmp.lt.s32.totalorder %s14, 1
      %s157 = scalar_select %p156, %s14, 1
      %s158 = smul.addr %s157, 9
      %s159 = smul.addr %s158, 4
      %s160 = scalar_lea.vmem %s3, %s159
      %p161 = scmp.lt.s32.totalorder %s14, 1
      %s162 = scalar_select %p161, %s14, 1
      %s163 = smul.addr %s162, 11
      %s164 = smul.addr %s163, 4
      %s165 = scalar_lea.vmem %s0, %s164
      %p166 = scmp.lt.s32.totalorder %s14, 1
      %s167 = scalar_select %p166, %s14, 1
      %s168 = smul.addr %s167, 9
      %s169 = smul.addr %s168, 4
      %s170 = scalar_lea.vmem %s3, %s169
      %v172 = vld [vmem:[%s165] sm:$0xf]
      %v173 = vld [vmem:[%s165 + $0x4] sm:$0xf]
      %v174 = vld [vmem:[%s165 + $0x8] sm:$0xf]
      %v175 = vld [vmem:[%s165 + $0xc] sm:$0xf]
      %v176 = vld [vmem:[%s165 + $0x10] sm:$0xf]
      %v177 = vld [vmem:[%s165 + $0x14] sm:$0xf]
      %v178 = vld [vmem:[%s165 + $0x18] sm:$0xf]
      %v179 = vld [vmem:[%s165 + $0x1c] sm:$0xf]
      %v180 = vld [vmem:[%s165 + $0x20] sm:$0xf]
      %v181 = vld [vmem:[%s1] sm:$0xf]
      %v182 = vld [vmem:[%s1 + $0x4] sm:$0xf]
      %v183 = vld [vmem:[%s165 + $0x24] sm:$0x1]
      %s184 = scalar_lea.vmem %s1, 8
      %v185 = vld [vmem:[%s184] sm:$0xf]
      %v186 = vld [vmem:[%s184 + $0x4] sm:$0xf]
      %v197 = vunpack.c.l.b16 %v172
      %v198 = vunpack.c.l.b16 %v173
      %v199 = vunpack.c.l.b16 %v174
      %v200 = vunpack.c.l.b16 %v175
      %v201 = vunpack.c.l.b16 %v176
      %v202 = vunpack.c.l.b16 %v177
      %v203 = vunpack.c.l.b16 %v178
      %v204 = vunpack.c.l.b16 %v179
      %v205 = vunpack.c.l.b16 %v180
      %v206 = vunpack.c.l.b16 %v183
      %v207 = vpack.c.b16 %v198, %v197
      %v208 = vpack.c.b16 %v200, %v199
      %v209 = vpack.c.b16 %v202, %v201
      %v210 = vpack.c.b16 %v204, %v203
      %v211 = vpack.c.b16 %v206, %v205
      %vm212 = vsmask.f32 7424
      %v214 = vshrl.u32 %v207, 16
      %v216 = vshll.u32 %v207, 16
      %v218 = vrot.slane %v216, 1
      %v219 = vor.u32 %v214, %v218
      %v221 = vshll.u32 %v208, 16
      %v223 = vrot.slane %v221, 1
      %v224 = vsel %vm212, %v219, %v223
      %v225 = vshrl.u32 %v208, 16
      %v227 = vor.u32 %v225, %v223
      %v229 = vshll.u32 %v209, 16
      %v231 = vrot.slane %v229, 1
      %v232 = vsel %vm212, %v227, %v231
      %v233 = vshrl.u32 %v209, 16
      %v235 = vor.u32 %v233, %v231
      %v237 = vshll.u32 %v210, 16
      %v239 = vrot.slane %v237, 1
      %v240 = vsel %vm212, %v235, %v239
      %v241 = vshrl.u32 %v210, 16
      %v243 = vor.u32 %v241, %v239
      %v245 = vshll.u32 %v211, 16
      %v247 = vrot.slane %v245, 1
      %v248 = vsel %vm212, %v243, %v247
      %v249 = vshrl.u32 %v211, 16
      %v251 = vor.u32 %v249, %v247
      %v254 = vunpack.c.l.b16 %v185
      %v255 = vunpack.c.l.b16 %v186
      %v256 = vpack.c.b16 %v255, %v254
      %vm258 = vcmask 130048
      %v260 = vsel %vm258, %v224, 0
      %v263 = vsel %vm258, %v232, 0
      %v266 = vsel %vm258, %v240, 0
      %v269 = vsel %vm258, %v248, 0
      %v272 = vsel %vm258, %v251, 0
      %274 = vmatprep.subr.bf16.mxu0 0
      %275 = vmatpush1.bf16.msra.mxu0 0
      %276 = vmatprep.subr.bf16.mxu0 0
      %277 = vmatpush1.bf16.msra.mxu0 0
      %278 = vmatprep.subr.bf16.mxu0 0
      %279 = vmatpush1.bf16.msra.mxu0 0
      %280 = vmatprep.subr.bf16.mxu0 0
      %281 = vmatpush1.bf16.msra.mxu0 0
      %282 = vmatprep.subr.bf16.mxu0 0
      %283 = vmatpush1.bf16.msra.mxu0 0
      %284 = vmatprep.subr.bf16.mxu0 0
      %285 = vmatpush1.bf16.msra.mxu0 0
      %286 = vmatprep.subr.bf16.mxu0 0
      %287 = vmatpush1.bf16.msra.mxu0 0
      %288 = vmatprep.subr.bf16.mxu0 0
      %289 = vmatpush1.bf16.msra.mxu0 %v256
      %290 = vmatprep.subr.bf16.mxu0 0
      %291 = vmatpush2.bf16.msra.mxu0 0
      %292 = vmatprep.subr.bf16.mxu0 0
      %293 = vmatpush2.bf16.msra.mxu0 0
      %294 = vmatprep.subr.bf16.mxu0 0
      %295 = vmatpush2.bf16.msra.mxu0 0
      %296 = vmatprep.subr.bf16.mxu0 0
      %297 = vmatpush2.bf16.msra.mxu0 0
      %298 = vmatprep.subr.bf16.mxu0 0
      %299 = vmatpush2.bf16.msra.mxu0 0
      %300 = vmatprep.subr.bf16.mxu0 0
      %301 = vmatpush2.bf16.msra.mxu0 0
      %302 = vmatprep.subr.bf16.mxu0 0
      %303 = vmatpush2.bf16.msra.mxu0 0
      %304 = vmatprep.subr.bf16.mxu0 0
      %305 = vmatpush2.bf16.msra.mxu0 0
      %306 = vmatprep.mubr.bf16.mxu0 0
      %307 = vmatmul.mubr.bf16.gmra.mxu0 %v260
      %v308 = vpop.f32.mrf.mxu0
      %v309 = vadd.f32 0.0, %v308
      %v310 = vpop.f32.mrf.mxu0
      %v311 = vpop.f32.mrf.mxu0
      %v312 = vadd.f32 0.0, %v311
      %v313 = vpop.f32.mrf.mxu0
      %314 = vmatprep.mubr.bf16.mxu0 0
      %315 = vmatmul.mubr.bf16.gmra.mxu0 %v263
      %v316 = vpop.f32.mrf.mxu0
      %v317 = vadd.f32 0.0, %v316
      %v318 = vpop.f32.mrf.mxu0
      %v319 = vpop.f32.mrf.mxu0
      %v320 = vadd.f32 0.0, %v319
      %v321 = vpop.f32.mrf.mxu0
      %322 = vmatprep.mubr.bf16.mxu0 0
      %323 = vmatmul.mubr.bf16.gmra.mxu0 %v266
      %v324 = vpop.f32.mrf.mxu0
      %v325 = vadd.f32 0.0, %v324
      %v326 = vpop.f32.mrf.mxu0
      %v327 = vpop.f32.mrf.mxu0
      %v328 = vadd.f32 0.0, %v327
      %v329 = vpop.f32.mrf.mxu0
      %330 = vmatprep.mubr.bf16.mxu0 0
      %331 = vmatmul.mubr.bf16.gmra.mxu0 %v269
      %v332 = vpop.f32.mrf.mxu0
      %v333 = vadd.f32 0.0, %v332
      %v334 = vpop.f32.mrf.mxu0
      %v335 = vpop.f32.mrf.mxu0
      %v336 = vadd.f32 0.0, %v335
      %v337 = vpop.f32.mrf.mxu0
      %338 = vmatprep.mubr.bf16.mxu0 0
      %339 = vmatmul.mubr.bf16.gmra.mxu0 %v272
      %v340 = vpop.f32.mrf.mxu0
      %v341 = vadd.f32 0.0, %v340
      %v342 = vpop.f32.mrf.mxu0
      %v343 = vpop.f32.mrf.mxu0
      %v344 = vpop.f32.mrf.mxu0
      %345 = vdwg.mxu0
      %v346 = vpack.c.b16 %v205, %v205
      %v349 = vunpack.c.l.b16 %v181
      %v350 = vunpack.c.l.b16 %v182
      %v351 = vpack.c.b16 %v350, %v349
      %v353 = vsel %vm258, %v207, 0
      %v355 = vsel %vm258, %v208, 0
      %v357 = vsel %vm258, %v209, 0
      %v359 = vsel %vm258, %v210, 0
      %v362 = vsel %vm258, %v346, 0
      %364 = vmatprep.subr.bf16.mxu0 0
      %365 = vmatpush1.bf16.msra.mxu0 0
      %366 = vmatprep.subr.bf16.mxu0 0
      %367 = vmatpush1.bf16.msra.mxu0 0
      %368 = vmatprep.subr.bf16.mxu0 0
      %369 = vmatpush1.bf16.msra.mxu0 0
      %370 = vmatprep.subr.bf16.mxu0 0
      %371 = vmatpush1.bf16.msra.mxu0 0
      %372 = vmatprep.subr.bf16.mxu0 0
      %373 = vmatpush1.bf16.msra.mxu0 0
      %374 = vmatprep.subr.bf16.mxu0 0
      %375 = vmatpush1.bf16.msra.mxu0 0
      %376 = vmatprep.subr.bf16.mxu0 0
      %377 = vmatpush1.bf16.msra.mxu0 0
      %378 = vmatprep.subr.bf16.mxu0 0
      %379 = vmatpush1.bf16.msra.mxu0 %v351
      %380 = vmatprep.subr.bf16.mxu0 0
      %381 = vmatpush2.bf16.msra.mxu0 0
      %382 = vmatprep.subr.bf16.mxu0 0
      %383 = vmatpush2.bf16.msra.mxu0 0
      %384 = vmatprep.subr.bf16.mxu0 0
      %385 = vmatpush2.bf16.msra.mxu0 0
      %386 = vmatprep.subr.bf16.mxu0 0
      %387 = vmatpush2.bf16.msra.mxu0 0
      %388 = vmatprep.subr.bf16.mxu0 0
      %389 = vmatpush2.bf16.msra.mxu0 0
      %390 = vmatprep.subr.bf16.mxu0 0
      %391 = vmatpush2.bf16.msra.mxu0 0
      %392 = vmatprep.subr.bf16.mxu0 0
      %393 = vmatpush2.bf16.msra.mxu0 0
      %394 = vmatprep.subr.bf16.mxu0 0
      %395 = vmatpush2.bf16.msra.mxu0 0
      %396 = vmatprep.mubr.bf16.mxu0 0
      %397 = vmatmul.mubr.bf16.gmra.mxu0 %v353
      %v398 = vpop.f32.mrf.mxu0
      %v399 = vadd.f32 %v309, %v398
      %v400 = vpop.f32.mrf.mxu0
      %v401 = vpop.f32.mrf.mxu0
      %v402 = vadd.f32 %v312, %v401
      %v403 = vpop.f32.mrf.mxu0
      %404 = vmatprep.mubr.bf16.mxu0 0
      %405 = vmatmul.mubr.bf16.gmra.mxu0 %v355
      %v406 = vpop.f32.mrf.mxu0
      %v407 = vadd.f32 %v317, %v406
      %v408 = vpop.f32.mrf.mxu0
      %v409 = vpop.f32.mrf.mxu0
      %v410 = vadd.f32 %v320, %v409
      %v411 = vpop.f32.mrf.mxu0
      %412 = vmatprep.mubr.bf16.mxu0 0
      %413 = vmatmul.mubr.bf16.gmra.mxu0 %v357
      %v414 = vpop.f32.mrf.mxu0
      %v415 = vadd.f32 %v325, %v414
      %v416 = vpop.f32.mrf.mxu0
      %v417 = vpop.f32.mrf.mxu0
      %v418 = vadd.f32 %v328, %v417
      %v419 = vpop.f32.mrf.mxu0
      %420 = vmatprep.mubr.bf16.mxu0 0
      %421 = vmatmul.mubr.bf16.gmra.mxu0 %v359
      %v422 = vpop.f32.mrf.mxu0
      %v423 = vadd.f32 %v333, %v422
      %v424 = vpop.f32.mrf.mxu0
      %v425 = vpop.f32.mrf.mxu0
      %v426 = vadd.f32 %v336, %v425
      %v427 = vpop.f32.mrf.mxu0
      %428 = vmatprep.mubr.bf16.mxu0 0
      %429 = vmatmul.mubr.bf16.gmra.mxu0 %v362
      %v430 = vpop.f32.mrf.mxu0
      %v431 = vadd.f32 %v341, %v430
      %v432 = vpop.f32.mrf.mxu0
      %v433 = vpop.f32.mrf.mxu0
      %v434 = vpop.f32.mrf.mxu0
      %435 = vdwg.mxu0
      %v436 = vld [vmem:[%s165 + $0x4] sm:$0xf]
      %v437 = vld [vmem:[%s165 + $0x8] sm:$0xf]
      %v438 = vld [vmem:[%s165 + $0xc] sm:$0xf]
      %v439 = vld [vmem:[%s165 + $0x10] sm:$0xf]
      %v440 = vld [vmem:[%s165 + $0x14] sm:$0xf]
      %v441 = vld [vmem:[%s165 + $0x18] sm:$0xf]
      %v442 = vld [vmem:[%s165 + $0x1c] sm:$0xf]
      %v443 = vld [vmem:[%s165 + $0x20] sm:$0xf]
      %v444 = vld [vmem:[%s165 + $0x24] sm:$0xf]
      %v445 = vld [vmem:[%s165 + $0x28] sm:$0x1]
      %s446 = scalar_lea.vmem %s1, 16
      %v447 = vld [vmem:[%s446] sm:$0xf]
      %v448 = vld [vmem:[%s446 + $0x4] sm:$0xf]
      %v459 = vunpack.c.l.b16 %v436
      %v460 = vunpack.c.l.b16 %v437
      %v461 = vunpack.c.l.b16 %v438
      %v462 = vunpack.c.l.b16 %v439
      %v463 = vunpack.c.l.b16 %v440
      %v464 = vunpack.c.l.b16 %v441
      %v465 = vunpack.c.l.b16 %v442
      %v466 = vunpack.c.l.b16 %v443
      %v467 = vunpack.c.l.b16 %v444
      %v468 = vunpack.c.l.b16 %v445
      %v469 = vpack.c.b16 %v460, %v459
      %v470 = vpack.c.b16 %v462, %v461
      %v471 = vpack.c.b16 %v464, %v463
      %v472 = vpack.c.b16 %v466, %v465
      %v473 = vpack.c.b16 %v468, %v467
      %v475 = vshrl.u32 %v469, 16
      %v477 = vshll.u32 %v469, 16
      %v479 = vrot.slane %v477, 1
      %v480 = vor.u32 %v475, %v479
      %v482 = vshll.u32 %v470, 16
      %v484 = vrot.slane %v482, 1
      %v485 = vsel %vm212, %v480, %v484
      %v486 = vshrl.u32 %v470, 16
      %v488 = vor.u32 %v486, %v484
      %v490 = vshll.u32 %v471, 16
      %v492 = vrot.slane %v490, 1
      %v493 = vsel %vm212, %v488, %v492
      %v494 = vshrl.u32 %v471, 16
      %v496 = vor.u32 %v494, %v492
      %v498 = vshll.u32 %v472, 16
      %v500 = vrot.slane %v498, 1
      %v501 = vsel %vm212, %v496, %v500
      %v502 = vshrl.u32 %v472, 16
      %v504 = vor.u32 %v502, %v500
      %v506 = vshll.u32 %v473, 16
      %v508 = vrot.slane %v506, 1
      %v509 = vsel %vm212, %v504, %v508
      %v510 = vshrl.u32 %v473, 16
      %v512 = vor.u32 %v510, %v508
      %v515 = vunpack.c.l.b16 %v447
      %v516 = vunpack.c.l.b16 %v448
      %v517 = vpack.c.b16 %v516, %v515
      %v520 = vsel %vm258, %v485, 0
      %v523 = vsel %vm258, %v493, 0
      %v526 = vsel %vm258, %v501, 0
      %v529 = vsel %vm258, %v509, 0
      %v532 = vsel %vm258, %v512, 0
      %534 = vmatprep.subr.bf16.mxu0 0
      %535 = vmatpush1.bf16.msra.mxu0 0
      %536 = vmatprep.subr.bf16.mxu0 0
      %537 = vmatpush1.bf16.msra.mxu0 0
      %538 = vmatprep.subr.bf16.mxu0 0
      %539 = vmatpush1.bf16.msra.mxu0 0
      %540 = vmatprep.subr.bf16.mxu0 0
      %541 = vmatpush1.bf16.msra.mxu0 0
      %542 = vmatprep.subr.bf16.mxu0 0
      %543 = vmatpush1.bf16.msra.mxu0 0
      %544 = vmatprep.subr.bf16.mxu0 0
      %545 = vmatpush1.bf16.msra.mxu0 0
      %546 = vmatprep.subr.bf16.mxu0 0
      %547 = vmatpush1.bf16.msra.mxu0 0
      %548 = vmatprep.subr.bf16.mxu0 0
      %549 = vmatpush1.bf16.msra.mxu0 %v517
      %550 = vmatprep.subr.bf16.mxu0 0
      %551 = vmatpush2.bf16.msra.mxu0 0
      %552 = vmatprep.subr.bf16.mxu0 0
      %553 = vmatpush2.bf16.msra.mxu0 0
      %554 = vmatprep.subr.bf16.mxu0 0
      %555 = vmatpush2.bf16.msra.mxu0 0
      %556 = vmatprep.subr.bf16.mxu0 0
      %557 = vmatpush2.bf16.msra.mxu0 0
      %558 = vmatprep.subr.bf16.mxu0 0
      %559 = vmatpush2.bf16.msra.mxu0 0
      %560 = vmatprep.subr.bf16.mxu0 0
      %561 = vmatpush2.bf16.msra.mxu0 0
      %562 = vmatprep.subr.bf16.mxu0 0
      %563 = vmatpush2.bf16.msra.mxu0 0
      %564 = vmatprep.subr.bf16.mxu0 0
      %565 = vmatpush2.bf16.msra.mxu0 0
      %566 = vmatprep.mubr.bf16.mxu0 0
      %567 = vmatmul.mubr.bf16.gmra.mxu0 %v520
      %v568 = vpop.f32.mrf.mxu0
      %v569 = vadd.f32 0.0, %v568
      %v570 = vpop.f32.mrf.mxu0
      %v571 = vpop.f32.mrf.mxu0
      %v572 = vadd.f32 0.0, %v571
      %v573 = vpop.f32.mrf.mxu0
      %574 = vmatprep.mubr.bf16.mxu0 0
      %575 = vmatmul.mubr.bf16.gmra.mxu0 %v523
      %v576 = vpop.f32.mrf.mxu0
      %v577 = vadd.f32 0.0, %v576
      %v578 = vpop.f32.mrf.mxu0
      %v579 = vpop.f32.mrf.mxu0
      %v580 = vadd.f32 0.0, %v579
      %v581 = vpop.f32.mrf.mxu0
      %582 = vmatprep.mubr.bf16.mxu0 0
      %583 = vmatmul.mubr.bf16.gmra.mxu0 %v526
      %v584 = vpop.f32.mrf.mxu0
      %v585 = vadd.f32 0.0, %v584
      %v586 = vpop.f32.mrf.mxu0
      %v587 = vpop.f32.mrf.mxu0
      %v588 = vadd.f32 0.0, %v587
      %v589 = vpop.f32.mrf.mxu0
      %590 = vmatprep.mubr.bf16.mxu0 0
      %591 = vmatmul.mubr.bf16.gmra.mxu0 %v529
      %v592 = vpop.f32.mrf.mxu0
      %v593 = vadd.f32 0.0, %v592
      %v594 = vpop.f32.mrf.mxu0
      %v595 = vpop.f32.mrf.mxu0
      %v596 = vadd.f32 0.0, %v595
      %v597 = vpop.f32.mrf.mxu0
      %598 = vmatprep.mubr.bf16.mxu0 0
      %599 = vmatmul.mubr.bf16.gmra.mxu0 %v532
      %v600 = vpop.f32.mrf.mxu0
      %v601 = vadd.f32 0.0, %v600
      %v602 = vpop.f32.mrf.mxu0
      %v603 = vpop.f32.mrf.mxu0
      %v604 = vpop.f32.mrf.mxu0
      %605 = vdwg.mxu0
      %v606 = vadd.f32 %v399, %v569
      %v607 = vadd.f32 %v402, %v572
      %v608 = vadd.f32 %v407, %v577
      %v609 = vadd.f32 %v410, %v580
      %v610 = vadd.f32 %v415, %v585
      %v611 = vadd.f32 %v418, %v588
      %v612 = vadd.f32 %v423, %v593
      %v613 = vadd.f32 %v426, %v596
      %v614 = vadd.f32 %v431, %v601
      %v615 = vld [vmem:[%s165 + $0x4] sm:$0xe]
      %s616 = scalar_lea.vmem %s1, 24
      %v617 = vld [vmem:[%s616] sm:$0xf]
      %v618 = vld [vmem:[%s616 + $0x4] sm:$0xf]
      %v620 = vunpack.c.l.b16 %v615
      %v621 = vpack.c.b16 %v460, %v620
      %vm622 = vcmask 1046528
      %v623 = vrot.slane %v621, 1
      %v624 = vrot.slane %v470, 1
      %v625 = vsel %vm622, %v623, %v624
      %v626 = vrot.slane %v471, 1
      %v627 = vsel %vm622, %v624, %v626
      %v628 = vrot.slane %v472, 1
      %v629 = vsel %vm622, %v626, %v628
      %v630 = vrot.slane %v473, 1
      %v631 = vsel %vm622, %v628, %v630
      %v634 = vunpack.c.l.b16 %v617
      %v635 = vunpack.c.l.b16 %v618
      %v636 = vpack.c.b16 %v635, %v634
      %v639 = vsel %vm258, %v625, 0
      %v642 = vsel %vm258, %v627, 0
      %v645 = vsel %vm258, %v629, 0
      %v648 = vsel %vm258, %v631, 0
      %v651 = vsel %vm258, %v630, 0
      %653 = vmatprep.subr.bf16.mxu0 0
      %654 = vmatpush1.bf16.msra.mxu0 0
      %655 = vmatprep.subr.bf16.mxu0 0
      %656 = vmatpush1.bf16.msra.mxu0 0
      %657 = vmatprep.subr.bf16.mxu0 0
      %658 = vmatpush1.bf16.msra.mxu0 0
      %659 = vmatprep.subr.bf16.mxu0 0
      %660 = vmatpush1.bf16.msra.mxu0 0
      %661 = vmatprep.subr.bf16.mxu0 0
      %662 = vmatpush1.bf16.msra.mxu0 0
      %663 = vmatprep.subr.bf16.mxu0 0
      %664 = vmatpush1.bf16.msra.mxu0 0
      %665 = vmatprep.subr.bf16.mxu0 0
      %666 = vmatpush1.bf16.msra.mxu0 0
      %667 = vmatprep.subr.bf16.mxu0 0
      %668 = vmatpush1.bf16.msra.mxu0 %v636
      %669 = vmatprep.subr.bf16.mxu0 0
      %670 = vmatpush2.bf16.msra.mxu0 0
      %671 = vmatprep.subr.bf16.mxu0 0
      %672 = vmatpush2.bf16.msra.mxu0 0
      %673 = vmatprep.subr.bf16.mxu0 0
      %674 = vmatpush2.bf16.msra.mxu0 0
      %675 = vmatprep.subr.bf16.mxu0 0
      %676 = vmatpush2.bf16.msra.mxu0 0
      %677 = vmatprep.subr.bf16.mxu0 0
      %678 = vmatpush2.bf16.msra.mxu0 0
      %679 = vmatprep.subr.bf16.mxu0 0
      %680 = vmatpush2.bf16.msra.mxu0 0
      %681 = vmatprep.subr.bf16.mxu0 0
      %682 = vmatpush2.bf16.msra.mxu0 0
      %683 = vmatprep.subr.bf16.mxu0 0
      %684 = vmatpush2.bf16.msra.mxu0 0
      %685 = vmatprep.mubr.bf16.mxu0 0
      %686 = vmatmul.mubr.bf16.gmra.mxu0 %v639
      %v687 = vpop.f32.mrf.mxu0
      %v688 = vadd.f32 0.0, %v687
      %v689 = vpop.f32.mrf.mxu0
      %v690 = vpop.f32.mrf.mxu0
      %v691 = vadd.f32 0.0, %v690
      %v692 = vpop.f32.mrf.mxu0
      %693 = vmatprep.mubr.bf16.mxu0 0
      %694 = vmatmul.mubr.bf16.gmra.mxu0 %v642
      %v695 = vpop.f32.mrf.mxu0
      %v696 = vadd.f32 0.0, %v695
      %v697 = vpop.f32.mrf.mxu0
      %v698 = vpop.f32.mrf.mxu0
      %v699 = vadd.f32 0.0, %v698
      %v700 = vpop.f32.mrf.mxu0
      %701 = vmatprep.mubr.bf16.mxu0 0
      %702 = vmatmul.mubr.bf16.gmra.mxu0 %v645
      %v703 = vpop.f32.mrf.mxu0
      %v704 = vadd.f32 0.0, %v703
      %v705 = vpop.f32.mrf.mxu0
      %v706 = vpop.f32.mrf.mxu0
      %v707 = vadd.f32 0.0, %v706
      %v708 = vpop.f32.mrf.mxu0
      %709 = vmatprep.mubr.bf16.mxu0 0
      %710 = vmatmul.mubr.bf16.gmra.mxu0 %v648
      %v711 = vpop.f32.mrf.mxu0
      %v712 = vadd.f32 0.0, %v711
      %v713 = vpop.f32.mrf.mxu0
      %v714 = vpop.f32.mrf.mxu0
      %v715 = vadd.f32 0.0, %v714
      %v716 = vpop.f32.mrf.mxu0
      %717 = vmatprep.mubr.bf16.mxu0 0
      %718 = vmatmul.mubr.bf16.gmra.mxu0 %v651
      %v719 = vpop.f32.mrf.mxu0
      %v720 = vadd.f32 0.0, %v719
      %v721 = vpop.f32.mrf.mxu0
      %v722 = vpop.f32.mrf.mxu0
      %v723 = vpop.f32.mrf.mxu0
      %724 = vdwg.mxu0
      %v725 = vadd.f32 %v606, %v688
      %v726 = vadd.f32 %v607, %v691
      %v727 = vadd.f32 %v608, %v696
      %v728 = vadd.f32 %v609, %v699
      %v729 = vadd.f32 %v610, %v704
      %v730 = vadd.f32 %v611, %v707
      %v731 = vadd.f32 %v612, %v712
      %v732 = vadd.f32 %v613, %v715
      %v733 = vadd.f32 %v614, %v720
      %v734 = vld [vmem:[%s2] sm:$0x7]
      %v735 = vlaneseq
      %v736 = vshrl.u32 %v735, 7
      %v737 = vsub.s32 0, %v736
      %v738 = vrot.slane %v734, %v737
      %v739 = vadd.f32 %v725, %v738
      %v740 = vadd.f32 %v726, %v738
      %v741 = vadd.f32 %v727, %v738
      %v742 = vadd.f32 %v728, %v738
      %v743 = vadd.f32 %v729, %v738
      %v744 = vadd.f32 %v730, %v738
      %v745 = vadd.f32 %v731, %v738
      %v746 = vadd.f32 %v732, %v738
      %v747 = vadd.f32 %v733, %v738
      %vm748 = vcmp.ge.f32.partialorder %v739, 0.0
      %vm749 = vcmp.ge.f32.partialorder %v740, 0.0
      %vm750 = vcmp.ge.f32.partialorder %v741, 0.0
      %vm751 = vcmp.ge.f32.partialorder %v742, 0.0
      %vm752 = vcmp.ge.f32.partialorder %v743, 0.0
      %vm753 = vcmp.ge.f32.partialorder %v744, 0.0
      %vm754 = vcmp.ge.f32.partialorder %v745, 0.0
      %vm755 = vcmp.ge.f32.partialorder %v746, 0.0
      %vm756 = vcmp.ge.f32.partialorder %v747, 0.0
      %v757 = vmul.f32 %v739, 0.2
      %v758 = vmul.f32 %v740, 0.2
      %v759 = vmul.f32 %v741, 0.2
      %v760 = vmul.f32 %v742, 0.2
      %v761 = vmul.f32 %v743, 0.2
      %v762 = vmul.f32 %v744, 0.2
      %v763 = vmul.f32 %v745, 0.2
      %v764 = vmul.f32 %v746, 0.2
      %v765 = vmul.f32 %v747, 0.2
      %v766 = vsel %vm748, %v739, %v757
      %v767 = vsel %vm749, %v740, %v758
      %v768 = vsel %vm750, %v741, %v759
      %v769 = vsel %vm751, %v742, %v760
      %v770 = vsel %vm752, %v743, %v761
      %v771 = vsel %vm753, %v744, %v762
      %v772 = vsel %vm754, %v745, %v763
      %v773 = vsel %vm755, %v746, %v764
      %v774 = vsel %vm756, %v747, %v765
      %v775 = vlaneseq
      %v776 = vshrl.u32 %v775, 7
      %v777 = vsub.s32 1, %v776
      %v778 = vrot.slane %v734, %v777
      %v779 = vmul.f32 %v766, %v778
      %v780 = vmul.f32 %v767, %v778
      %v781 = vmul.f32 %v768, %v778
      %v782 = vmul.f32 %v769, %v778
      %v783 = vmul.f32 %v770, %v778
      %v784 = vmul.f32 %v771, %v778
      %v785 = vmul.f32 %v772, %v778
      %v786 = vmul.f32 %v773, %v778
      %v787 = vmul.f32 %v774, %v778
      %v788 = vlaneseq
      %v789 = vshrl.u32 %v788, 7
      %v790 = vsub.s32 2, %v789
      %v791 = vrot.slane %v734, %v790
      %v792 = vadd.f32 %v779, %v791
      %v793 = vadd.f32 %v780, %v791
      %v794 = vadd.f32 %v781, %v791
      %v795 = vadd.f32 %v782, %v791
      %v796 = vadd.f32 %v783, %v791
      %v797 = vadd.f32 %v784, %v791
      %v798 = vadd.f32 %v785, %v791
      %v799 = vadd.f32 %v786, %v791
      %v800 = vadd.f32 %v787, %v791
      %v801 = vpack.c.bf16 %v793, %v792
      %v802 = vpack.c.bf16 %v795, %v794
      %v803 = vpack.c.bf16 %v797, %v796
      %v804 = vpack.c.bf16 %v799, %v798
      %v805 = vpack.c.bf16 %v800, %v800
      %v811 = vunpack.c.l.b16 %v801
      %v812 = vunpack.c.h.b16 %v801
      %v813 = vunpack.c.l.b16 %v802
      %v814 = vunpack.c.h.b16 %v802
      %v815 = vunpack.c.l.b16 %v803
      %v816 = vunpack.c.h.b16 %v803
      %v817 = vunpack.c.l.b16 %v804
      %v818 = vunpack.c.h.b16 %v804
      %v819 = vunpack.c.l.b16 %v805
      %v820 = vpack.c.b16 %v811, %v811
      %v821 = vpack.c.b16 %v812, %v812
      %v822 = vpack.c.b16 %v813, %v813
      %v823 = vpack.c.b16 %v814, %v814
      %v824 = vpack.c.b16 %v815, %v815
      %v825 = vpack.c.b16 %v816, %v816
      %v826 = vpack.c.b16 %v817, %v817
      %v827 = vpack.c.b16 %v818, %v818
      %v828 = vpack.c.b16 %v819, %v819
      %vm838 = vcmask 125952
      %839 = vst.msk [vmem:[%s170] sm:$0xf] %vm838, %v820
      %840 = vst.msk [vmem:[%s170 + $0x4] sm:$0xf] %vm838, %v821
      %841 = vst.msk [vmem:[%s170 + $0x8] sm:$0xf] %vm838, %v822
      %842 = vst.msk [vmem:[%s170 + $0xc] sm:$0xf] %vm838, %v823
      %843 = vst.msk [vmem:[%s170 + $0x10] sm:$0xf] %vm838, %v824
      %844 = vst.msk [vmem:[%s170 + $0x14] sm:$0xf] %vm838, %v825
      %845 = vst.msk [vmem:[%s170 + $0x18] sm:$0xf] %vm838, %v826
      %846 = vst.msk [vmem:[%s170 + $0x1c] sm:$0xf] %vm838, %v827
      %847 = vst.msk [vmem:[%s170 + $0x20] sm:$0xf] %vm838, %v828
      %p848 = scmp.lt.s32.totalorder %s14, 1
      %s849 = scalar_select %p848, %s14, 1
      %s850 = smul.addr %s849, 9
      %s851 = smul.addr %s850, 4
      %s852 = scalar_lea.vmem %s3, %s851
      // Predicated region
      $region33: #{discriminator_forward.5} parent=31 // pred_check
        %p853 = pneg %p100
      $region34: #{discriminator_forward.5} parent=31 // pred_check_branch
        %855 = sbr.rel (%p853) target = $region36
      $region35: #{discriminator_forward.5} parent=31 // pred_region
        _
      $region36: #{discriminator_forward.5} parent=31 // pred_fallthru
        _
    $region32: #{discriminator_forward.5} parent=5 // pred_fallthru
      _
    %p856 = scmp.le.s32.totalorder 2, %s9
    // Predicated region
    $region37: #{discriminator_forward.5} parent=5 // pred_check
      %p857 = pneg %p856
    $region38: #{discriminator_forward.5} parent=5 // pred_check_branch
      %859 = sbr.rel (%p857) target = $region40
    $region39: #{discriminator_forward.5} parent=5 // pred_region
      %s860 = ssub.s32 %s9, 2
      // Predicated region
      $region41: #{discriminator_forward.5} parent=39 // pred_check
        %p861 = pneg %p106
      $region42: #{discriminator_forward.5} parent=39 // pred_check_branch
        %863 = sbr.rel (%p861) target = $region44
      $region43: #{discriminator_forward.5} parent=39 // pred_region
        %p864 = scmp.lt.s32.totalorder %s15, 1
        %s865 = scalar_select %p864, %s15, 1
        %s866 = smul.addr %s865, 9
        %s867 = smul.addr %s866, 4
        %s868 = scalar_lea.vmem %s3, %s867
      $region44: #{discriminator_forward.5} parent=39 // pred_fallthru
        _
    $region40: #{discriminator_forward.5} parent=5 // pred_fallthru
      _
  $region6: #{discriminator_forward.5} parent=0 // loop_footer
    %s13 = sadd.s32 1, %s9
  $region7: #{discriminator_forward.5} parent=0 // loop_footer_branch
    %8 = sbr.rel target = $region3
  $region8: #{discriminator_forward.5} parent=0 // loop_exit
    _

// kernel: discriminator_forward.6
$region0: #{discriminator_forward.6}
  #allocation0 [shape = 'u32[]', space=smem, size = 0x4, offset = 0x4, fixed_abs, tag = 'smem constant byte address 0x4 - core index']
  #allocation1 [shape = 'u32[144,128]{1,0:T(1,128)}', space=vmem, size = 0x12000, scoped, tag = 'internal scratch']
  %s0 = inlined_call_operand.vmem [shape: bf16[2,26,64], index: 0, kind: input, shape index: {}]
  %s1 = inlined_call_operand.vmem [shape: bf16[4,64,32], index: 1, kind: input, shape index: {}]
  %s2 = inlined_call_operand.vmem [shape: f32[3,32], index: 2, kind: input, shape index: {}]
  %s3 = inlined_call_operand.vmem [shape: bf16[2,20,32], index: 3, kind: output, shape index: {}]
  %s4 = sld [smem:[#allocation0]]
  $region45: #{discriminator_forward.6} parent=0
    _
  %s6 = ssub.s32 1, %s4
  %s7 = scalar_select 0, %s6, %s4
  loop: start=0, step=1, limit=4
  $region2: #{discriminator_forward.6} parent=0 // loop_pre_header
    _
  $region3: #{discriminator_forward.6} parent=0 // loop_header
    %s9 = sphi 0, %s13
    %p10 = scmp.ge.s32.totalorder %s9, 4
    %s19 = sphi 0, %s21
    %s22 = sphi 0, %s19
    %s23 = sphi 0, %s22
    %s39 = sphi 0, %s23
    %s43 = sphi 0, %s43
    %s45 = sphi 0, %s43
    %s46 = sphi 0, %s45
    %s60 = sphi 0, %s46
    %s64 = sphi 0, %s64
    %s66 = sphi 0, %s64
    %s67 = sphi 0, %s66
    %s81 = sphi 0, %s67
    %s87 = sphi 0, %s89
    %s90 = sphi 0, %s87
    %s91 = sphi 0, %s90
    %s107 = sphi 0, %s91
  $region4: #{discriminator_forward.6} parent=0 // loop_header_branch
    %12 = sbr.rel (%p10) target = $region8
  $region5: #{discriminator_forward.6} parent=0 // loop_body
    %s14 = ssub.s32 %s9, 1
    %s15 = ssub.s32 %s9, 2
    %s16 = sadd.s32 %s9, 1
    %s17 = ssub.s32 %s9, %s16
    %p18 = scmp.eq.s32.totalorder %s17, 0
    %s20 = sadd.s32 %s19, 1
    %s21 = scalar_select %p18, %s19, %s20
    %p24 = pneg %p18
    %p25 = scmp.eq.s32.totalorder %s9, 1
    %p26 = por %p24, %p25
    %p27 = scmp.ne.s32.totalorder %s19, %s22
    %p28 = scmp.eq.s32.totalorder %s9, 0
    %p29 = por %p27, %p28
    %p30 = scmp.ne.s32.totalorder %s19, %s22
    %p31 = scmp.eq.s32.totalorder %s14, 1
    %p32 = por %p30, %p31
    %p33 = scmp.ne.s32.totalorder %s22, %s23
    %p34 = scmp.eq.s32.totalorder %s14, 0
    %p35 = por %p33, %p34
    %p36 = scmp.ne.s32.totalorder %s22, %s23
    %p37 = scmp.eq.s32.totalorder %s15, 1
    %p38 = por %p36, %p37
    %p40 = scmp.ne.s32.totalorder %s23, %s39
    %p41 = scmp.eq.s32.totalorder %s15, 0
    %p42 = por %p40, %p41
    %s44 = sadd.s32 %s43, 1
    %p47 = scmp.eq.s32.totalorder %s9, 1
    %p48 = scmp.ne.s32.totalorder %s43, %s45
    %p49 = scmp.eq.s32.totalorder %s9, 0
    %p50 = por %p48, %p49
    %p51 = scmp.ne.s32.totalorder %s43, %s45
    %p52 = scmp.eq.s32.totalorder %s14, 1
    %p53 = por %p51, %p52
    %p54 = scmp.ne.s32.totalorder %s45, %s46
    %p55 = scmp.eq.s32.totalorder %s14, 0
    %p56 = por %p54, %p55
    %p57 = scmp.ne.s32.totalorder %s45, %s46
    %p58 = scmp.eq.s32.totalorder %s15, 1
    %p59 = por %p57, %p58
    %p61 = scmp.ne.s32.totalorder %s46, %s60
    %p62 = scmp.eq.s32.totalorder %s15, 0
    %p63 = por %p61, %p62
    %s65 = sadd.s32 %s64, 1
    %p68 = scmp.eq.s32.totalorder %s9, 1
    %p69 = scmp.ne.s32.totalorder %s64, %s66
    %p70 = scmp.eq.s32.totalorder %s9, 0
    %p71 = por %p69, %p70
    %p72 = scmp.ne.s32.totalorder %s64, %s66
    %p73 = scmp.eq.s32.totalorder %s14, 1
    %p74 = por %p72, %p73
    %p75 = scmp.ne.s32.totalorder %s66, %s67
    %p76 = scmp.eq.s32.totalorder %s14, 0
    %p77 = por %p75, %p76
    %p78 = scmp.ne.s32.totalorder %s66, %s67
    %p79 = scmp.eq.s32.totalorder %s15, 1
    %p80 = por %p78, %p79
    %p82 = scmp.ne.s32.totalorder %s67, %s81
    %p83 = scmp.eq.s32.totalorder %s15, 0
    %p84 = por %p82, %p83
    %s85 = ssub.s32 %s9, %s16
    %p86 = scmp.eq.s32.totalorder %s85, 0
    %s88 = sadd.s32 %s87, 1
    %s89 = scalar_select %p86, %s87, %s88
    %p92 = pneg %p86
    %p93 = scmp.eq.s32.totalorder %s9, 1
    %p94 = por %p92, %p93
    %p95 = scmp.ne.s32.totalorder %s87, %s90
    %p96 = scmp.eq.s32.totalorder %s9, 0
    %p97 = por %p95, %p96
    %p98 = scmp.ne.s32.totalorder %s87, %s90
    %p99 = scmp.eq.s32.totalorder %s14, 1
    %p100 = por %p98, %p99
    %p101 = scmp.ne.s32.totalorder %s90, %s91
    %p102 = scmp.eq.s32.totalorder %s14, 0
    %p103 = por %p101, %p102
    %p104 = scmp.ne.s32.totalorder %s90, %s91
    %p105 = scmp.eq.s32.totalorder %s15, 1
    %p106 = por %p104, %p105
    %p108 = scmp.ne.s32.totalorder %s91, %s107
    %p109 = scmp.eq.s32.totalorder %s15, 0
    %p110 = por %p108, %p109
    %p111 = scmp.le.s32.totalorder 1, %s9
    %p112 = scmp.lt.s32.totalorder %s9, 3
    %p113 = pnand %p111, %p112
    %p114 = pneg %p113
    // Predicated region
    $region9: #{discriminator_forward.6} parent=5 // pred_check
      _
    $region10: #{discriminator_forward.6} parent=5 // pred_check_branch
      %116 = sbr.rel (%p113) target = $region12
    $region11: #{discriminator_forward.6} parent=5 // pred_region
      %s117 = ssub.s32 %s9, 1
      // Predicated region
      $region13: #{discriminator_forward.6} parent=11 // pred_check
        %p118 = pneg %p56
      $region14: #{discriminator_forward.6} parent=11 // pred_check_branch
        %120 = sbr.rel (%p118) target = $region16
      $region15: #{discriminator_forward.6} parent=11 // pred_region
        _
      $region16: #{discriminator_forward.6} parent=11 // pred_fallthru
        _
      // Predicated region
      $region17: #{discriminator_forward.6} parent=11 // pred_check
        %p121 = pneg %p77
      $region18: #{discriminator_forward.6} parent=11 // pred_check_branch
        %123 = sbr.rel (%p121) target = $region20
      $region19: #{discriminator_forward.6} parent=11 // pred_region
        _
      $region20: #{discriminator_forward.6} parent=11 // pred_fallthru
        _
    $region12: #{discriminator_forward.6} parent=5 // pred_fallthru
      _
    %p124 = scmp.lt.s32.totalorder %s9, 2
    // Predicated region
    $region21: #{discriminator_forward.6} parent=5 // pred_check
      %p125 = pneg %p124
    $region22: #{discriminator_forward.6} parent=5 // pred_check_branch
      %127 = sbr.rel (%p125) target = $region24
    $region23: #{discriminator_forward.6} parent=5 // pred_region
      // Predicated region
      $region25: #{discriminator_forward.6} parent=23 // pred_check
        %p128 = pneg %p29
      $region26: #{discriminator_forward.6} parent=23 // pred_check_branch
        %130 = sbr.rel (%p128) target = $region28
      $region27: #{discriminator_forward.6} parent=23 // pred_region
        %p131 = scmp.lt.s32.totalorder %s9, 1
        %s132 = scalar_select %p131, %s9, 1
        %s133 = smul.addr %s132, 4
        %s134 = smul.addr %s133, 4
        %s135 = scalar_lea.vmem %s0, %s134
      $region28: #{discriminator_forward.6} parent=23 // pred_fallthru
        _
    $region24: #{discriminator_forward.6} parent=5 // pred_fallthru
      _
    %p136 = scmp.le.s32.totalorder 1, %s9
    %p137 = scmp.lt.s32.totalorder %s9, 3
    %p138 = pnand %p136, %p137
    %p139 = pneg %p138
    // Predicated region
    $region29: #{discriminator_forward.6} parent=5 // pred_check
      _
    $region30: #{discriminator_forward.6} parent=5 // pred_check_branch
      %141 = sbr.rel (%p138) target = $region32
    $region31: #{discriminator_forward.6} parent=5 // pred_region
      %s142 = ssub.s32 %s9, 1
      %p143 = scmp.lt.s32.totalorder %s14, 1
      %s144 = scalar_select %p143, %s14, 1
      %s145 = smul.addr %s144, 4
      %s146 = smul.addr %s145, 4
      %s147 = scalar_lea.vmem %s0, %s146
      %p148 = pneg %p35
      %p149 = pneg %p32
      %p150 = pneg %p56
      %p151 = pneg %p53
      %p152 = pneg %p77
      %p153 = pneg %p74
      %p154 = pneg %p103
      %p155 = pneg %p100
      %p156 = scmp.lt.s32.totalorder %s14, 1
      %s157 = scalar_select %p156, %s14, 1
      %s158 = smul.addr %s157, 3
      %s159 = smul.addr %s158, 4
      %s160 = scalar_lea.vmem %s3, %s159
      %p161 = scmp.lt.s32.totalorder %s14, 1
      %s162 = scalar_select %p161, %s14, 1
      %s163 = smul.addr %s162, 4
      %s164 = smul.addr %s163, 4
      %s165 = scalar_lea.vmem %s0, %s164
      %p166 = scmp.lt.s32.totalorder %s14, 1
      %s167 = scalar_select %p166, %s14, 1
      %s168 = smul.addr %s167, 3
      %s169 = smul.addr %s168, 4
      %s170 = scalar_lea.vmem %s3, %s169
      %v172 = vld [vmem:[%s165] sm:$0xf]
      %v173 = vld [vmem:[%s165 + $0x4] sm:$0xf]
      %v174 = vld [vmem:[%s165 + $0x8] sm:$0x3]
      %v175 = vld [vmem:[%s1] sm:$0xf]
      %v176 = vld [vmem:[%s1 + $0x4] sm:$0xf]
      %v177 = vld [vmem:[%s1 + $0x8] sm:$0xf]
      %v178 = vld [vmem:[%s1 + $0xc] sm:$0xf]
      %v179 = vld [vmem:[%s1 + $0x10] sm:$0xf]
      %v180 = vld [vmem:[%s1 + $0x14] sm:$0xf]
      %v181 = vld [vmem:[%s1 + $0x18] sm:$0xf]
      %v182 = vld [vmem:[%s1 + $0x1c] sm:$0xf]
      %v183 = vld [vmem:[%s165 + $0x8] sm:$0x7]
      %s184 = scalar_lea.vmem %s1, 32
      %v185 = vld [vmem:[%s184] sm:$0xf]
      %v186 = vld [vmem:[%s184 + $0x4] sm:$0xf]
      %v187 = vld [vmem:[%s184 + $0x8] sm:$0xf]
      %v188 = vld [vmem:[%s184 + $0xc] sm:$0xf]
      %v189 = vld [vmem:[%s184 + $0x10] sm:$0xf]
      %v190 = vld [vmem:[%s184 + $0x14] sm:$0xf]
      %v191 = vld [vmem:[%s184 + $0x18] sm:$0xf]
      %v192 = vld [vmem:[%s184 + $0x1c] sm:$0xf]
      %v196 = vunpack.c.l.b16 %v172
      %v197 = vunpack.c.l.b16 %v173
      %v198 = vunpack.c.l.b16 %v183
      %v199 = vpack.c.b16 %v197, %v196
      %v200 = vpack.c.b16 %v198, %v198
      %vm201 = vsmask.f32 7424
      %v203 = vshrl.u32 %v199, 16
      %v205 = vshll.u32 %v199, 16
      %v207 = vrot.slane %v205, 1
      %v208 = vor.u32 %v203, %v207
      %v210 = vshll.u32 %v200, 16
      %v212 = vrot.slane %v210, 1
      %v213 = vsel %vm201, %v208, %v212
      %v214 = vshrl.u32 %v200, 16
      %v216 = vor.u32 %v214, %v212
      %v225 = vunpack.c.l.b16 %v185
      %v226 = vunpack.c.l.b16 %v186
      %v227 = vunpack.c.l.b16 %v187
      %v228 = vunpack.c.l.b16 %v188
      %v229 = vunpack.c.l.b16 %v189
      %v230 = vunpack.c.l.b16 %v190
      %v231 = vunpack.c.l.b16 %v191
      %v232 = vunpack.c.l.b16 %v192
      %v233 = vpack.c.b16 %v226, %v225
      %v234 = vpack.c.b16 %v228, %v227
      %v235 = vpack.c.b16 %v230, %v229
      %v236 = vpack.c.b16 %v232, %v231
      %vm241 = vcmask 523264
      %v243 = vsel %vm241, %v213, 0
      %v246 = vsel %vm241, %v216, 0
      %248 = vmatprep.subr.bf16.mxu0 0
      %249 = vmatpush1.bf16.msra.mxu0 0
      %250 = vmatprep.subr.bf16.mxu0 0
      %251 = vmatpush1.bf16.msra.mxu0 0
      %252 = vmatprep.subr.bf16.mxu0 0
      %253 = vmatpush1.bf16.msra.mxu0 0
      %254 = vmatprep.subr.bf16.mxu0 0
      %255 = vmatpush1.bf16.msra.mxu0 0
      %256 = vmatprep.subr.bf16.mxu0 0
      %257 = vmatpush1.bf16.msra.mxu0 %v236
      %258 = vmatprep.subr.bf16.mxu0 0
      %259 = vmatpush1.bf16.msra.mxu0 %v235
      %260 = vmatprep.subr.bf16.mxu0 0
      %261 = vmatpush1.bf16.msra.mxu0 %v234
      %262 = vmatprep.subr.bf16.mxu0 0
      %263 = vmatpush1.bf16.msra.mxu0 %v233
      %264 = vmatprep.subr.bf16.mxu0 0
      %265 = vmatpush2.bf16.msra.mxu0 0
      %266 = vmatprep.subr.bf16.mxu0 0
      %267 = vmatpush2.bf16.msra.mxu0 0
      %268 = vmatprep.subr.bf16.mxu0 0
      %269 = vmatpush2.bf16.msra.mxu0 0
      %270 = vmatprep.subr.bf16.mxu0 0
      %271 = vmatpush2.bf16.msra.mxu0 0
      %272 = vmatprep.subr.bf16.mxu0 0
      %273 = vmatpush2.bf16.msra.mxu0 0
      %274 = vmatprep.subr.bf16.mxu0 0
      %275 = vmatpush2.bf16.msra.mxu0 0
      %276 = vmatprep.subr.bf16.mxu0 0
      %277 = vmatpush2.bf16.msra.mxu0 0
      %278 = vmatprep.subr.bf16.mxu0 0
      %279 = vmatpush2.bf16.msra.mxu0 0
      %280 = vmatprep.mubr.bf16.mxu0 0
      %281 = vmatmul.mubr.bf16.gmra.mxu0 %v243
      %v282 = vpop.f32.mrf.mxu0
      %v283 = vadd.f32 0.0, %v282
      %v284 = vpop.f32.mrf.mxu0
      %v285 = vpop.f32.mrf.mxu0
      %v286 = vadd.f32 0.0, %v285
      %v287 = vpop.f32.mrf.mxu0
      %288 = vmatprep.mubr.bf16.mxu0 0
      %289 = vmatmul.mubr.bf16.gmra.mxu0 %v246
      %v290 = vpop.f32.mrf.mxu0
      %v291 = vadd.f32 0.0, %v290
      %v292 = vpop.f32.mrf.mxu0
      %v293 = vpop.f32.mrf.mxu0
      %v294 = vpop.f32.mrf.mxu0
      %295 = vdwg.mxu0
      %v297 = vunpack.c.l.b16 %v174
      %v298 = vpack.c.b16 %v297, %v297
      %v307 = vunpack.c.l.b16 %v175
      %v308 = vunpack.c.l.b16 %v176
      %v309 = vunpack.c.l.b16 %v177
      %v310 = vunpack.c.l.b16 %v178
      %v311 = vunpack.c.l.b16 %v179
      %v312 = vunpack.c.l.b16 %v180
      %v313 = vunpack.c.l.b16 %v181
      %v314 = vunpack.c.l.b16 %v182
      %v315 = vpack.c.b16 %v308, %v307
      %v316 = vpack.c.b16 %v310, %v309
      %v317 = vpack.c.b16 %v312, %v311
      %v318 = vpack.c.b16 %v314, %v313
      %v323 = vsel %vm241, %v199, 0
      %v326 = vsel %vm241, %v298, 0
      %328 = vmatprep.subr.bf16.mxu0 0
      %329 = vmatpush1.bf16.msra.mxu0 0
      %330 = vmatprep.subr.bf16.mxu0 0
      %331 = vmatpush1.bf16.msra.mxu0 0
      %332 = vmatprep.subr.bf16.mxu0 0
      %333 = vmatpush1.bf16.msra.mxu0 0
      %334 = vmatprep.subr.bf16.mxu0 0
      %335 = vmatpush1.bf16.msra.mxu0 0
      %336 = vmatprep.subr.bf16.mxu0 0
      %337 = vmatpush1.bf16.msra.mxu0 %v318
      %338 = vmatprep.subr.bf16.mxu0 0
      %339 = vmatpush1.bf16.msra.mxu0 %v317
      %340 = vmatprep.subr.bf16.mxu0 0
      %341 = vmatpush1.bf16.msra.mxu0 %v316
      %342 = vmatprep.subr.bf16.mxu0 0
      %343 = vmatpush1.bf16.msra.mxu0 %v315
      %344 = vmatprep.subr.bf16.mxu0 0
      %345 = vmatpush2.bf16.msra.mxu0 0
      %346 = vmatprep.subr.bf16.mxu0 0
      %347 = vmatpush2.bf16.msra.mxu0 0
      %348 = vmatprep.subr.bf16.mxu0 0
      %349 = vmatpush2.bf16.msra.mxu0 0
      %350 = vmatprep.subr.bf16.mxu0 0
      %351 = vmatpush2.bf16.msra.mxu0 0
      %352 = vmatprep.subr.bf16.mxu0 0
      %353 = vmatpush2.bf16.msra.mxu0 0
      %354 = vmatprep.subr.bf16.mxu0 0
      %355 = vmatpush2.bf16.msra.mxu0 0
      %356 = vmatprep.subr.bf16.mxu0 0
      %357 = vmatpush2.bf16.msra.mxu0 0
      %358 = vmatprep.subr.bf16.mxu0 0
      %359 = vmatpush2.bf16.msra.mxu0 0
      %360 = vmatprep.mubr.bf16.mxu0 0
      %361 = vmatmul.mubr.bf16.gmra.mxu0 %v323
      %v362 = vpop.f32.mrf.mxu0
      %v363 = vadd.f32 %v283, %v362
      %v364 = vpop.f32.mrf.mxu0
      %v365 = vpop.f32.mrf.mxu0
      %v366 = vadd.f32 %v286, %v365
      %v367 = vpop.f32.mrf.mxu0
      %368 = vmatprep.mubr.bf16.mxu0 0
      %369 = vmatmul.mubr.bf16.gmra.mxu0 %v326
      %v370 = vpop.f32.mrf.mxu0
      %v371 = vadd.f32 %v291, %v370
      %v372 = vpop.f32.mrf.mxu0
      %v373 = vpop.f32.mrf.mxu0
      %v374 = vpop.f32.mrf.mxu0
      %375 = vdwg.mxu0
      %v376 = vld [vmem:[%s165] sm:$0xc]
      %v377 = vld [vmem:[%s165 + $0x4] sm:$0xf]
      %v378 = vld [vmem:[%s165 + $0x8] sm:$0xf]
      %v379 = vld [vmem:[%s165 + $0xc] sm:$0x1]
      %s380 = scalar_lea.vmem %s1, 64
      %v381 = vld [vmem:[%s380] sm:$0xf]
      %v382 = vld [vmem:[%s380 + $0x4] sm:$0xf]
      %v383 = vld [vmem:[%s380 + $0x8] sm:$0xf]
      %v384 = vld [vmem:[%s380 + $0xc] sm:$0xf]
      %v385 = vld [vmem:[%s380 + $0x10] sm:$0xf]
      %v386 = vld [vmem:[%s380 + $0x14] sm:$0xf]
      %v387 = vld [vmem:[%s380 + $0x18] sm:$0xf]
      %v388 = vld [vmem:[%s380 + $0x1c] sm:$0xf]
      %v393 = vunpack.c.l.b16 %v376
      %v394 = vunpack.c.l.b16 %v377
      %v395 = vunpack.c.l.b16 %v378
      %v396 = vunpack.c.l.b16 %v379
      %v397 = vpack.c.b16 %v394, %v393
      %v398 = vpack.c.b16 %v396, %v395
      %vm399 = vsmask.f32 5376
      %v401 = vshrl.u32 %v397, 16
      %v403 = vrot.slane %v401, 2
      %v404 = vshll.u32 %v397, 16
      %v406 = vrot.slane %v404, 3
      %v407 = vor.u32 %v403, %v406
      %v409 = vshrl.u32 %v398, 16
      %v411 = vrot.slane %v409, 2
      %v412 = vshll.u32 %v398, 16
      %v414 = vrot.slane %v412, 3
      %v415 = vor.u32 %v411, %v414
      %v416 = vsel %vm399, %v407, %v415
      %v425 = vunpack.c.l.b16 %v381
      %v426 = vunpack.c.l.b16 %v382
      %v427 = vunpack.c.l.b16 %v383
      %v428 = vunpack.c.l.b16 %v384
      %v429 = vunpack.c.l.b16 %v385
      %v430 = vunpack.c.l.b16 %v386
      %v431 = vunpack.c.l.b16 %v387
      %v432 = vunpack.c.l.b16 %v388
      %v433 = vpack.c.b16 %v426, %v425
      %v434 = vpack.c.b16 %v428, %v427
      %v435 = vpack.c.b16 %v430, %v429
      %v436 = vpack.c.b16 %v432, %v431
      %v442 = vsel %vm241, %v416, 0
      %v445 = vsel %vm241, %v415, 0
      %447 = vmatprep.subr.bf16.mxu0 0
      %448 = vmatpush1.bf16.msra.mxu0 0
      %449 = vmatprep.subr.bf16.mxu0 0
      %450 = vmatpush1.bf16.msra.mxu0 0
      %451 = vmatprep.subr.bf16.mxu0 0
      %452 = vmatpush1.bf16.msra.mxu0 0
      %453 = vmatprep.subr.bf16.mxu0 0
      %454 = vmatpush1.bf16.msra.mxu0 0
      %455 = vmatprep.subr.bf16.mxu0 0
      %456 = vmatpush1.bf16.msra.mxu0 %v436
      %457 = vmatprep.subr.bf16.mxu0 0
      %458 = vmatpush1.bf16.msra.mxu0 %v435
      %459 = vmatprep.subr.bf16.mxu0 0
      %460 = vmatpush1.bf16.msra.mxu0 %v434
      %461 = vmatprep.subr.bf16.mxu0 0
      %462 = vmatpush1.bf16.msra.mxu0 %v433
      %463 = vmatprep.subr.bf16.mxu0 0
      %464 = vmatpush2.bf16.msra.mxu0 0
      %465 = vmatprep.subr.bf16.mxu0 0
      %466 = vmatpush2.bf16.msra.mxu0 0
      %467 = vmatprep.subr.bf16.mxu0 0
      %468 = vmatpush2.bf16.msra.mxu0 0
      %469 = vmatprep.subr.bf16.mxu0 0
      %470 = vmatpush2.bf16.msra.mxu0 0
      %471 = vmatprep.subr.bf16.mxu0 0
      %472 = vmatpush2.bf16.msra.mxu0 0
      %473 = vmatprep.subr.bf16.mxu0 0
      %474 = vmatpush2.bf16.msra.mxu0 0
      %475 = vmatprep.subr.bf16.mxu0 0
      %476 = vmatpush2.bf16.msra.mxu0 0
      %477 = vmatprep.subr.bf16.mxu0 0
      %478 = vmatpush2.bf16.msra.mxu0 0
      %479 = vmatprep.mubr.bf16.mxu0 0
      %480 = vmatmul.mubr.bf16.gmra.mxu0 %v442
      %v481 = vpop.f32.mrf.mxu0
      %v482 = vadd.f32 0.0, %v481
      %v483 = vpop.f32.mrf.mxu0
      %v484 = vpop.f32.mrf.mxu0
      %v485 = vadd.f32 0.0, %v484
      %v486 = vpop.f32.mrf.mxu0
      %487 = vmatprep.mubr.bf16.mxu0 0
      %488 = vmatmul.mubr.bf16.gmra.mxu0 %v445
      %v489 = vpop.f32.mrf.mxu0
      %v490 = vadd.f32 0.0, %v489
      %v491 = vpop.f32.mrf.mxu0
      %v492 = vpop.f32.mrf.mxu0
      %v493 = vpop.f32.mrf.mxu0
      %494 = vdwg.mxu0
      %v495 = vadd.f32 %v363, %v482
      %v496 = vadd.f32 %v366, %v485
      %v497 = vadd.f32 %v371, %v490
      %v498 = vld [vmem:[%s165] sm:$0x8]
      %s499 = scalar_lea.vmem %s1, 96
      %v500 = vld [vmem:[%s499] sm:$0xf]
      %v501 = vld [vmem:[%s499 + $0x4] sm:$0xf]
      %v502 = vld [vmem:[%s499 + $0x8] sm:$0xf]
      %v503 = vld [vmem:[%s499 + $0xc] sm:$0xf]
      %v504 = vld [vmem:[%s499 + $0x10] sm:$0xf]
      %v505 = vld [vmem:[%s499 + $0x14] sm:$0xf]
      %v506 = vld [vmem:[%s499 + $0x18] sm:$0xf]
      %v507 = vld [vmem:[%s499 + $0x1c] sm:$0xf]
      %v509 = vunpack.c.l.b16 %v498
      %v510 = vpack.c.b16 %v394, %v509
      %vm511 = vcmask 1044480
      %v512 = vrot.slane %v510, 3
      %v513 = vrot.slane %v398, 3
      %v514 = vsel %vm511, %v512, %v513
      %v523 = vunpack.c.l.b16 %v500
      %v524 = vunpack.c.l.b16 %v501
      %v525 = vunpack.c.l.b16 %v502
      %v526 = vunpack.c.l.b16 %v503
      %v527 = vunpack.c.l.b16 %v504
      %v528 = vunpack.c.l.b16 %v505
      %v529 = vunpack.c.l.b16 %v506
      %v530 = vunpack.c.l.b16 %v507
      %v531 = vpack.c.b16 %v524, %v523
      %v532 = vpack.c.b16 %v526, %v525
      %v533 = vpack.c.b16 %v528, %v527
      %v534 = vpack.c.b16 %v530, %v529
      %v540 = vsel %vm241, %v514, 0
      %v543 = vsel %vm241, %v513, 0
      %545 = vmatprep.subr.bf16.mxu0 0
      %546 = vmatpush1.bf16.msra.mxu0 0
      %547 = vmatprep.subr.bf16.mxu0 0
      %548 = vmatpush1.bf16.msra.mxu0 0
      %549 = vmatprep.subr.bf16.mxu0 0
      %550 = vmatpush1.bf16.msra.mxu0 0
      %551 = vmatprep.subr.bf16.mxu0 0
      %552 = vmatpush1.bf16.msra.mxu0 0
      %553 = vmatprep.subr.bf16.mxu0 0
      %554 = vmatpush1.bf16.msra.mxu0 %v534
      %555 = vmatprep.subr.bf16.mxu0 0
      %556 = vmatpush1.bf16.msra.mxu0 %v533
      %557 = vmatprep.subr.bf16.mxu0 0
      %558 = vmatpush1.bf16.msra.mxu0 %v532
      %559 = vmatprep.subr.bf16.mxu0 0
      %560 = vmatpush1.bf16.msra.mxu0 %v531
      %561 = vmatprep.subr.bf16.mxu0 0
      %562 = vmatpush2.bf16.msra.mxu0 0
      %563 = vmatprep.subr.bf16.mxu0 0
      %564 = vmatpush2.bf16.msra.mxu0 0
      %565 = vmatprep.subr.bf16.mxu0 0
      %566 = vmatpush2.bf16.msra.mxu0 0
      %567 = vmatprep.subr.bf16.mxu0 0
      %568 = vmatpush2.bf16.msra.mxu0 0
      %569 = vmatprep.subr.bf16.mxu0 0
      %570 = vmatpush2.bf16.msra.mxu0 0
      %571 = vmatprep.subr.bf16.mxu0 0
      %572 = vmatpush2.bf16.msra.mxu0 0
      %573 = vmatprep.subr.bf16.mxu0 0
      %574 = vmatpush2.bf16.msra.mxu0 0
      %575 = vmatprep.subr.bf16.mxu0 0
      %576 = vmatpush2.bf16.msra.mxu0 0
      %577 = vmatprep.mubr.bf16.mxu0 0
      %578 = vmatmul.mubr.bf16.gmra.mxu0 %v540
      %v579 = vpop.f32.mrf.mxu0
      %v580 = vadd.f32 0.0, %v579
      %v581 = vpop.f32.mrf.mxu0
      %v582 = vpop.f32.mrf.mxu0
      %v583 = vadd.f32 0.0, %v582
      %v584 = vpop.f32.mrf.mxu0
      %585 = vmatprep.mubr.bf16.mxu0 0
      %586 = vmatmul.mubr.bf16.gmra.mxu0 %v543
      %v587 = vpop.f32.mrf.mxu0
      %v588 = vadd.f32 0.0, %v587
      %v589 = vpop.f32.mrf.mxu0
      %v590 = vpop.f32.mrf.mxu0
      %v591 = vpop.f32.mrf.mxu0
      %592 = vdwg.mxu0
      %v593 = vadd.f32 %v495, %v580
      %v594 = vadd.f32 %v496, %v583
      %v595 = vadd.f32 %v497, %v588
      %v596 = vld [vmem:[%s2] sm:$0x7]
      %v597 = vlaneseq
      %v598 = vshrl.u32 %v597, 7
      %v599 = vsub.s32 0, %v598
      %v600 = vrot.slane %v596, %v599
      %v601 = vadd.f32 %v593, %v600
      %v602 = vadd.f32 %v594, %v600
      %v603 = vadd.f32 %v595, %v600
      %vm604 = vcmp.ge.f32.partialorder %v601, 0.0
      %vm605 = vcmp.ge.f32.partialorder %v602, 0.0
      %vm606 = vcmp.ge.f32.partialorder %v603, 0.0
      %v607 = vmul.f32 %v601, 0.2
      %v608 = vmul.f32 %v602, 0.2
      %v609 = vmul.f32 %v603, 0.2
      %v610 = vsel %vm604, %v601, %v607
      %v611 = vsel %vm605, %v602, %v608
      %v612 = vsel %vm606, %v603, %v609
      %v613 = vlaneseq
      %v614 = vshrl.u32 %v613, 7
      %v615 = vsub.s32 1, %v614
      %v616 = vrot.slane %v596, %v615
      %v617 = vmul.f32 %v610, %v616
      %v618 = vmul.f32 %v611, %v616
      %v619 = vmul.f32 %v612, %v616
      %v620 = vlaneseq
      %v621 = vshrl.u32 %v620, 7
      %v622 = vsub.s32 2, %v621
      %v623 = vrot.slane %v596, %v622
      %v624 = vadd.f32 %v617, %v623
      %v625 = vadd.f32 %v618, %v623
      %v626 = vadd.f32 %v619, %v623
      %v627 = vpack.c.bf16 %v625, %v624
      %v628 = vpack.c.bf16 %v626, %v626
      %v631 = vunpack.c.l.b16 %v627
      %v632 = vunpack.c.h.b16 %v627
      %v633 = vunpack.c.l.b16 %v628
      %v634 = vpack.c.b16 %v631, %v631
      %v635 = vpack.c.b16 %v632, %v632
      %v636 = vpack.c.b16 %v633, %v633
      %vm640 = vcmask 257024
      %641 = vst.msk [vmem:[%s170] sm:$0xf] %vm640, %v634
      %642 = vst.msk [vmem:[%s170 + $0x4] sm:$0xf] %vm640, %v635
      %vm643 = vcmask 254976
      %644 = vst.msk [vmem:[%s170 + $0x8] sm:$0x3] %vm643, %v636
      %p645 = scmp.lt.s32.totalorder %s14, 1
      %s646 = scalar_select %p645, %s14, 1
      %s647 = smul.addr %s646, 3
      %s648 = smul.addr %s647, 4
      %s649 = scalar_lea.vmem %s3, %s648
      // Predicated region
      $region33: #{discriminator_forward.6} parent=31 // pred_check
        %p650 = pneg %p100
      $region34: #{discriminator_forward.6} parent=31 // pred_check_branch
        %652 = sbr.rel (%p650) target = $region36
      $region35: #{discriminator_forward.6} parent=31 // pred_region
        _
      $region36: #{discriminator_forward.6} parent=31 // pred_fallthru
        _
    $region32: #{discriminator_forward.6} parent=5 // pred_fallthru
      _
    %p653 = scmp.le.s32.totalorder 2, %s9
    // Predicated region
    $region37: #{discriminator_forward.6} parent=5 // pred_check
      %p654 = pneg %p653
    $region38: #{discriminator_forward.6} parent=5 // pred_check_branch
      %656 = sbr.rel (%p654) target = $region40
    $region39: #{discriminator_forward.6} parent=5 // pred_region
      %s657 = ssub.s32 %s9, 2
      // Predicated region
      $region41: #{discriminator_forward.6} parent=39 // pred_check
        %p658 = pneg %p106
      $region42: #{discriminator_forward.6} parent=39 // pred_check_branch
        %660 = sbr.rel (%p658) target = $region44
      $region43: #{discriminator_forward.6} parent=39 // pred_region
        %p661 = scmp.lt.s32.totalorder %s15, 1
        %s662 = scalar_select %p661, %s15, 1
        %s663 = smul.addr %s662, 3
        %s664 = smul.addr %s663, 4
        %s665 = scalar_lea.vmem %s3, %s664
      $region44: #{discriminator_forward.6} parent=39 // pred_fallthru
        _
    $region40: #{discriminator_forward.6} parent=5 // pred_fallthru
      _
  $region6: #{discriminator_forward.6} parent=0 // loop_footer
    %s13 = sadd.s32 1, %s9
  $region7: #{discriminator_forward.6} parent=0 // loop_footer_branch
    %8 = sbr.rel target = $region3
  $region8: #{discriminator_forward.6} parent=0 // loop_exit
    _

// kernel: discriminator_forward.7
$region0: #{discriminator_forward.7}
  #allocation0 [shape = 'u32[]', space=smem, size = 0x4, offset = 0x4, fixed_abs, tag = 'smem constant byte address 0x4 - core index']
  #allocation1 [shape = 'u32[144,128]{1,0:T(1,128)}', space=vmem, size = 0x12000, scoped, tag = 'internal scratch']
  %s0 = inlined_call_operand.vmem [shape: bf16[2,10,128], index: 0, kind: input, shape index: {}]
  %s1 = inlined_call_operand.vmem [shape: bf16[4,128,64], index: 1, kind: input, shape index: {}]
  %s2 = inlined_call_operand.vmem [shape: f32[3,64], index: 2, kind: input, shape index: {}]
  %s3 = inlined_call_operand.vmem [shape: bf16[2,6,64], index: 3, kind: output, shape index: {}]
  %s4 = sld [smem:[#allocation0]]
  $region45: #{discriminator_forward.7} parent=0
    _
  %s6 = ssub.s32 1, %s4
  %s7 = scalar_select 0, %s6, %s4
  loop: start=0, step=1, limit=4
  $region2: #{discriminator_forward.7} parent=0 // loop_pre_header
    _
  $region3: #{discriminator_forward.7} parent=0 // loop_header
    %s9 = sphi 0, %s13
    %p10 = scmp.ge.s32.totalorder %s9, 4
    %s19 = sphi 0, %s21
    %s22 = sphi 0, %s19
    %s23 = sphi 0, %s22
    %s39 = sphi 0, %s23
    %s43 = sphi 0, %s43
    %s45 = sphi 0, %s43
    %s46 = sphi 0, %s45
    %s60 = sphi 0, %s46
    %s64 = sphi 0, %s64
    %s66 = sphi 0, %s64
    %s67 = sphi 0, %s66
    %s81 = sphi 0, %s67
    %s87 = sphi 0, %s89
    %s90 = sphi 0, %s87
    %s91 = sphi 0, %s90
    %s107 = sphi 0, %s91
  $region4: #{discriminator_forward.7} parent=0 // loop_header_branch
    %12 = sbr.rel (%p10) target = $region8
  $region5: #{discriminator_forward.7} parent=0 // loop_body
    %s14 = ssub.s32 %s9, 1
    %s15 = ssub.s32 %s9, 2
    %s16 = sadd.s32 %s9, 1
    %s17 = ssub.s32 %s9, %s16
    %p18 = scmp.eq.s32.totalorder %s17, 0
    %s20 = sadd.s32 %s19, 1
    %s21 = scalar_select %p18, %s19, %s20
    %p24 = pneg %p18
    %p25 = scmp.eq.s32.totalorder %s9, 1
    %p26 = por %p24, %p25
    %p27 = scmp.ne.s32.totalorder %s19, %s22
    %p28 = scmp.eq.s32.totalorder %s9, 0
    %p29 = por %p27, %p28
    %p30 = scmp.ne.s32.totalorder %s19, %s22
    %p31 = scmp.eq.s32.totalorder %s14, 1
    %p32 = por %p30, %p31
    %p33 = scmp.ne.s32.totalorder %s22, %s23
    %p34 = scmp.eq.s32.totalorder %s14, 0
    %p35 = por %p33, %p34
    %p36 = scmp.ne.s32.totalorder %s22, %s23
    %p37 = scmp.eq.s32.totalorder %s15, 1
    %p38 = por %p36, %p37
    %p40 = scmp.ne.s32.totalorder %s23, %s39
    %p41 = scmp.eq.s32.totalorder %s15, 0
    %p42 = por %p40, %p41
    %s44 = sadd.s32 %s43, 1
    %p47 = scmp.eq.s32.totalorder %s9, 1
    %p48 = scmp.ne.s32.totalorder %s43, %s45
    %p49 = scmp.eq.s32.totalorder %s9, 0
    %p50 = por %p48, %p49
    %p51 = scmp.ne.s32.totalorder %s43, %s45
    %p52 = scmp.eq.s32.totalorder %s14, 1
    %p53 = por %p51, %p52
    %p54 = scmp.ne.s32.totalorder %s45, %s46
    %p55 = scmp.eq.s32.totalorder %s14, 0
    %p56 = por %p54, %p55
    %p57 = scmp.ne.s32.totalorder %s45, %s46
    %p58 = scmp.eq.s32.totalorder %s15, 1
    %p59 = por %p57, %p58
    %p61 = scmp.ne.s32.totalorder %s46, %s60
    %p62 = scmp.eq.s32.totalorder %s15, 0
    %p63 = por %p61, %p62
    %s65 = sadd.s32 %s64, 1
    %p68 = scmp.eq.s32.totalorder %s9, 1
    %p69 = scmp.ne.s32.totalorder %s64, %s66
    %p70 = scmp.eq.s32.totalorder %s9, 0
    %p71 = por %p69, %p70
    %p72 = scmp.ne.s32.totalorder %s64, %s66
    %p73 = scmp.eq.s32.totalorder %s14, 1
    %p74 = por %p72, %p73
    %p75 = scmp.ne.s32.totalorder %s66, %s67
    %p76 = scmp.eq.s32.totalorder %s14, 0
    %p77 = por %p75, %p76
    %p78 = scmp.ne.s32.totalorder %s66, %s67
    %p79 = scmp.eq.s32.totalorder %s15, 1
    %p80 = por %p78, %p79
    %p82 = scmp.ne.s32.totalorder %s67, %s81
    %p83 = scmp.eq.s32.totalorder %s15, 0
    %p84 = por %p82, %p83
    %s85 = ssub.s32 %s9, %s16
    %p86 = scmp.eq.s32.totalorder %s85, 0
    %s88 = sadd.s32 %s87, 1
    %s89 = scalar_select %p86, %s87, %s88
    %p92 = pneg %p86
    %p93 = scmp.eq.s32.totalorder %s9, 1
    %p94 = por %p92, %p93
    %p95 = scmp.ne.s32.totalorder %s87, %s90
    %p96 = scmp.eq.s32.totalorder %s9, 0
    %p97 = por %p95, %p96
    %p98 = scmp.ne.s32.totalorder %s87, %s90
    %p99 = scmp.eq.s32.totalorder %s14, 1
    %p100 = por %p98, %p99
    %p101 = scmp.ne.s32.totalorder %s90, %s91
    %p102 = scmp.eq.s32.totalorder %s14, 0
    %p103 = por %p101, %p102
    %p104 = scmp.ne.s32.totalorder %s90, %s91
    %p105 = scmp.eq.s32.totalorder %s15, 1
    %p106 = por %p104, %p105
    %p108 = scmp.ne.s32.totalorder %s91, %s107
    %p109 = scmp.eq.s32.totalorder %s15, 0
    %p110 = por %p108, %p109
    %p111 = scmp.le.s32.totalorder 1, %s9
    %p112 = scmp.lt.s32.totalorder %s9, 3
    %p113 = pnand %p111, %p112
    %p114 = pneg %p113
    // Predicated region
    $region9: #{discriminator_forward.7} parent=5 // pred_check
      _
    $region10: #{discriminator_forward.7} parent=5 // pred_check_branch
      %116 = sbr.rel (%p113) target = $region12
    $region11: #{discriminator_forward.7} parent=5 // pred_region
      %s117 = ssub.s32 %s9, 1
      // Predicated region
      $region13: #{discriminator_forward.7} parent=11 // pred_check
        %p118 = pneg %p56
      $region14: #{discriminator_forward.7} parent=11 // pred_check_branch
        %120 = sbr.rel (%p118) target = $region16
      $region15: #{discriminator_forward.7} parent=11 // pred_region
        _
      $region16: #{discriminator_forward.7} parent=11 // pred_fallthru
        _
      // Predicated region
      $region17: #{discriminator_forward.7} parent=11 // pred_check
        %p121 = pneg %p77
      $region18: #{discriminator_forward.7} parent=11 // pred_check_branch
        %123 = sbr.rel (%p121) target = $region20
      $region19: #{discriminator_forward.7} parent=11 // pred_region
        _
      $region20: #{discriminator_forward.7} parent=11 // pred_fallthru
        _
    $region12: #{discriminator_forward.7} parent=5 // pred_fallthru
      _
    %p124 = scmp.lt.s32.totalorder %s9, 2
    // Predicated region
    $region21: #{discriminator_forward.7} parent=5 // pred_check
      %p125 = pneg %p124
    $region22: #{discriminator_forward.7} parent=5 // pred_check_branch
      %127 = sbr.rel (%p125) target = $region24
    $region23: #{discriminator_forward.7} parent=5 // pred_region
      // Predicated region
      $region25: #{discriminator_forward.7} parent=23 // pred_check
        %p128 = pneg %p29
      $region26: #{discriminator_forward.7} parent=23 // pred_check_branch
        %130 = sbr.rel (%p128) target = $region28
      $region27: #{discriminator_forward.7} parent=23 // pred_region
        %p131 = scmp.lt.s32.totalorder %s9, 1
        %s132 = scalar_select %p131, %s9, 1
        %s133 = smul.addr %s132, 2
        %s134 = smul.addr %s133, 4
        %s135 = scalar_lea.vmem %s0, %s134
      $region28: #{discriminator_forward.7} parent=23 // pred_fallthru
        _
    $region24: #{discriminator_forward.7} parent=5 // pred_fallthru
      _
    %p136 = scmp.le.s32.totalorder 1, %s9
    %p137 = scmp.lt.s32.totalorder %s9, 3
    %p138 = pnand %p136, %p137
    %p139 = pneg %p138
    // Predicated region
    $region29: #{discriminator_forward.7} parent=5 // pred_check
      _
    $region30: #{discriminator_forward.7} parent=5 // pred_check_branch
      %141 = sbr.rel (%p138) target = $region32
    $region31: #{discriminator_forward.7} parent=5 // pred_region
      %s142 = ssub.s32 %s9, 1
      %p143 = scmp.lt.s32.totalorder %s14, 1
      %s144 = scalar_select %p143, %s14, 1
      %s145 = smul.addr %s144, 2
      %s146 = smul.addr %s145, 4
      %s147 = scalar_lea.vmem %s0, %s146
      %p148 = pneg %p35
      %p149 = pneg %p32
      %p150 = pneg %p56
      %p151 = pneg %p53
      %p152 = pneg %p77
      %p153 = pneg %p74
      %p154 = pneg %p103
      %p155 = pneg %p100
      %p156 = scmp.lt.s32.totalorder %s14, 1
      %s157 = scalar_select %p156, %s14, 1
      %s158 = smul.addr %s157, 4
      %s159 = scalar_lea.vmem %s3, %s158
      %p160 = scmp.lt.s32.totalorder %s14, 1
      %s161 = scalar_select %p160, %s14, 1
      %s162 = smul.addr %s161, 2
      %s163 = smul.addr %s162, 4
      %s164 = scalar_lea.vmem %s0, %s163
      %p165 = scmp.lt.s32.totalorder %s14, 1
      %s166 = scalar_select %p165, %s14, 1
      %s167 = smul.addr %s166, 4
      %s168 = scalar_lea.vmem %s3, %s167
      %v170 = vld [vmem:[%s164] sm:$0x7]
      %v171 = vld [vmem:[%s1] sm:$0xf]
      %v172 = vld [vmem:[%s1 + $0x4] sm:$0xf]
      %v173 = vld [vmem:[%s1 + $0x8] sm:$0xf]
      %v174 = vld [vmem:[%s1 + $0xc] sm:$0xf]
      %v175 = vld [vmem:[%s1 + $0x10] sm:$0xf]
      %v176 = vld [vmem:[%s1 + $0x14] sm:$0xf]
      %v177 = vld [vmem:[%s1 + $0x18] sm:$0xf]
      %v178 = vld [vmem:[%s1 + $0x1c] sm:$0xf]
      %v179 = vld [vmem:[%s1 + $0x20] sm:$0xf]
      %v180 = vld [vmem:[%s1 + $0x24] sm:$0xf]
      %v181 = vld [vmem:[%s1 + $0x28] sm:$0xf]
      %v182 = vld [vmem:[%s1 + $0x2c] sm:$0xf]
      %v183 = vld [vmem:[%s1 + $0x30] sm:$0xf]
      %v184 = vld [vmem:[%s1 + $0x34] sm:$0xf]
      %v185 = vld [vmem:[%s1 + $0x38] sm:$0xf]
      %v186 = vld [vmem:[%s1 + $0x3c] sm:$0xf]
      %v187 = vld [vmem:[%s164] sm:$0xf]
      %s188 = scalar_lea.vmem %s1, 64
      %v189 = vld [vmem:[%s188] sm:$0xf]
      %v190 = vld [vmem:[%s188 + $0x4] sm:$0xf]
      %v191 = vld [vmem:[%s188 + $0x8] sm:$0xf]
      %v192 = vld [vmem:[%s188 + $0xc] sm:$0xf]
      %v193 = vld [vmem:[%s188 + $0x10] sm:$0xf]
      %v194 = vld [vmem:[%s188 + $0x14] sm:$0xf]
      %v195 = vld [vmem:[%s188 + $0x18] sm:$0xf]
      %v196 = vld [vmem:[%s188 + $0x1c] sm:$0xf]
      %v197 = vld [vmem:[%s188 + $0x20] sm:$0xf]
      %v198 = vld [vmem:[%s188 + $0x24] sm:$0xf]
      %v199 = vld [vmem:[%s188 + $0x28] sm:$0xf]
      %v200 = vld [vmem:[%s188 + $0x2c] sm:$0xf]
      %v201 = vld [vmem:[%s188 + $0x30] sm:$0xf]
      %v202 = vld [vmem:[%s188 + $0x34] sm:$0xf]
      %v203 = vld [vmem:[%s188 + $0x38] sm:$0xf]
      %v204 = vld [vmem:[%s188 + $0x3c] sm:$0xf]
      %v206 = vunpack.c.l.b16 %v187
      %v207 = vpack.c.b16 %v206, %v206
      %v209 = vshrl.u32 %v207, 16
      %v211 = vshll.u32 %v207, 16
      %v213 = vrot.slane %v211, 1
      %v214 = vor.u32 %v209, %v213
      %v232 = vunpack.c.l.b16 %v189
      %v233 = vunpack.c.l.b16 %v190
      %v234 = vunpack.c.l.b16 %v191
      %v235 = vunpack.c.l.b16 %v192
      %v236 = vunpack.c.l.b16 %v193
      %v237 = vunpack.c.l.b16 %v194
      %v238 = vunpack.c.l.b16 %v195
      %v239 = vunpack.c.l.b16 %v196
      %v240 = vunpack.c.l.b16 %v197
      %v241 = vunpack.c.l.b16 %v198
      %v242 = vunpack.c.l.b16 %v199
      %v243 = vunpack.c.l.b16 %v200
      %v244 = vunpack.c.l.b16 %v201
      %v245 = vunpack.c.l.b16 %v202
      %v246 = vunpack.c.l.b16 %v203
      %v247 = vunpack.c.l.b16 %v204
      %v248 = vpack.c.b16 %v233, %v232
      %v249 = vpack.c.b16 %v235, %v234
      %v250 = vpack.c.b16 %v237, %v236
      %v251 = vpack.c.b16 %v239, %v238
      %v252 = vpack.c.b16 %v241, %v240
      %v253 = vpack.c.b16 %v243, %v242
      %v254 = vpack.c.b16 %v245, %v244
      %v255 = vpack.c.b16 %v247, %v246
      %264 = vmatprep.subr.bf16.mxu0 0
      %265 = vmatpush1.bf16.msra.mxu0 %v255
      %266 = vmatprep.subr.bf16.mxu0 0
      %267 = vmatpush1.bf16.msra.mxu0 %v254
      %268 = vmatprep.subr.bf16.mxu0 0
      %269 = vmatpush1.bf16.msra.mxu0 %v253
      %270 = vmatprep.subr.bf16.mxu0 0
      %271 = vmatpush1.bf16.msra.mxu0 %v252
      %272 = vmatprep.subr.bf16.mxu0 0
      %273 = vmatpush1.bf16.msra.mxu0 %v251
      %274 = vmatprep.subr.bf16.mxu0 0
      %275 = vmatpush1.bf16.msra.mxu0 %v250
      %276 = vmatprep.subr.bf16.mxu0 0
      %277 = vmatpush1.bf16.msra.mxu0 %v249
      %278 = vmatprep.subr.bf16.mxu0 0
      %279 = vmatpush1.bf16.msra.mxu0 %v248
      %280 = vmatprep.subr.bf16.mxu0 0
      %281 = vmatpush2.bf16.msra.mxu0 0
      %282 = vmatprep.subr.bf16.mxu0 0
      %283 = vmatpush2.bf16.msra.mxu0 0
      %284 = vmatprep.subr.bf16.mxu0 0
      %285 = vmatpush2.bf16.msra.mxu0 0
      %286 = vmatprep.subr.bf16.mxu0 0
      %287 = vmatpush2.bf16.msra.mxu0 0
      %288 = vmatprep.subr.bf16.mxu0 0
      %289 = vmatpush2.bf16.msra.mxu0 0
      %290 = vmatprep.subr.bf16.mxu0 0
      %291 = vmatpush2.bf16.msra.mxu0 0
      %292 = vmatprep.subr.bf16.mxu0 0
      %293 = vmatpush2.bf16.msra.mxu0 0
      %294 = vmatprep.subr.bf16.mxu0 0
      %295 = vmatpush2.bf16.msra.mxu0 0
      %296 = vmatprep.mubr.bf16.mxu0 0
      %297 = vmatmul.mubr.bf16.gmra.mxu0 %v214
      %v298 = vpop.f32.mrf.mxu0
      %v299 = vadd.f32 0.0, %v298
      %v300 = vpop.f32.mrf.mxu0
      %v301 = vpop.f32.mrf.mxu0
      %v302 = vpop.f32.mrf.mxu0
      %303 = vdwg.mxu0
      %v320 = vunpack.c.l.b16 %v171
      %v321 = vunpack.c.l.b16 %v172
      %v322 = vunpack.c.l.b16 %v173
      %v323 = vunpack.c.l.b16 %v174
      %v324 = vunpack.c.l.b16 %v175
      %v325 = vunpack.c.l.b16 %v176
      %v326 = vunpack.c.l.b16 %v177
      %v327 = vunpack.c.l.b16 %v178
      %v328 = vunpack.c.l.b16 %v179
      %v329 = vunpack.c.l.b16 %v180
      %v330 = vunpack.c.l.b16 %v181
      %v331 = vunpack.c.l.b16 %v182
      %v332 = vunpack.c.l.b16 %v183
      %v333 = vunpack.c.l.b16 %v184
      %v334 = vunpack.c.l.b16 %v185
      %v335 = vunpack.c.l.b16 %v186
      %v336 = vpack.c.b16 %v321, %v320
      %v337 = vpack.c.b16 %v323, %v322
      %v338 = vpack.c.b16 %v325, %v324
      %v339 = vpack.c.b16 %v327, %v326
      %v340 = vpack.c.b16 %v329, %v328
      %v341 = vpack.c.b16 %v331, %v330
      %v342 = vpack.c.b16 %v333, %v332
      %v343 = vpack.c.b16 %v335, %v334
      %352 = vmatprep.subr.bf16.mxu0 0
      %353 = vmatpush1.bf16.msra.mxu0 %v343
      %354 = vmatprep.subr.bf16.mxu0 0
      %355 = vmatpush1.bf16.msra.mxu0 %v342
      %356 = vmatprep.subr.bf16.mxu0 0
      %357 = vmatpush1.bf16.msra.mxu0 %v341
      %358 = vmatprep.subr.bf16.mxu0 0
      %359 = vmatpush1.bf16.msra.mxu0 %v340
      %360 = vmatprep.subr.bf16.mxu0 0
      %361 = vmatpush1.bf16.msra.mxu0 %v339
      %362 = vmatprep.subr.bf16.mxu0 0
      %363 = vmatpush1.bf16.msra.mxu0 %v338
      %364 = vmatprep.subr.bf16.mxu0 0
      %365 = vmatpush1.bf16.msra.mxu0 %v337
      %366 = vmatprep.subr.bf16.mxu0 0
      %367 = vmatpush1.bf16.msra.mxu0 %v336
      %368 = vmatprep.subr.bf16.mxu0 0
      %369 = vmatpush2.bf16.msra.mxu0 0
      %370 = vmatprep.subr.bf16.mxu0 0
      %371 = vmatpush2.bf16.msra.mxu0 0
      %372 = vmatprep.subr.bf16.mxu0 0
      %373 = vmatpush2.bf16.msra.mxu0 0
      %374 = vmatprep.subr.bf16.mxu0 0
      %375 = vmatpush2.bf16.msra.mxu0 0
      %376 = vmatprep.subr.bf16.mxu0 0
      %377 = vmatpush2.bf16.msra.mxu0 0
      %378 = vmatprep.subr.bf16.mxu0 0
      %379 = vmatpush2.bf16.msra.mxu0 0
      %380 = vmatprep.subr.bf16.mxu0 0
      %381 = vmatpush2.bf16.msra.mxu0 0
      %382 = vmatprep.subr.bf16.mxu0 0
      %383 = vmatpush2.bf16.msra.mxu0 0
      %384 = vmatprep.mubr.bf16.mxu0 0
      %385 = vmatmul.mubr.bf16.gmra.mxu0 %v170
      %v386 = vpop.f32.mrf.mxu0
      %v387 = vadd.f32 %v299, %v386
      %v388 = vpop.f32.mrf.mxu0
      %v389 = vpop.f32.mrf.mxu0
      %v390 = vpop.f32.mrf.mxu0
      %391 = vdwg.mxu0
      %v392 = vld [vmem:[%s164] sm:$0xe]
      %v393 = vld [vmem:[%s164 + $0x4] sm:$0x1]
      %s394 = scalar_lea.vmem %s1, 128
      %v395 = vld [vmem:[%s394] sm:$0xf]
      %v396 = vld [vmem:[%s394 + $0x4] sm:$0xf]
      %v397 = vld [vmem:[%s394 + $0x8] sm:$0xf]
      %v398 = vld [vmem:[%s394 + $0xc] sm:$0xf]
      %v399 = vld [vmem:[%s394 + $0x10] sm:$0xf]
      %v400 = vld [vmem:[%s394 + $0x14] sm:$0xf]
      %v401 = vld [vmem:[%s394 + $0x18] sm:$0xf]
      %v402 = vld [vmem:[%s394 + $0x1c] sm:$0xf]
      %v403 = vld [vmem:[%s394 + $0x20] sm:$0xf]
      %v404 = vld [vmem:[%s394 + $0x24] sm:$0xf]
      %v405 = vld [vmem:[%s394 + $0x28] sm:$0xf]
      %v406 = vld [vmem:[%s394 + $0x2c] sm:$0xf]
      %v407 = vld [vmem:[%s394 + $0x30] sm:$0xf]
      %v408 = vld [vmem:[%s394 + $0x34] sm:$0xf]
      %v409 = vld [vmem:[%s394 + $0x38] sm:$0xf]
      %v410 = vld [vmem:[%s394 + $0x3c] sm:$0xf]
      %v413 = vunpack.c.l.b16 %v392
      %v414 = vunpack.c.l.b16 %v393
      %v415 = vpack.c.b16 %v414, %v413
      %v417 = vshrl.u32 %v415, 16
      %v419 = vrot.slane %v417, 1
      %v420 = vshll.u32 %v415, 16
      %v422 = vrot.slane %v420, 2
      %v423 = vor.u32 %v419, %v422
      %v441 = vunpack.c.l.b16 %v395
      %v442 = vunpack.c.l.b16 %v396
      %v443 = vunpack.c.l.b16 %v397
      %v444 = vunpack.c.l.b16 %v398
      %v445 = vunpack.c.l.b16 %v399
      %v446 = vunpack.c.l.b16 %v400
      %v447 = vunpack.c.l.b16 %v401
      %v448 = vunpack.c.l.b16 %v402
      %v449 = vunpack.c.l.b16 %v403
      %v450 = vunpack.c.l.b16 %v404
      %v451 = vunpack.c.l.b16 %v405
      %v452 = vunpack.c.l.b16 %v406
      %v453 = vunpack.c.l.b16 %v407
      %v454 = vunpack.c.l.b16 %v408
      %v455 = vunpack.c.l.b16 %v409
      %v456 = vunpack.c.l.b16 %v410
      %v457 = vpack.c.b16 %v442, %v441
      %v458 = vpack.c.b16 %v444, %v443
      %v459 = vpack.c.b16 %v446, %v445
      %v460 = vpack.c.b16 %v448, %v447
      %v461 = vpack.c.b16 %v450, %v449
      %v462 = vpack.c.b16 %v452, %v451
      %v463 = vpack.c.b16 %v454, %v453
      %v464 = vpack.c.b16 %v456, %v455
      %473 = vmatprep.subr.bf16.mxu0 0
      %474 = vmatpush1.bf16.msra.mxu0 %v464
      %475 = vmatprep.subr.bf16.mxu0 0
      %476 = vmatpush1.bf16.msra.mxu0 %v463
      %477 = vmatprep.subr.bf16.mxu0 0
      %478 = vmatpush1.bf16.msra.mxu0 %v462
      %479 = vmatprep.subr.bf16.mxu0 0
      %480 = vmatpush1.bf16.msra.mxu0 %v461
      %481 = vmatprep.subr.bf16.mxu0 0
      %482 = vmatpush1.bf16.msra.mxu0 %v460
      %483 = vmatprep.subr.bf16.mxu0 0
      %484 = vmatpush1.bf16.msra.mxu0 %v459
      %485 = vmatprep.subr.bf16.mxu0 0
      %486 = vmatpush1.bf16.msra.mxu0 %v458
      %487 = vmatprep.subr.bf16.mxu0 0
      %488 = vmatpush1.bf16.msra.mxu0 %v457
      %489 = vmatprep.subr.bf16.mxu0 0
      %490 = vmatpush2.bf16.msra.mxu0 0
      %491 = vmatprep.subr.bf16.mxu0 0
      %492 = vmatpush2.bf16.msra.mxu0 0
      %493 = vmatprep.subr.bf16.mxu0 0
      %494 = vmatpush2.bf16.msra.mxu0 0
      %495 = vmatprep.subr.bf16.mxu0 0
      %496 = vmatpush2.bf16.msra.mxu0 0
      %497 = vmatprep.subr.bf16.mxu0 0
      %498 = vmatpush2.bf16.msra.mxu0 0
      %499 = vmatprep.subr.bf16.mxu0 0
      %500 = vmatpush2.bf16.msra.mxu0 0
      %501 = vmatprep.subr.bf16.mxu0 0
      %502 = vmatpush2.bf16.msra.mxu0 0
      %503 = vmatprep.subr.bf16.mxu0 0
      %504 = vmatpush2.bf16.msra.mxu0 0
      %505 = vmatprep.mubr.bf16.mxu0 0
      %506 = vmatmul.mubr.bf16.gmra.mxu0 %v423
      %v507 = vpop.f32.mrf.mxu0
      %v508 = vadd.f32 0.0, %v507
      %v509 = vpop.f32.mrf.mxu0
      %v510 = vpop.f32.mrf.mxu0
      %v511 = vpop.f32.mrf.mxu0
      %512 = vdwg.mxu0
      %v513 = vadd.f32 %v387, %v508
      %v514 = vld [vmem:[%s164] sm:$0xc]
      %s515 = scalar_lea.vmem %s1, 192
      %v516 = vld [vmem:[%s515] sm:$0xf]
      %v517 = vld [vmem:[%s515 + $0x4] sm:$0xf]
      %v518 = vld [vmem:[%s515 + $0x8] sm:$0xf]
      %v519 = vld [vmem:[%s515 + $0xc] sm:$0xf]
      %v520 = vld [vmem:[%s515 + $0x10] sm:$0xf]
      %v521 = vld [vmem:[%s515 + $0x14] sm:$0xf]
      %v522 = vld [vmem:[%s515 + $0x18] sm:$0xf]
      %v523 = vld [vmem:[%s515 + $0x1c] sm:$0xf]
      %v524 = vld [vmem:[%s515 + $0x20] sm:$0xf]
      %v525 = vld [vmem:[%s515 + $0x24] sm:$0xf]
      %v526 = vld [vmem:[%s515 + $0x28] sm:$0xf]
      %v527 = vld [vmem:[%s515 + $0x2c] sm:$0xf]
      %v528 = vld [vmem:[%s515 + $0x30] sm:$0xf]
      %v529 = vld [vmem:[%s515 + $0x34] sm:$0xf]
      %v530 = vld [vmem:[%s515 + $0x38] sm:$0xf]
      %v531 = vld [vmem:[%s515 + $0x3c] sm:$0xf]
      %v533 = vunpack.c.l.b16 %v514
      %v534 = vpack.c.b16 %v414, %v533
      %v535 = vrot.slane %v534, 2
      %v553 = vunpack.c.l.b16 %v516
      %v554 = vunpack.c.l.b16 %v517
      %v555 = vunpack.c.l.b16 %v518
      %v556 = vunpack.c.l.b16 %v519
      %v557 = vunpack.c.l.b16 %v520
      %v558 = vunpack.c.l.b16 %v521
      %v559 = vunpack.c.l.b16 %v522
      %v560 = vunpack.c.l.b16 %v523
      %v561 = vunpack.c.l.b16 %v524
      %v562 = vunpack.c.l.b16 %v525
      %v563 = vunpack.c.l.b16 %v526
      %v564 = vunpack.c.l.b16 %v527
      %v565 = vunpack.c.l.b16 %v528
      %v566 = vunpack.c.l.b16 %v529
      %v567 = vunpack.c.l.b16 %v530
      %v568 = vunpack.c.l.b16 %v531
      %v569 = vpack.c.b16 %v554, %v553
      %v570 = vpack.c.b16 %v556, %v555
      %v571 = vpack.c.b16 %v558, %v557
      %v572 = vpack.c.b16 %v560, %v559
      %v573 = vpack.c.b16 %v562, %v561
      %v574 = vpack.c.b16 %v564, %v563
      %v575 = vpack.c.b16 %v566, %v565
      %v576 = vpack.c.b16 %v568, %v567
      %585 = vmatprep.subr.bf16.mxu0 0
      %586 = vmatpush1.bf16.msra.mxu0 %v576
      %587 = vmatprep.subr.bf16.mxu0 0
      %588 = vmatpush1.bf16.msra.mxu0 %v575
      %589 = vmatprep.subr.bf16.mxu0 0
      %590 = vmatpush1.bf16.msra.mxu0 %v574
      %591 = vmatprep.subr.bf16.mxu0 0
      %592 = vmatpush1.bf16.msra.mxu0 %v573
      %593 = vmatprep.subr.bf16.mxu0 0
      %594 = vmatpush1.bf16.msra.mxu0 %v572
      %595 = vmatprep.subr.bf16.mxu0 0
      %596 = vmatpush1.bf16.msra.mxu0 %v571
      %597 = vmatprep.subr.bf16.mxu0 0
      %598 = vmatpush1.bf16.msra.mxu0 %v570
      %599 = vmatprep.subr.bf16.mxu0 0
      %600 = vmatpush1.bf16.msra.mxu0 %v569
      %601 = vmatprep.subr.bf16.mxu0 0
      %602 = vmatpush2.bf16.msra.mxu0 0
      %603 = vmatprep.subr.bf16.mxu0 0
      %604 = vmatpush2.bf16.msra.mxu0 0
      %605 = vmatprep.subr.bf16.mxu0 0
      %606 = vmatpush2.bf16.msra.mxu0 0
      %607 = vmatprep.subr.bf16.mxu0 0
      %608 = vmatpush2.bf16.msra.mxu0 0
      %609 = vmatprep.subr.bf16.mxu0 0
      %610 = vmatpush2.bf16.msra.mxu0 0
      %611 = vmatprep.subr.bf16.mxu0 0
      %612 = vmatpush2.bf16.msra.mxu0 0
      %613 = vmatprep.subr.bf16.mxu0 0
      %614 = vmatpush2.bf16.msra.mxu0 0
      %615 = vmatprep.subr.bf16.mxu0 0
      %616 = vmatpush2.bf16.msra.mxu0 0
      %617 = vmatprep.mubr.bf16.mxu0 0
      %618 = vmatmul.mubr.bf16.gmra.mxu0 %v535
      %v619 = vpop.f32.mrf.mxu0
      %v620 = vadd.f32 0.0, %v619
      %v621 = vpop.f32.mrf.mxu0
      %v622 = vpop.f32.mrf.mxu0
      %v623 = vpop.f32.mrf.mxu0
      %624 = vdwg.mxu0
      %v625 = vadd.f32 %v513, %v620
      %v626 = vld [vmem:[%s2] sm:$0x7]
      %v627 = vlaneseq
      %v628 = vshrl.u32 %v627, 7
      %v629 = vsub.s32 0, %v628
      %v630 = vrot.slane %v626, %v629
      %v631 = vadd.f32 %v625, %v630
      %vm632 = vcmp.ge.f32.partialorder %v631, 0.0
      %v633 = vmul.f32 %v631, 0.2
      %v634 = vsel %vm632, %v631, %v633
      %v635 = vlaneseq
      %v636 = vshrl.u32 %v635, 7
      %v637 = vsub.s32 1, %v636
      %v638 = vrot.slane %v626, %v637
      %v639 = vmul.f32 %v634, %v638
      %v640 = vlaneseq
      %v641 = vshrl.u32 %v640, 7
      %v642 = vsub.s32 2, %v641
      %v643 = vrot.slane %v626, %v642
      %v644 = vadd.f32 %v639, %v643
      %v645 = vpack.c.bf16 %v644, %v644
      %vm646 = vcmask 518144
      %647 = vst.msk [vmem:[%s168] sm:$0x7] %vm646, %v645
      %p648 = scmp.lt.s32.totalorder %s14, 1
      %s649 = scalar_select %p648, %s14, 1
      %s650 = smul.addr %s649, 4
      %s651 = scalar_lea.vmem %s3, %s650
      // Predicated region
      $region33: #{discriminator_forward.7} parent=31 // pred_check
        %p652 = pneg %p100
      $region34: #{discriminator_forward.7} parent=31 // pred_check_branch
        %654 = sbr.rel (%p652) target = $region36
      $region35: #{discriminator_forward.7} parent=31 // pred_region
        _
      $region36: #{discriminator_forward.7} parent=31 // pred_fallthru
        _
    $region32: #{discriminator_forward.7} parent=5 // pred_fallthru
      _
    %p655 = scmp.le.s32.totalorder 2, %s9
    // Predicated region
    $region37: #{discriminator_forward.7} parent=5 // pred_check
      %p656 = pneg %p655
    $region38: #{discriminator_forward.7} parent=5 // pred_check_branch
      %658 = sbr.rel (%p656) target = $region40
    $region39: #{discriminator_forward.7} parent=5 // pred_region
      %s659 = ssub.s32 %s9, 2
      // Predicated region
      $region41: #{discriminator_forward.7} parent=39 // pred_check
        %p660 = pneg %p106
      $region42: #{discriminator_forward.7} parent=39 // pred_check_branch
        %662 = sbr.rel (%p660) target = $region44
      $region43: #{discriminator_forward.7} parent=39 // pred_region
        %p663 = scmp.lt.s32.totalorder %s15, 1
        %s664 = scalar_select %p663, %s15, 1
        %s665 = smul.addr %s664, 4
        %s666 = scalar_lea.vmem %s3, %s665
      $region44: #{discriminator_forward.7} parent=39 // pred_fallthru
        _
    $region40: #{discriminator_forward.7} parent=5 // pred_fallthru
      _
  $region6: #{discriminator_forward.7} parent=0 // loop_footer
    %s13 = sadd.s32 1, %s9
  $region7: #{discriminator_forward.7} parent=0 // loop_footer_branch
    %8 = sbr.rel target = $region3
  $region8: #{discriminator_forward.7} parent=0 // loop_exit
    _

// kernel: discriminator_forward.9
$region0: #{discriminator_forward.9}
  #allocation0 [shape = 'u32[]', space=smem, size = 0x4, offset = 0x4, fixed_abs, tag = 'smem constant byte address 0x4 - core index']
  #allocation1 [shape = 'u32[144,128]{1,0:T(1,128)}', space=vmem, size = 0x12000, scoped, tag = 'internal scratch']
  %s0 = inlined_call_operand.vmem [shape: bf16[2,128], index: 0, kind: input, shape index: {}]
  %s1 = inlined_call_operand.vmem [shape: bf16[128,4], index: 1, kind: input, shape index: {}]
  %s2 = inlined_call_operand.vmem [shape: f32[1,4], index: 2, kind: input, shape index: {}]
  %s3 = inlined_call_operand.hbm [shape: f32[2,4], index: 3, kind: output, shape index: {}]
  %s4 = sld [smem:[#allocation0]]
  $region22: #{discriminator_forward.9} parent=0
    _
  %s6 = ssub.s32 1, %s4
  %s7 = scalar_select 0, %s6, %s4
  $region1: #{discriminator_forward.9} parent=0
    #allocation2 [shape = 'u8[1024]{0}', space=vmem, size = 0x400, scoped, tag = 'output window, operand 0, single buffered']
    #allocation3 [shape = 's32[1]{0}', space=sflag, size = 0x4, scoped, tag = 'scoped memory for discriminator_forward.9']
    %8 = vsyncpa [#allocation3], 0
    // Predicated region
    $region2: #{discriminator_forward.9} parent=1 // pred_check
      _
    $region3: #{discriminator_forward.9} parent=1 // pred_check_branch
      %10 = sbr.rel (0) target = $region5
    $region4: #{discriminator_forward.9} parent=1 // pred_region
      _
    $region5: #{discriminator_forward.9} parent=1 // pred_fallthru
      _
    // Predicated region
    $region6: #{discriminator_forward.9} parent=1 // pred_check
      _
    $region7: #{discriminator_forward.9} parent=1 // pred_check_branch
      %12 = sbr.rel (0) target = $region9
    $region8: #{discriminator_forward.9} parent=1 // pred_region
      _
    $region9: #{discriminator_forward.9} parent=1 // pred_fallthru
      _
    // Predicated region
    $region10: #{discriminator_forward.9} parent=1 // pred_check
      _
    $region11: #{discriminator_forward.9} parent=1 // pred_check_branch
      %14 = sbr.rel (0) target = $region13
    $region12: #{discriminator_forward.9} parent=1 // pred_region
      _
    $region13: #{discriminator_forward.9} parent=1 // pred_fallthru
      _
    %v16 = vld [vmem:[%s0] sm:$0x1]
    %v17 = vld [vmem:[%s1] sm:$0xf]
    %v18 = vld [vmem:[%s1 + $0x4] sm:$0xf]
    %v19 = vld [vmem:[%s1 + $0x8] sm:$0xf]
    %v20 = vld [vmem:[%s1 + $0xc] sm:$0xf]
    %v21 = vld [vmem:[%s1 + $0x10] sm:$0xf]
    %v22 = vld [vmem:[%s1 + $0x14] sm:$0xf]
    %v23 = vld [vmem:[%s1 + $0x18] sm:$0xf]
    %v24 = vld [vmem:[%s1 + $0x1c] sm:$0xf]
    %v25 = vld [vmem:[%s1 + $0x20] sm:$0xf]
    %v26 = vld [vmem:[%s1 + $0x24] sm:$0xf]
    %v27 = vld [vmem:[%s1 + $0x28] sm:$0xf]
    %v28 = vld [vmem:[%s1 + $0x2c] sm:$0xf]
    %v29 = vld [vmem:[%s1 + $0x30] sm:$0xf]
    %v30 = vld [vmem:[%s1 + $0x34] sm:$0xf]
    %v31 = vld [vmem:[%s1 + $0x38] sm:$0xf]
    %v32 = vld [vmem:[%s1 + $0x3c] sm:$0xf]
    %v33 = vld [vmem:[%s2] sm:$0x1]
    %v35 = vlaneseq
    %v36 = vshrl.u32 %v35, 7
    %v37 = vsub.s32 0, %v36
    %v38 = vrot.slane %v33, %v37
    %v56 = vunpack.c.l.b16 %v17
    %v57 = vunpack.c.l.b16 %v18
    %v58 = vunpack.c.l.b16 %v19
    %v59 = vunpack.c.l.b16 %v20
    %v60 = vunpack.c.l.b16 %v21
    %v61 = vunpack.c.l.b16 %v22
    %v62 = vunpack.c.l.b16 %v23
    %v63 = vunpack.c.l.b16 %v24
    %v64 = vunpack.c.l.b16 %v25
    %v65 = vunpack.c.l.b16 %v26
    %v66 = vunpack.c.l.b16 %v27
    %v67 = vunpack.c.l.b16 %v28
    %v68 = vunpack.c.l.b16 %v29
    %v69 = vunpack.c.l.b16 %v30
    %v70 = vunpack.c.l.b16 %v31
    %v71 = vunpack.c.l.b16 %v32
    %v72 = vpack.c.b16 %v57, %v56
    %v73 = vpack.c.b16 %v59, %v58
    %v74 = vpack.c.b16 %v61, %v60
    %v75 = vpack.c.b16 %v63, %v62
    %v76 = vpack.c.b16 %v65, %v64
    %v77 = vpack.c.b16 %v67, %v66
    %v78 = vpack.c.b16 %v69, %v68
    %v79 = vpack.c.b16 %v71, %v70
    %88 = vmatprep.subr.bf16.mxu0 0
    %89 = vmatpush1.bf16.msra.mxu0 %v79
    %90 = vmatprep.subr.bf16.mxu0 0
    %91 = vmatpush1.bf16.msra.mxu0 %v78
    %92 = vmatprep.subr.bf16.mxu0 0
    %93 = vmatpush1.bf16.msra.mxu0 %v77
    %94 = vmatprep.subr.bf16.mxu0 0
    %95 = vmatpush1.bf16.msra.mxu0 %v76
    %96 = vmatprep.subr.bf16.mxu0 0
    %97 = vmatpush1.bf16.msra.mxu0 %v75
    %98 = vmatprep.subr.bf16.mxu0 0
    %99 = vmatpush1.bf16.msra.mxu0 %v74
    %100 = vmatprep.subr.bf16.mxu0 0
    %101 = vmatpush1.bf16.msra.mxu0 %v73
    %102 = vmatprep.subr.bf16.mxu0 0
    %103 = vmatpush1.bf16.msra.mxu0 %v72
    %104 = vmatprep.subr.bf16.mxu0 0
    %105 = vmatpush2.bf16.msra.mxu0 0
    %106 = vmatprep.subr.bf16.mxu0 0
    %107 = vmatpush2.bf16.msra.mxu0 0
    %108 = vmatprep.subr.bf16.mxu0 0
    %109 = vmatpush2.bf16.msra.mxu0 0
    %110 = vmatprep.subr.bf16.mxu0 0
    %111 = vmatpush2.bf16.msra.mxu0 0
    %112 = vmatprep.subr.bf16.mxu0 0
    %113 = vmatpush2.bf16.msra.mxu0 0
    %114 = vmatprep.subr.bf16.mxu0 0
    %115 = vmatpush2.bf16.msra.mxu0 0
    %116 = vmatprep.subr.bf16.mxu0 0
    %117 = vmatpush2.bf16.msra.mxu0 0
    %118 = vmatprep.subr.bf16.mxu0 0
    %119 = vmatpush2.bf16.msra.mxu0 0
    %120 = vmatprep.mubr.bf16.mxu0 0
    %121 = vmatmul.mubr.bf16.gmra.mxu0 %v16
    %v122 = vpop.f32.mrf.mxu0
    %v123 = vadd.f32 %v38, %v122
    %v124 = vpop.f32.mrf.mxu0
    %v125 = vpop.f32.mrf.mxu0
    %v126 = vpop.f32.mrf.mxu0
    %127 = vdwg.mxu0
    %v128 = vsub.f32 0.0, %v123
    %v129 = vmul.f32 %v128, 1.442695
    %v130 = vpow.pop %v129
    %v131 = vadd.f32 %v130, 1.0
    %v132 = vrcp.pop %v131
    %v133 = vmul.f32 1.0, %v132
    %vm134 = vcmask 25600
    %135 = vst.msk [vmem:[#allocation2] sm:$0x3] %vm134, %v133
    // Predicated region
    $region14: #{discriminator_forward.9} parent=1 // pred_check
      _
    $region15: #{discriminator_forward.9} parent=1 // pred_check_branch
      %137 = sbr.rel (0) target = $region17
    $region16: #{discriminator_forward.9} parent=1 // pred_region
      %s139 = ssub.s32 32, 32
      %140 = vsyncadd [#allocation3], %s139
      %s142 = sshll.u32 [#allocation2], 4
      %s143 = int_to_ptr.vmem [resolvable:$true] %s142
      %145 = dma.vmem_to_hbm [thread:$0]  %s143, 32, %s3, [#allocation3]
    $region17: #{discriminator_forward.9} parent=1 // pred_fallthru
      _
    // Predicated region
    $region18: #{discriminator_forward.9} parent=1 // pred_check
      _
    $region19: #{discriminator_forward.9} parent=1 // pred_check_branch
      %147 = sbr.rel (0) target = $region21
    $region20: #{discriminator_forward.9} parent=1 // pred_region
      %148 = dma.done [#allocation3], 32
    $region21: #{discriminator_forward.9} parent=1 // pred_fallthru
      _
    %149 = vsyncpa [#allocation3], 1

// kernel: discriminator_forward.8
$region0: #{discriminator_forward.8}
  #allocation0 [shape = 'u32[]', space=smem, size = 0x4, offset = 0x4, fixed_abs, tag = 'smem constant byte address 0x4 - core index']
  #allocation1 [shape = 'u32[144,128]{1,0:T(1,128)}', space=vmem, size = 0x12000, scoped, tag = 'internal scratch']
  %s0 = inlined_call_operand.vmem [shape: bf16[2,5,256], index: 0, kind: input, shape index: {}]
  %s1 = inlined_call_operand.vmem [shape: bf16[4,256,128], index: 1, kind: input, shape index: {}]
  %s2 = inlined_call_operand.vmem [shape: f32[3,128], index: 2, kind: input, shape index: {}]
  %s3 = inlined_call_operand.vmem [shape: bf16[2,2,128], index: 3, kind: output, shape index: {}]
  %s4 = sld [smem:[#allocation0]]
  $region45: #{discriminator_forward.8} parent=0
    _
  %s6 = ssub.s32 1, %s4
  %s7 = scalar_select 0, %s6, %s4
  loop: start=0, step=1, limit=4
  $region2: #{discriminator_forward.8} parent=0 // loop_pre_header
    _
  $region3: #{discriminator_forward.8} parent=0 // loop_header
    %s9 = sphi 0, %s13
    %p10 = scmp.ge.s32.totalorder %s9, 4
    %s19 = sphi 0, %s21
    %s22 = sphi 0, %s19
    %s23 = sphi 0, %s22
    %s39 = sphi 0, %s23
    %s43 = sphi 0, %s43
    %s45 = sphi 0, %s43
    %s46 = sphi 0, %s45
    %s60 = sphi 0, %s46
    %s64 = sphi 0, %s64
    %s66 = sphi 0, %s64
    %s67 = sphi 0, %s66
    %s81 = sphi 0, %s67
    %s87 = sphi 0, %s89
    %s90 = sphi 0, %s87
    %s91 = sphi 0, %s90
    %s107 = sphi 0, %s91
  $region4: #{discriminator_forward.8} parent=0 // loop_header_branch
    %12 = sbr.rel (%p10) target = $region8
  $region5: #{discriminator_forward.8} parent=0 // loop_body
    %s14 = ssub.s32 %s9, 1
    %s15 = ssub.s32 %s9, 2
    %s16 = sadd.s32 %s9, 1
    %s17 = ssub.s32 %s9, %s16
    %p18 = scmp.eq.s32.totalorder %s17, 0
    %s20 = sadd.s32 %s19, 1
    %s21 = scalar_select %p18, %s19, %s20
    %p24 = pneg %p18
    %p25 = scmp.eq.s32.totalorder %s9, 1
    %p26 = por %p24, %p25
    %p27 = scmp.ne.s32.totalorder %s19, %s22
    %p28 = scmp.eq.s32.totalorder %s9, 0
    %p29 = por %p27, %p28
    %p30 = scmp.ne.s32.totalorder %s19, %s22
    %p31 = scmp.eq.s32.totalorder %s14, 1
    %p32 = por %p30, %p31
    %p33 = scmp.ne.s32.totalorder %s22, %s23
    %p34 = scmp.eq.s32.totalorder %s14, 0
    %p35 = por %p33, %p34
    %p36 = scmp.ne.s32.totalorder %s22, %s23
    %p37 = scmp.eq.s32.totalorder %s15, 1
    %p38 = por %p36, %p37
    %p40 = scmp.ne.s32.totalorder %s23, %s39
    %p41 = scmp.eq.s32.totalorder %s15, 0
    %p42 = por %p40, %p41
    %s44 = sadd.s32 %s43, 1
    %p47 = scmp.eq.s32.totalorder %s9, 1
    %p48 = scmp.ne.s32.totalorder %s43, %s45
    %p49 = scmp.eq.s32.totalorder %s9, 0
    %p50 = por %p48, %p49
    %p51 = scmp.ne.s32.totalorder %s43, %s45
    %p52 = scmp.eq.s32.totalorder %s14, 1
    %p53 = por %p51, %p52
    %p54 = scmp.ne.s32.totalorder %s45, %s46
    %p55 = scmp.eq.s32.totalorder %s14, 0
    %p56 = por %p54, %p55
    %p57 = scmp.ne.s32.totalorder %s45, %s46
    %p58 = scmp.eq.s32.totalorder %s15, 1
    %p59 = por %p57, %p58
    %p61 = scmp.ne.s32.totalorder %s46, %s60
    %p62 = scmp.eq.s32.totalorder %s15, 0
    %p63 = por %p61, %p62
    %s65 = sadd.s32 %s64, 1
    %p68 = scmp.eq.s32.totalorder %s9, 1
    %p69 = scmp.ne.s32.totalorder %s64, %s66
    %p70 = scmp.eq.s32.totalorder %s9, 0
    %p71 = por %p69, %p70
    %p72 = scmp.ne.s32.totalorder %s64, %s66
    %p73 = scmp.eq.s32.totalorder %s14, 1
    %p74 = por %p72, %p73
    %p75 = scmp.ne.s32.totalorder %s66, %s67
    %p76 = scmp.eq.s32.totalorder %s14, 0
    %p77 = por %p75, %p76
    %p78 = scmp.ne.s32.totalorder %s66, %s67
    %p79 = scmp.eq.s32.totalorder %s15, 1
    %p80 = por %p78, %p79
    %p82 = scmp.ne.s32.totalorder %s67, %s81
    %p83 = scmp.eq.s32.totalorder %s15, 0
    %p84 = por %p82, %p83
    %s85 = ssub.s32 %s9, %s16
    %p86 = scmp.eq.s32.totalorder %s85, 0
    %s88 = sadd.s32 %s87, 1
    %s89 = scalar_select %p86, %s87, %s88
    %p92 = pneg %p86
    %p93 = scmp.eq.s32.totalorder %s9, 1
    %p94 = por %p92, %p93
    %p95 = scmp.ne.s32.totalorder %s87, %s90
    %p96 = scmp.eq.s32.totalorder %s9, 0
    %p97 = por %p95, %p96
    %p98 = scmp.ne.s32.totalorder %s87, %s90
    %p99 = scmp.eq.s32.totalorder %s14, 1
    %p100 = por %p98, %p99
    %p101 = scmp.ne.s32.totalorder %s90, %s91
    %p102 = scmp.eq.s32.totalorder %s14, 0
    %p103 = por %p101, %p102
    %p104 = scmp.ne.s32.totalorder %s90, %s91
    %p105 = scmp.eq.s32.totalorder %s15, 1
    %p106 = por %p104, %p105
    %p108 = scmp.ne.s32.totalorder %s91, %s107
    %p109 = scmp.eq.s32.totalorder %s15, 0
    %p110 = por %p108, %p109
    %p111 = scmp.le.s32.totalorder 1, %s9
    %p112 = scmp.lt.s32.totalorder %s9, 3
    %p113 = pnand %p111, %p112
    %p114 = pneg %p113
    // Predicated region
    $region9: #{discriminator_forward.8} parent=5 // pred_check
      _
    $region10: #{discriminator_forward.8} parent=5 // pred_check_branch
      %116 = sbr.rel (%p113) target = $region12
    $region11: #{discriminator_forward.8} parent=5 // pred_region
      %s117 = ssub.s32 %s9, 1
      // Predicated region
      $region13: #{discriminator_forward.8} parent=11 // pred_check
        %p118 = pneg %p56
      $region14: #{discriminator_forward.8} parent=11 // pred_check_branch
        %120 = sbr.rel (%p118) target = $region16
      $region15: #{discriminator_forward.8} parent=11 // pred_region
        _
      $region16: #{discriminator_forward.8} parent=11 // pred_fallthru
        _
      // Predicated region
      $region17: #{discriminator_forward.8} parent=11 // pred_check
        %p121 = pneg %p77
      $region18: #{discriminator_forward.8} parent=11 // pred_check_branch
        %123 = sbr.rel (%p121) target = $region20
      $region19: #{discriminator_forward.8} parent=11 // pred_region
        _
      $region20: #{discriminator_forward.8} parent=11 // pred_fallthru
        _
    $region12: #{discriminator_forward.8} parent=5 // pred_fallthru
      _
    %p124 = scmp.lt.s32.totalorder %s9, 2
    // Predicated region
    $region21: #{discriminator_forward.8} parent=5 // pred_check
      %p125 = pneg %p124
    $region22: #{discriminator_forward.8} parent=5 // pred_check_branch
      %127 = sbr.rel (%p125) target = $region24
    $region23: #{discriminator_forward.8} parent=5 // pred_region
      // Predicated region
      $region25: #{discriminator_forward.8} parent=23 // pred_check
        %p128 = pneg %p29
      $region26: #{discriminator_forward.8} parent=23 // pred_check_branch
        %130 = sbr.rel (%p128) target = $region28
      $region27: #{discriminator_forward.8} parent=23 // pred_region
        %p131 = scmp.lt.s32.totalorder %s9, 1
        %s132 = scalar_select %p131, %s9, 1
        %s133 = smul.addr %s132, 2
        %s134 = smul.addr %s133, 4
        %s135 = scalar_lea.vmem %s0, %s134
      $region28: #{discriminator_forward.8} parent=23 // pred_fallthru
        _
    $region24: #{discriminator_forward.8} parent=5 // pred_fallthru
      _
    %p136 = scmp.le.s32.totalorder 1, %s9
    %p137 = scmp.lt.s32.totalorder %s9, 3
    %p138 = pnand %p136, %p137
    %p139 = pneg %p138
    // Predicated region
    $region29: #{discriminator_forward.8} parent=5 // pred_check
      _
    $region30: #{discriminator_forward.8} parent=5 // pred_check_branch
      %141 = sbr.rel (%p138) target = $region32
    $region31: #{discriminator_forward.8} parent=5 // pred_region
      %s142 = ssub.s32 %s9, 1
      %p143 = scmp.lt.s32.totalorder %s14, 1
      %s144 = scalar_select %p143, %s14, 1
      %s145 = smul.addr %s144, 2
      %s146 = smul.addr %s145, 4
      %s147 = scalar_lea.vmem %s0, %s146
      %p148 = pneg %p35
      %p149 = pneg %p32
      %p150 = pneg %p56
      %p151 = pneg %p53
      %p152 = pneg %p77
      %p153 = pneg %p74
      %p154 = pneg %p103
      %p155 = pneg %p100
      %p156 = scmp.lt.s32.totalorder %s14, 1
      %s157 = scalar_select %p156, %s14, 1
      %s158 = scalar_lea.vmem %s3, %s157
      %p159 = scmp.lt.s32.totalorder %s14, 1
      %s160 = scalar_select %p159, %s14, 1
      %s161 = smul.addr %s160, 2
      %s162 = smul.addr %s161, 4
      %s163 = scalar_lea.vmem %s0, %s162
      %p164 = scmp.lt.s32.totalorder %s14, 1
      %s165 = scalar_select %p164, %s14, 1
      %s166 = scalar_lea.vmem %s3, %s165
      %v168 = vld [vmem:[%s163] sm:$0x11]
      %v169 = vld [vmem:[%s1] sm:$0xf]
      %v170 = vld [vmem:[%s1 + $0x4] sm:$0xf]
      %v171 = vld [vmem:[%s1 + $0x8] sm:$0xf]
      %v172 = vld [vmem:[%s1 + $0xc] sm:$0xf]
      %v173 = vld [vmem:[%s1 + $0x10] sm:$0xf]
      %v174 = vld [vmem:[%s1 + $0x14] sm:$0xf]
      %v175 = vld [vmem:[%s1 + $0x18] sm:$0xf]
      %v176 = vld [vmem:[%s1 + $0x1c] sm:$0xf]
      %v177 = vld [vmem:[%s1 + $0x20] sm:$0xf]
      %v178 = vld [vmem:[%s1 + $0x24] sm:$0xf]
      %v179 = vld [vmem:[%s1 + $0x28] sm:$0xf]
      %v180 = vld [vmem:[%s1 + $0x2c] sm:$0xf]
      %v181 = vld [vmem:[%s1 + $0x30] sm:$0xf]
      %v182 = vld [vmem:[%s1 + $0x34] sm:$0xf]
      %v183 = vld [vmem:[%s1 + $0x38] sm:$0xf]
      %v184 = vld [vmem:[%s1 + $0x3c] sm:$0xf]
      %v185 = vld [vmem:[%s1 + $0x40] sm:$0xf]
      %v186 = vld [vmem:[%s1 + $0x44] sm:$0xf]
      %v187 = vld [vmem:[%s1 + $0x48] sm:$0xf]
      %v188 = vld [vmem:[%s1 + $0x4c] sm:$0xf]
      %v189 = vld [vmem:[%s1 + $0x50] sm:$0xf]
      %v190 = vld [vmem:[%s1 + $0x54] sm:$0xf]
      %v191 = vld [vmem:[%s1 + $0x58] sm:$0xf]
      %v192 = vld [vmem:[%s1 + $0x5c] sm:$0xf]
      %v193 = vld [vmem:[%s1 + $0x60] sm:$0xf]
      %v194 = vld [vmem:[%s1 + $0x64] sm:$0xf]
      %v195 = vld [vmem:[%s1 + $0x68] sm:$0xf]
      %v196 = vld [vmem:[%s1 + $0x6c] sm:$0xf]
      %v197 = vld [vmem:[%s1 + $0x70] sm:$0xf]
      %v198 = vld [vmem:[%s1 + $0x74] sm:$0xf]
      %v199 = vld [vmem:[%s1 + $0x78] sm:$0xf]
      %v200 = vld [vmem:[%s1 + $0x7c] sm:$0xf]
      %v201 = vld [vmem:[%s163] sm:$0x33]
      %s202 = scalar_lea.vmem %s1, 128
      %v203 = vld [vmem:[%s202] sm:$0xf]
      %v204 = vld [vmem:[%s202 + $0x4] sm:$0xf]
      %v205 = vld [vmem:[%s202 + $0x8] sm:$0xf]
      %v206 = vld [vmem:[%s202 + $0xc] sm:$0xf]
      %v207 = vld [vmem:[%s202 + $0x10] sm:$0xf]
      %v208 = vld [vmem:[%s202 + $0x14] sm:$0xf]
      %v209 = vld [vmem:[%s202 + $0x18] sm:$0xf]
      %v210 = vld [vmem:[%s202 + $0x1c] sm:$0xf]
      %v211 = vld [vmem:[%s202 + $0x20] sm:$0xf]
      %v212 = vld [vmem:[%s202 + $0x24] sm:$0xf]
      %v213 = vld [vmem:[%s202 + $0x28] sm:$0xf]
      %v214 = vld [vmem:[%s202 + $0x2c] sm:$0xf]
      %v215 = vld [vmem:[%s202 + $0x30] sm:$0xf]
      %v216 = vld [vmem:[%s202 + $0x34] sm:$0xf]
      %v217 = vld [vmem:[%s202 + $0x38] sm:$0xf]
      %v218 = vld [vmem:[%s202 + $0x3c] sm:$0xf]
      %v219 = vld [vmem:[%s202 + $0x40] sm:$0xf]
      %v220 = vld [vmem:[%s202 + $0x44] sm:$0xf]
      %v221 = vld [vmem:[%s202 + $0x48] sm:$0xf]
      %v222 = vld [vmem:[%s202 + $0x4c] sm:$0xf]
      %v223 = vld [vmem:[%s202 + $0x50] sm:$0xf]
      %v224 = vld [vmem:[%s202 + $0x54] sm:$0xf]
      %v225 = vld [vmem:[%s202 + $0x58] sm:$0xf]
      %v226 = vld [vmem:[%s202 + $0x5c] sm:$0xf]
      %v227 = vld [vmem:[%s202 + $0x60] sm:$0xf]
      %v228 = vld [vmem:[%s202 + $0x64] sm:$0xf]
      %v229 = vld [vmem:[%s202 + $0x68] sm:$0xf]
      %v230 = vld [vmem:[%s202 + $0x6c] sm:$0xf]
      %v231 = vld [vmem:[%s202 + $0x70] sm:$0xf]
      %v232 = vld [vmem:[%s202 + $0x74] sm:$0xf]
      %v233 = vld [vmem:[%s202 + $0x78] sm:$0xf]
      %v234 = vld [vmem:[%s202 + $0x7c] sm:$0xf]
      %v236 = vunpack.c.l.b16 %v201
      %v237 = vunpack.c.h.b16 %v201
      %v238 = vpack.c.b16 %v236, %v236
      %v239 = vpack.c.b16 %v237, %v237
      %v241 = vshrl.u32 %v238, 16
      %v243 = vshll.u32 %v238, 16
      %v245 = vrot.slane %v243, 1
      %v246 = vor.u32 %v241, %v245
      %v248 = vshrl.u32 %v239, 16
      %v250 = vshll.u32 %v239, 16
      %v252 = vrot.slane %v250, 1
      %v253 = vor.u32 %v248, %v252
      %v288 = vunpack.c.l.b16 %v203
      %v289 = vunpack.c.l.b16 %v204
      %v290 = vunpack.c.l.b16 %v205
      %v291 = vunpack.c.l.b16 %v206
      %v292 = vunpack.c.l.b16 %v207
      %v293 = vunpack.c.l.b16 %v208
      %v294 = vunpack.c.l.b16 %v209
      %v295 = vunpack.c.l.b16 %v210
      %v296 = vunpack.c.l.b16 %v211
      %v297 = vunpack.c.l.b16 %v212
      %v298 = vunpack.c.l.b16 %v213
      %v299 = vunpack.c.l.b16 %v214
      %v300 = vunpack.c.l.b16 %v215
      %v301 = vunpack.c.l.b16 %v216
      %v302 = vunpack.c.l.b16 %v217
      %v303 = vunpack.c.l.b16 %v218
      %v304 = vunpack.c.l.b16 %v219
      %v305 = vunpack.c.l.b16 %v220
      %v306 = vunpack.c.l.b16 %v221
      %v307 = vunpack.c.l.b16 %v222
      %v308 = vunpack.c.l.b16 %v223
      %v309 = vunpack.c.l.b16 %v224
      %v310 = vunpack.c.l.b16 %v225
      %v311 = vunpack.c.l.b16 %v226
      %v312 = vunpack.c.l.b16 %v227
      %v313 = vunpack.c.l.b16 %v228
      %v314 = vunpack.c.l.b16 %v229
      %v315 = vunpack.c.l.b16 %v230
      %v316 = vunpack.c.l.b16 %v231
      %v317 = vunpack.c.l.b16 %v232
      %v318 = vunpack.c.l.b16 %v233
      %v319 = vunpack.c.l.b16 %v234
      %v320 = vpack.c.b16 %v289, %v288
      %v321 = vpack.c.b16 %v291, %v290
      %v322 = vpack.c.b16 %v293, %v292
      %v323 = vpack.c.b16 %v295, %v294
      %v324 = vpack.c.b16 %v297, %v296
      %v325 = vpack.c.b16 %v299, %v298
      %v326 = vpack.c.b16 %v301, %v300
      %v327 = vpack.c.b16 %v303, %v302
      %v328 = vpack.c.b16 %v305, %v304
      %v329 = vpack.c.b16 %v307, %v306
      %v330 = vpack.c.b16 %v309, %v308
      %v331 = vpack.c.b16 %v311, %v310
      %v332 = vpack.c.b16 %v313, %v312
      %v333 = vpack.c.b16 %v315, %v314
      %v334 = vpack.c.b16 %v317, %v316
      %v335 = vpack.c.b16 %v319, %v318
      %352 = vmatprep.subr.bf16.mxu0 0
      %353 = vmatpush1.bf16.msra.mxu0 %v327
      %354 = vmatprep.subr.bf16.mxu0 0
      %355 = vmatpush1.bf16.msra.mxu0 %v326
      %356 = vmatprep.subr.bf16.mxu0 0
      %357 = vmatpush1.bf16.msra.mxu0 %v325
      %358 = vmatprep.subr.bf16.mxu0 0
      %359 = vmatpush1.bf16.msra.mxu0 %v324
      %360 = vmatprep.subr.bf16.mxu0 0
      %361 = vmatpush1.bf16.msra.mxu0 %v323
      %362 = vmatprep.subr.bf16.mxu0 0
      %363 = vmatpush1.bf16.msra.mxu0 %v322
      %364 = vmatprep.subr.bf16.mxu0 0
      %365 = vmatpush1.bf16.msra.mxu0 %v321
      %366 = vmatprep.subr.bf16.mxu0 0
      %367 = vmatpush1.bf16.msra.mxu0 %v320
      %368 = vmatprep.subr.bf16.mxu0 0
      %369 = vmatpush2.bf16.msra.mxu0 %v335
      %370 = vmatprep.subr.bf16.mxu0 0
      %371 = vmatpush2.bf16.msra.mxu0 %v334
      %372 = vmatprep.subr.bf16.mxu0 0
      %373 = vmatpush2.bf16.msra.mxu0 %v333
      %374 = vmatprep.subr.bf16.mxu0 0
      %375 = vmatpush2.bf16.msra.mxu0 %v332
      %376 = vmatprep.subr.bf16.mxu0 0
      %377 = vmatpush2.bf16.msra.mxu0 %v331
      %378 = vmatprep.subr.bf16.mxu0 0
      %379 = vmatpush2.bf16.msra.mxu0 %v330
      %380 = vmatprep.subr.bf16.mxu0 0
      %381 = vmatpush2.bf16.msra.mxu0 %v329
      %382 = vmatprep.subr.bf16.mxu0 0
      %383 = vmatpush2.bf16.msra.mxu0 %v328
      %384 = vmatprep.mubr.bf16.mxu0 %v253
      %385 = vmatmul.mubr.bf16.gmra.mxu0 %v246
      %v386 = vpop.f32.mrf.mxu0
      %v387 = vadd.f32 0.0, %v386
      %v388 = vpop.f32.mrf.mxu0
      %v389 = vpop.f32.mrf.mxu0
      %v390 = vpop.f32.mrf.mxu0
      %391 = vdwg.mxu0
      %v393 = vunpack.c.l.b16 %v168
      %v394 = vunpack.c.h.b16 %v168
      %v395 = vpack.c.b16 %v393, %v393
      %v396 = vpack.c.b16 %v394, %v394
      %v431 = vunpack.c.l.b16 %v169
      %v432 = vunpack.c.l.b16 %v170
      %v433 = vunpack.c.l.b16 %v171
      %v434 = vunpack.c.l.b16 %v172
      %v435 = vunpack.c.l.b16 %v173
      %v436 = vunpack.c.l.b16 %v174
      %v437 = vunpack.c.l.b16 %v175
      %v438 = vunpack.c.l.b16 %v176
      %v439 = vunpack.c.l.b16 %v177
      %v440 = vunpack.c.l.b16 %v178
      %v441 = vunpack.c.l.b16 %v179
      %v442 = vunpack.c.l.b16 %v180
      %v443 = vunpack.c.l.b16 %v181
      %v444 = vunpack.c.l.b16 %v182
      %v445 = vunpack.c.l.b16 %v183
      %v446 = vunpack.c.l.b16 %v184
      %v447 = vunpack.c.l.b16 %v185
      %v448 = vunpack.c.l.b16 %v186
      %v449 = vunpack.c.l.b16 %v187
      %v450 = vunpack.c.l.b16 %v188
      %v451 = vunpack.c.l.b16 %v189
      %v452 = vunpack.c.l.b16 %v190
      %v453 = vunpack.c.l.b16 %v191
      %v454 = vunpack.c.l.b16 %v192
      %v455 = vunpack.c.l.b16 %v193
      %v456 = vunpack.c.l.b16 %v194
      %v457 = vunpack.c.l.b16 %v195
      %v458 = vunpack.c.l.b16 %v196
      %v459 = vunpack.c.l.b16 %v197
      %v460 = vunpack.c.l.b16 %v198
      %v461 = vunpack.c.l.b16 %v199
      %v462 = vunpack.c.l.b16 %v200
      %v463 = vpack.c.b16 %v432, %v431
      %v464 = vpack.c.b16 %v434, %v433
      %v465 = vpack.c.b16 %v436, %v435
      %v466 = vpack.c.b16 %v438, %v437
      %v467 = vpack.c.b16 %v440, %v439
      %v468 = vpack.c.b16 %v442, %v441
      %v469 = vpack.c.b16 %v444, %v443
      %v470 = vpack.c.b16 %v446, %v445
      %v471 = vpack.c.b16 %v448, %v447
      %v472 = vpack.c.b16 %v450, %v449
      %v473 = vpack.c.b16 %v452, %v451
      %v474 = vpack.c.b16 %v454, %v453
      %v475 = vpack.c.b16 %v456, %v455
      %v476 = vpack.c.b16 %v458, %v457
      %v477 = vpack.c.b16 %v460, %v459
      %v478 = vpack.c.b16 %v462, %v461
      %495 = vmatprep.subr.bf16.mxu0 0
      %496 = vmatpush1.bf16.msra.mxu0 %v470
      %497 = vmatprep.subr.bf16.mxu0 0
      %498 = vmatpush1.bf16.msra.mxu0 %v469
      %499 = vmatprep.subr.bf16.mxu0 0
      %500 = vmatpush1.bf16.msra.mxu0 %v468
      %501 = vmatprep.subr.bf16.mxu0 0
      %502 = vmatpush1.bf16.msra.mxu0 %v467
      %503 = vmatprep.subr.bf16.mxu0 0
      %504 = vmatpush1.bf16.msra.mxu0 %v466
      %505 = vmatprep.subr.bf16.mxu0 0
      %506 = vmatpush1.bf16.msra.mxu0 %v465
      %507 = vmatprep.subr.bf16.mxu0 0
      %508 = vmatpush1.bf16.msra.mxu0 %v464
      %509 = vmatprep.subr.bf16.mxu0 0
      %510 = vmatpush1.bf16.msra.mxu0 %v463
      %511 = vmatprep.subr.bf16.mxu0 0
      %512 = vmatpush2.bf16.msra.mxu0 %v478
      %513 = vmatprep.subr.bf16.mxu0 0
      %514 = vmatpush2.bf16.msra.mxu0 %v477
      %515 = vmatprep.subr.bf16.mxu0 0
      %516 = vmatpush2.bf16.msra.mxu0 %v476
      %517 = vmatprep.subr.bf16.mxu0 0
      %518 = vmatpush2.bf16.msra.mxu0 %v475
      %519 = vmatprep.subr.bf16.mxu0 0
      %520 = vmatpush2.bf16.msra.mxu0 %v474
      %521 = vmatprep.subr.bf16.mxu0 0
      %522 = vmatpush2.bf16.msra.mxu0 %v473
      %523 = vmatprep.subr.bf16.mxu0 0
      %524 = vmatpush2.bf16.msra.mxu0 %v472
      %525 = vmatprep.subr.bf16.mxu0 0
      %526 = vmatpush2.bf16.msra.mxu0 %v471
      %527 = vmatprep.mubr.bf16.mxu0 %v396
      %528 = vmatmul.mubr.bf16.gmra.mxu0 %v395
      %v529 = vpop.f32.mrf.mxu0
      %v530 = vadd.f32 %v387, %v529
      %v531 = vpop.f32.mrf.mxu0
      %v532 = vpop.f32.mrf.mxu0
      %v533 = vpop.f32.mrf.mxu0
      %534 = vdwg.mxu0
      %v535 = vld [vmem:[%s163] sm:$0x22]
      %s536 = scalar_lea.vmem %s1, 256
      %v537 = vld [vmem:[%s536] sm:$0xf]
      %v538 = vld [vmem:[%s536 + $0x4] sm:$0xf]
      %v539 = vld [vmem:[%s536 + $0x8] sm:$0xf]
      %v540 = vld [vmem:[%s536 + $0xc] sm:$0xf]
      %v541 = vld [vmem:[%s536 + $0x10] sm:$0xf]
      %v542 = vld [vmem:[%s536 + $0x14] sm:$0xf]
      %v543 = vld [vmem:[%s536 + $0x18] sm:$0xf]
      %v544 = vld [vmem:[%s536 + $0x1c] sm:$0xf]
      %v545 = vld [vmem:[%s536 + $0x20] sm:$0xf]
      %v546 = vld [vmem:[%s536 + $0x24] sm:$0xf]
      %v547 = vld [vmem:[%s536 + $0x28] sm:$0xf]
      %v548 = vld [vmem:[%s536 + $0x2c] sm:$0xf]
      %v549 = vld [vmem:[%s536 + $0x30] sm:$0xf]
      %v550 = vld [vmem:[%s536 + $0x34] sm:$0xf]
      %v551 = vld [vmem:[%s536 + $0x38] sm:$0xf]
      %v552 = vld [vmem:[%s536 + $0x3c] sm:$0xf]
      %v553 = vld [vmem:[%s536 + $0x40] sm:$0xf]
      %v554 = vld [vmem:[%s536 + $0x44] sm:$0xf]
      %v555 = vld [vmem:[%s536 + $0x48] sm:$0xf]
      %v556 = vld [vmem:[%s536 + $0x4c] sm:$0xf]
      %v557 = vld [vmem:[%s536 + $0x50] sm:$0xf]
      %v558 = vld [vmem:[%s536 + $0x54] sm:$0xf]
      %v559 = vld [vmem:[%s536 + $0x58] sm:$0xf]
      %v560 = vld [vmem:[%s536 + $0x5c] sm:$0xf]
      %v561 = vld [vmem:[%s536 + $0x60] sm:$0xf]
      %v562 = vld [vmem:[%s536 + $0x64] sm:$0xf]
      %v563 = vld [vmem:[%s536 + $0x68] sm:$0xf]
      %v564 = vld [vmem:[%s536 + $0x6c] sm:$0xf]
      %v565 = vld [vmem:[%s536 + $0x70] sm:$0xf]
      %v566 = vld [vmem:[%s536 + $0x74] sm:$0xf]
      %v567 = vld [vmem:[%s536 + $0x78] sm:$0xf]
      %v568 = vld [vmem:[%s536 + $0x7c] sm:$0xf]
      %v570 = vunpack.c.l.b16 %v535
      %v571 = vunpack.c.h.b16 %v535
      %v572 = vpack.c.b16 %v570, %v570
      %v573 = vpack.c.b16 %v571, %v571
      %v574 = vrot.slane %v572, 1
      %v575 = vrot.slane %v573, 1
      %v610 = vunpack.c.l.b16 %v537
      %v611 = vunpack.c.l.b16 %v538
      %v612 = vunpack.c.l.b16 %v539
      %v613 = vunpack.c.l.b16 %v540
      %v614 = vunpack.c.l.b16 %v541
      %v615 = vunpack.c.l.b16 %v542
      %v616 = vunpack.c.l.b16 %v543
      %v617 = vunpack.c.l.b16 %v544
      %v618 = vunpack.c.l.b16 %v545
      %v619 = vunpack.c.l.b16 %v546
      %v620 = vunpack.c.l.b16 %v547
      %v621 = vunpack.c.l.b16 %v548
      %v622 = vunpack.c.l.b16 %v549
      %v623 = vunpack.c.l.b16 %v550
      %v624 = vunpack.c.l.b16 %v551
      %v625 = vunpack.c.l.b16 %v552
      %v626 = vunpack.c.l.b16 %v553
      %v627 = vunpack.c.l.b16 %v554
      %v628 = vunpack.c.l.b16 %v555
      %v629 = vunpack.c.l.b16 %v556
      %v630 = vunpack.c.l.b16 %v557
      %v631 = vunpack.c.l.b16 %v558
      %v632 = vunpack.c.l.b16 %v559
      %v633 = vunpack.c.l.b16 %v560
      %v634 = vunpack.c.l.b16 %v561
      %v635 = vunpack.c.l.b16 %v562
      %v636 = vunpack.c.l.b16 %v563
      %v637 = vunpack.c.l.b16 %v564
      %v638 = vunpack.c.l.b16 %v565
      %v639 = vunpack.c.l.b16 %v566
      %v640 = vunpack.c.l.b16 %v567
      %v641 = vunpack.c.l.b16 %v568
      %v642 = vpack.c.b16 %v611, %v610
      %v643 = vpack.c.b16 %v613, %v612
      %v644 = vpack.c.b16 %v615, %v614
      %v645 = vpack.c.b16 %v617, %v616
      %v646 = vpack.c.b16 %v619, %v618
      %v647 = vpack.c.b16 %v621, %v620
      %v648 = vpack.c.b16 %v623, %v622
      %v649 = vpack.c.b16 %v625, %v624
      %v650 = vpack.c.b16 %v627, %v626
      %v651 = vpack.c.b16 %v629, %v628
      %v652 = vpack.c.b16 %v631, %v630
      %v653 = vpack.c.b16 %v633, %v632
      %v654 = vpack.c.b16 %v635, %v634
      %v655 = vpack.c.b16 %v637, %v636
      %v656 = vpack.c.b16 %v639, %v638
      %v657 = vpack.c.b16 %v641, %v640
      %674 = vmatprep.subr.bf16.mxu0 0
      %675 = vmatpush1.bf16.msra.mxu0 %v649
      %676 = vmatprep.subr.bf16.mxu0 0
      %677 = vmatpush1.bf16.msra.mxu0 %v648
      %678 = vmatprep.subr.bf16.mxu0 0
      %679 = vmatpush1.bf16.msra.mxu0 %v647
      %680 = vmatprep.subr.bf16.mxu0 0
      %681 = vmatpush1.bf16.msra.mxu0 %v646
      %682 = vmatprep.subr.bf16.mxu0 0
      %683 = vmatpush1.bf16.msra.mxu0 %v645
      %684 = vmatprep.subr.bf16.mxu0 0
      %685 = vmatpush1.bf16.msra.mxu0 %v644
      %686 = vmatprep.subr.bf16.mxu0 0
      %687 = vmatpush1.bf16.msra.mxu0 %v643
      %688 = vmatprep.subr.bf16.mxu0 0
      %689 = vmatpush1.bf16.msra.mxu0 %v642
      %690 = vmatprep.subr.bf16.mxu0 0
      %691 = vmatpush2.bf16.msra.mxu0 %v657
      %692 = vmatprep.subr.bf16.mxu0 0
      %693 = vmatpush2.bf16.msra.mxu0 %v656
      %694 = vmatprep.subr.bf16.mxu0 0
      %695 = vmatpush2.bf16.msra.mxu0 %v655
      %696 = vmatprep.subr.bf16.mxu0 0
      %697 = vmatpush2.bf16.msra.mxu0 %v654
      %698 = vmatprep.subr.bf16.mxu0 0
      %699 = vmatpush2.bf16.msra.mxu0 %v653
      %700 = vmatprep.subr.bf16.mxu0 0
      %701 = vmatpush2.bf16.msra.mxu0 %v652
      %702 = vmatprep.subr.bf16.mxu0 0
      %703 = vmatpush2.bf16.msra.mxu0 %v651
      %704 = vmatprep.subr.bf16.mxu0 0
      %705 = vmatpush2.bf16.msra.mxu0 %v650
      %706 = vmatprep.mubr.bf16.mxu0 %v575
      %707 = vmatmul.mubr.bf16.gmra.mxu0 %v574
      %v708 = vpop.f32.mrf.mxu0
      %v709 = vadd.f32 0.0, %v708
      %v710 = vpop.f32.mrf.mxu0
      %v711 = vpop.f32.mrf.mxu0
      %v712 = vpop.f32.mrf.mxu0
      %713 = vdwg.mxu0
      %v714 = vadd.f32 %v530, %v709
      %v715 = vld [vmem:[%s163] sm:$0x66]
      %s716 = scalar_lea.vmem %s1, 384
      %v717 = vld [vmem:[%s716] sm:$0xf]
      %v718 = vld [vmem:[%s716 + $0x4] sm:$0xf]
      %v719 = vld [vmem:[%s716 + $0x8] sm:$0xf]
      %v720 = vld [vmem:[%s716 + $0xc] sm:$0xf]
      %v721 = vld [vmem:[%s716 + $0x10] sm:$0xf]
      %v722 = vld [vmem:[%s716 + $0x14] sm:$0xf]
      %v723 = vld [vmem:[%s716 + $0x18] sm:$0xf]
      %v724 = vld [vmem:[%s716 + $0x1c] sm:$0xf]
      %v725 = vld [vmem:[%s716 + $0x20] sm:$0xf]
      %v726 = vld [vmem:[%s716 + $0x24] sm:$0xf]
      %v727 = vld [vmem:[%s716 + $0x28] sm:$0xf]
      %v728 = vld [vmem:[%s716 + $0x2c] sm:$0xf]
      %v729 = vld [vmem:[%s716 + $0x30] sm:$0xf]
      %v730 = vld [vmem:[%s716 + $0x34] sm:$0xf]
      %v731 = vld [vmem:[%s716 + $0x38] sm:$0xf]
      %v732 = vld [vmem:[%s716 + $0x3c] sm:$0xf]
      %v733 = vld [vmem:[%s716 + $0x40] sm:$0xf]
      %v734 = vld [vmem:[%s716 + $0x44] sm:$0xf]
      %v735 = vld [vmem:[%s716 + $0x48] sm:$0xf]
      %v736 = vld [vmem:[%s716 + $0x4c] sm:$0xf]
      %v737 = vld [vmem:[%s716 + $0x50] sm:$0xf]
      %v738 = vld [vmem:[%s716 + $0x54] sm:$0xf]
      %v739 = vld [vmem:[%s716 + $0x58] sm:$0xf]
      %v740 = vld [vmem:[%s716 + $0x5c] sm:$0xf]
      %v741 = vld [vmem:[%s716 + $0x60] sm:$0xf]
      %v742 = vld [vmem:[%s716 + $0x64] sm:$0xf]
      %v743 = vld [vmem:[%s716 + $0x68] sm:$0xf]
      %v744 = vld [vmem:[%s716 + $0x6c] sm:$0xf]
      %v745 = vld [vmem:[%s716 + $0x70] sm:$0xf]
      %v746 = vld [vmem:[%s716 + $0x74] sm:$0xf]
      %v747 = vld [vmem:[%s716 + $0x78] sm:$0xf]
      %v748 = vld [vmem:[%s716 + $0x7c] sm:$0xf]
      %v750 = vunpack.c.l.b16 %v715
      %v751 = vunpack.c.h.b16 %v715
      %v752 = vpack.c.b16 %v750, %v750
      %v753 = vpack.c.b16 %v751, %v751
      %v755 = vshrl.u32 %v752, 16
      %v757 = vrot.slane %v755, 1
      %v758 = vshll.u32 %v752, 16
      %v760 = vrot.slane %v758, 2
      %v761 = vor.u32 %v757, %v760
      %v763 = vshrl.u32 %v753, 16
      %v765 = vrot.slane %v763, 1
      %v766 = vshll.u32 %v753, 16
      %v768 = vrot.slane %v766, 2
      %v769 = vor.u32 %v765, %v768
      %v804 = vunpack.c.l.b16 %v717
      %v805 = vunpack.c.l.b16 %v718
      %v806 = vunpack.c.l.b16 %v719
      %v807 = vunpack.c.l.b16 %v720
      %v808 = vunpack.c.l.b16 %v721
      %v809 = vunpack.c.l.b16 %v722
      %v810 = vunpack.c.l.b16 %v723
      %v811 = vunpack.c.l.b16 %v724
      %v812 = vunpack.c.l.b16 %v725
      %v813 = vunpack.c.l.b16 %v726
      %v814 = vunpack.c.l.b16 %v727
      %v815 = vunpack.c.l.b16 %v728
      %v816 = vunpack.c.l.b16 %v729
      %v817 = vunpack.c.l.b16 %v730
      %v818 = vunpack.c.l.b16 %v731
      %v819 = vunpack.c.l.b16 %v732
      %v820 = vunpack.c.l.b16 %v733
      %v821 = vunpack.c.l.b16 %v734
      %v822 = vunpack.c.l.b16 %v735
      %v823 = vunpack.c.l.b16 %v736
      %v824 = vunpack.c.l.b16 %v737
      %v825 = vunpack.c.l.b16 %v738
      %v826 = vunpack.c.l.b16 %v739
      %v827 = vunpack.c.l.b16 %v740
      %v828 = vunpack.c.l.b16 %v741
      %v829 = vunpack.c.l.b16 %v742
      %v830 = vunpack.c.l.b16 %v743
      %v831 = vunpack.c.l.b16 %v744
      %v832 = vunpack.c.l.b16 %v745
      %v833 = vunpack.c.l.b16 %v746
      %v834 = vunpack.c.l.b16 %v747
      %v835 = vunpack.c.l.b16 %v748
      %v836 = vpack.c.b16 %v805, %v804
      %v837 = vpack.c.b16 %v807, %v806
      %v838 = vpack.c.b16 %v809, %v808
      %v839 = vpack.c.b16 %v811, %v810
      %v840 = vpack.c.b16 %v813, %v812
      %v841 = vpack.c.b16 %v815, %v814
      %v842 = vpack.c.b16 %v817, %v816
      %v843 = vpack.c.b16 %v819, %v818
      %v844 = vpack.c.b16 %v821, %v820
      %v845 = vpack.c.b16 %v823, %v822
      %v846 = vpack.c.b16 %v825, %v824
      %v847 = vpack.c.b16 %v827, %v826
      %v848 = vpack.c.b16 %v829, %v828
      %v849 = vpack.c.b16 %v831, %v830
      %v850 = vpack.c.b16 %v833, %v832
      %v851 = vpack.c.b16 %v835, %v834
      %868 = vmatprep.subr.bf16.mxu0 0
      %869 = vmatpush1.bf16.msra.mxu0 %v843
      %870 = vmatprep.subr.bf16.mxu0 0
      %871 = vmatpush1.bf16.msra.mxu0 %v842
      %872 = vmatprep.subr.bf16.mxu0 0
      %873 = vmatpush1.bf16.msra.mxu0 %v841
      %874 = vmatprep.subr.bf16.mxu0 0
      %875 = vmatpush1.bf16.msra.mxu0 %v840
      %876 = vmatprep.subr.bf16.mxu0 0
      %877 = vmatpush1.bf16.msra.mxu0 %v839
      %878 = vmatprep.subr.bf16.mxu0 0
      %879 = vmatpush1.bf16.msra.mxu0 %v838
      %880 = vmatprep.subr.bf16.mxu0 0
      %881 = vmatpush1.bf16.msra.mxu0 %v837
      %882 = vmatprep.subr.bf16.mxu0 0
      %883 = vmatpush1.bf16.msra.mxu0 %v836
      %884 = vmatprep.subr.bf16.mxu0 0
      %885 = vmatpush2.bf16.msra.mxu0 %v851
      %886 = vmatprep.subr.bf16.mxu0 0
      %887 = vmatpush2.bf16.msra.mxu0 %v850
      %888 = vmatprep.subr.bf16.mxu0 0
      %889 = vmatpush2.bf16.msra.mxu0 %v849
      %890 = vmatprep.subr.bf16.mxu0 0
      %891 = vmatpush2.bf16.msra.mxu0 %v848
      %892 = vmatprep.subr.bf16.mxu0 0
      %893 = vmatpush2.bf16.msra.mxu0 %v847
      %894 = vmatprep.subr.bf16.mxu0 0
      %895 = vmatpush2.bf16.msra.mxu0 %v846
      %896 = vmatprep.subr.bf16.mxu0 0
      %897 = vmatpush2.bf16.msra.mxu0 %v845
      %898 = vmatprep.subr.bf16.mxu0 0
      %899 = vmatpush2.bf16.msra.mxu0 %v844
      %900 = vmatprep.mubr.bf16.mxu0 %v769
      %901 = vmatmul.mubr.bf16.gmra.mxu0 %v761
      %v902 = vpop.f32.mrf.mxu0
      %v903 = vadd.f32 0.0, %v902
      %v904 = vpop.f32.mrf.mxu0
      %v905 = vpop.f32.mrf.mxu0
      %v906 = vpop.f32.mrf.mxu0
      %907 = vdwg.mxu0
      %v908 = vadd.f32 %v714, %v903
      %v909 = vld [vmem:[%s2] sm:$0x7]
      %v910 = vlaneseq
      %v911 = vshrl.u32 %v910, 7
      %v912 = vsub.s32 0, %v911
      %v913 = vrot.slane %v909, %v912
      %v914 = vadd.f32 %v908, %v913
      %vm915 = vcmp.ge.f32.partialorder %v914, 0.0
      %v916 = vmul.f32 %v914, 0.2
      %v917 = vsel %vm915, %v914, %v916
      %v918 = vlaneseq
      %v919 = vshrl.u32 %v918, 7
      %v920 = vsub.s32 1, %v919
      %v921 = vrot.slane %v909, %v920
      %v922 = vmul.f32 %v917, %v921
      %v923 = vlaneseq
      %v924 = vshrl.u32 %v923, 7
      %v925 = vsub.s32 2, %v924
      %v926 = vrot.slane %v909, %v925
      %v927 = vadd.f32 %v922, %v926
      %v928 = vpack.c.bf16 %v927, %v927
      %929 = vst [vmem:[%s166] sm:$0x1] %v928
      %p930 = scmp.lt.s32.totalorder %s14, 1
      %s931 = scalar_select %p930, %s14, 1
      %s932 = scalar_lea.vmem %s3, %s931
      // Predicated region
      $region33: #{discriminator_forward.8} parent=31 // pred_check
        %p933 = pneg %p100
      $region34: #{discriminator_forward.8} parent=31 // pred_check_branch
        %935 = sbr.rel (%p933) target = $region36
      $region35: #{discriminator_forward.8} parent=31 // pred_region
        _
      $region36: #{discriminator_forward.8} parent=31 // pred_fallthru
        _
    $region32: #{discriminator_forward.8} parent=5 // pred_fallthru
      _
    %p936 = scmp.le.s32.totalorder 2, %s9
    // Predicated region
    $region37: #{discriminator_forward.8} parent=5 // pred_check
      %p937 = pneg %p936
    $region38: #{discriminator_forward.8} parent=5 // pred_check_branch
      %939 = sbr.rel (%p937) target = $region40
    $region39: #{discriminator_forward.8} parent=5 // pred_region
      %s940 = ssub.s32 %s9, 2
      // Predicated region
      $region41: #{discriminator_forward.8} parent=39 // pred_check
        %p941 = pneg %p106
      $region42: #{discriminator_forward.8} parent=39 // pred_check_branch
        %943 = sbr.rel (%p941) target = $region44
      $region43: #{discriminator_forward.8} parent=39 // pred_region
        %p944 = scmp.lt.s32.totalorder %s15, 1
        %s945 = scalar_select %p944, %s15, 1
        %s946 = scalar_lea.vmem %s3, %s945
      $region44: #{discriminator_forward.8} parent=39 // pred_fallthru
        _
    $region40: #{discriminator_forward.8} parent=5 // pred_fallthru
      _
  $region6: #{discriminator_forward.8} parent=0 // loop_footer
    %s13 = sadd.s32 1, %s9
  $region7: #{discriminator_forward.8} parent=0 // loop_footer_branch
    %8 = sbr.rel target = $region3
  $region8: #{discriminator_forward.8} parent=0 // loop_exit
    _

</llo_original>
